<compile_context>
chip_gen: v7x
topology: tpu7x:2x2x1
jax: 0.10.0
libtpu: 0.0.40
codegen_flags: <defaults>
</compile_context>

<pallas_src>
import jax
import jax.numpy as jnp
from jax.experimental import pallas as pl
from jax.experimental.pallas import tpu as pltpu

HIDDEN = 10          # hidden_dim of the PyTorch module
K = 16               # number of mixture components
_H3 = 3 * HIDDEN
_K3 = 3 * K


def _mdn_fused_kernel(x_ref, w1_ref, bias_ref, w2_ref,
                      means_ref, log_sigma2s_ref, weights_ref):
    """Fused 3-head MDN forward, batch-major.

    x_ref    : (tb, H)        input features (batch on the sublane axis)
    w1_ref   : (H, 3H)        fused first-layer weights
    bias_ref : (1, 3H + 3K)   fused first+second layer biases
    w2_ref   : (3H, 3K)       block-diagonal second-layer weights
    outputs  : three (tb, K) refs: means, log_sigma2s, softmax weights
    """
    x = x_ref[...]                                    # (tb, H)
    bias = bias_ref[...]                              # (1, 3H + 3K)
    b1 = bias[:, :_H3]                                # (1, 3H)
    b2 = bias[:, _H3:]                                # (1, 3K)

    h = jnp.dot(x, w1_ref[...],
                preferred_element_type=jnp.float32,
                precision=jax.lax.Precision.HIGHEST) + b1
    h = jnp.maximum(h, 0.0)                           # ReLU, (tb, 3H)
    z = jnp.dot(h, w2_ref[...],
                preferred_element_type=jnp.float32,
                precision=jax.lax.Precision.HIGHEST) + b2   # (tb, 3K)

    means_ref[...] = z[:, 0:K]
    log_sigma2s_ref[...] = z[:, K:2 * K]

    # softmax over the K mixture components (lane axis), exact division
    logits = z[:, 2 * K:]                             # (tb, K)
    m = jnp.max(logits, axis=-1, keepdims=True)
    e = jnp.exp(logits - m)
    denom = jnp.sum(e, axis=-1, keepdims=True)
    weights_ref[...] = e / denom


def _fuse_params(params):
    """Fuse the 12 per-head params into 3 arrays (done once in the wrapper)."""
    (w1m, b1m, w2m, b2m, w1s, b1s, w2s, b2s, w1w, b1w, w2w, b2w) = params
    w1f = jnp.concatenate([w1m, w1s, w1w], axis=1)            # (H, 3H)
    w2f = jnp.zeros((_H3, _K3), jnp.float32)                  # block-diagonal
    w2f = w2f.at[0:HIDDEN, 0:K].set(w2m)
    w2f = w2f.at[HIDDEN:2 * HIDDEN, K:2 * K].set(w2s)
    w2f = w2f.at[2 * HIDDEN:, 2 * K:].set(w2w)
    biasf = jnp.concatenate([b1m, b1s, b1w, b2m, b2s, b2w], axis=1)  # (1, 3H+3K)
    return w1f, biasf, w2f


def toy_noise_net(x, params, *, tb=4096):
    """Pallas forward. x: (B, HIDDEN) f32. Returns (means, log_sigma2s, weights),
    each (B, K) f32, matching the PyTorch module."""
    B, H = x.shape
    assert H == HIDDEN
    w1f, biasf, w2f = _fuse_params(params)

    # Tile selection: one grid step whenever the whole batch fits the cap
    # (no per-step overhead; ideal on single-TC v5e/v6e).  For large B, split
    # into big 'parallel' steps so v7x's two TensorCores each get real work.
    tb_cap = max(128, (int(tb) // 128) * 128)
    if B <= tb_cap:
        block_rows = B                     # single step; block == full dim
        grid = (1,)
    else:
        block_rows = tb_cap                # multiple of 128; last tile masked
        grid = (pl.cdiv(B, tb_cap),)

    rep = lambda shape: pl.BlockSpec(shape, lambda i: (0, 0))
    out_spec = pl.BlockSpec((block_rows, K), lambda i: (i, 0))
    out_sds = jax.ShapeDtypeStruct((B, K), jnp.float32)

    means, log_sigma2s, weights = pl.pallas_call(
        _mdn_fused_kernel,
        out_shape=(out_sds, out_sds, out_sds),
        grid=grid,
        in_specs=[
            pl.BlockSpec((block_rows, HIDDEN), lambda i: (i, 0)),  # x tile
            rep((HIDDEN, _H3)),                                    # fused W1
            rep((1, _H3 + _K3)),                                   # fused biases
            rep((_H3, _K3)),                                       # block-diag W2
        ],
        out_specs=(out_spec, out_spec, out_spec),
        compiler_params=pltpu.CompilerParams(
            dimension_semantics=("parallel",),
            vmem_limit_bytes=32 * 1024 * 1024,
        ),
    )(x, w1f, biasf, w2f)
    return means, log_sigma2s, weights


def init_params(key):
    """Deterministic init mimicking nn.Linear default (uniform +-1/sqrt(fan_in)).
    Weights stored as (in, out) (transpose of PyTorch's (out, in)); biases as (1, out)."""
    def linear(key, fan_in, fan_out):
        kw, kb = jax.random.split(key)
        bound = 1.0 / jnp.sqrt(float(fan_in))
        w = jax.random.uniform(kw, (fan_in, fan_out), jnp.float32, -bound, bound)
        b = jax.random.uniform(kb, (1, fan_out), jnp.float32, -bound, bound)
        return w, b

    keys = jax.random.split(key, 6)
    w1m, b1m = linear(keys[0], HIDDEN, HIDDEN)
    w2m, b2m = linear(keys[1], HIDDEN, K)
    w1s, b1s = linear(keys[2], HIDDEN, HIDDEN)
    w2s, b2s = linear(keys[3], HIDDEN, K)
    w1w, b1w = linear(keys[4], HIDDEN, HIDDEN)
    w2w, b2w = linear(keys[5], HIDDEN, K)
    return (w1m, b1m, w2m, b2m, w1s, b1s, w2s, b2s, w1w, b1w, w2w, b2w)


def reference_forward(x, params):
    """Pure-JAX reference of the PyTorch forward for verification."""
    (w1m, b1m, w2m, b2m, w1s, b1s, w2s, b2s, w1w, b1w, w2w, b2w) = params
    dot = lambda a, b: jnp.dot(a, b, precision=jax.lax.Precision.HIGHEST)

    def head(w1, b1, w2, b2):
        h = jnp.maximum(dot(x, w1) + b1, 0.0)
        return dot(h, w2) + b2

    means = head(w1m, b1m, w2m, b2m)
    log_sigma2s = head(w1s, b1s, w2s, b2s)
    logits = head(w1w, b1w, w2w, b2w)
    weights = jax.nn.softmax(logits, axis=1)
    return means, log_sigma2s, weights


if __name__ == "__main__":
    key = jax.random.PRNGKey(0)
    k_params, k_x = jax.random.split(key)
    params = init_params(k_params)

    # Test 1: B=256 -> single grid step (whole batch fits the tile cap).
    B = 256
    x = jax.random.normal(k_x, (B, HIDDEN), dtype=jnp.float32)
    means, log_sigma2s, weights = toy_noise_net(x, params)
    jax.block_until_ready((means, log_sigma2s, weights))

    ref_m, ref_s, ref_w = reference_forward(x, params)
    assert jnp.allclose(means, ref_m, atol=1e-5), "means mismatch"
    assert jnp.allclose(log_sigma2s, ref_s, atol=1e-5), "log_sigma2s mismatch"
    assert jnp.allclose(weights, ref_w, atol=1e-5), "weights mismatch"
    assert jnp.allclose(jnp.sum(weights, axis=1), 1.0, atol=1e-5), "softmax not normalized"

    # Test 2: ragged multi-step grid (B=1000 with 256-row tiles -> 4 steps,
    # last tile overhangs and its out-of-bounds output rows are masked).
    B2 = 1000
    x2 = jax.random.normal(jax.random.PRNGKey(1), (B2, HIDDEN), dtype=jnp.float32)
    m2, s2, w2 = toy_noise_net(x2, params, tb=256)
    jax.block_until_ready((m2, s2, w2))
    rm2, rs2, rw2 = reference_forward(x2, params)
    assert jnp.allclose(m2, rm2, atol=1e-5), "ragged means mismatch"
    assert jnp.allclose(s2, rs2, atol=1e-5), "ragged log_sigma2s mismatch"
    assert jnp.allclose(w2, rw2, atol=1e-5), "ragged weights mismatch"

    # Test 3: small batch (exercises block == full-dim path with B not a tile multiple).
    B3 = 200
    x3 = jax.random.normal(jax.random.PRNGKey(2), (B3, HIDDEN), dtype=jnp.float32)
    m3, s3, w3 = toy_noise_net(x3, params)
    jax.block_until_ready((m3, s3, w3))
    rm3, rs3, rw3 = reference_forward(x3, params)
    assert jnp.allclose(m3, rm3, atol=1e-5), "small-batch means mismatch"
    assert jnp.allclose(s3, rs3, atol=1e-5), "small-batch log_sigma2s mismatch"
    assert jnp.allclose(w3, rw3, atol=1e-5), "small-batch weights mismatch"

    print("KERNEL_OK")
</pallas_src>

<mosaic_0001>
module attributes {stable_mosaic.version = 11 : i64} {
  func.func @_mdn_fused_kernel(%arg0: i32, %arg1: memref<256x10xf32, #tpu.memory_space<vmem>>, %arg2: memref<10x30xf32, #tpu.memory_space<vmem>>, %arg3: memref<1x78xf32, #tpu.memory_space<vmem>>, %arg4: memref<30x48xf32, #tpu.memory_space<vmem>>, %arg5: memref<256x16xf32, #tpu.memory_space<vmem>>, %arg6: memref<256x16xf32, #tpu.memory_space<vmem>>, %arg7: memref<256x16xf32, #tpu.memory_space<vmem>>) attributes {dimension_semantics = [#tpu.dimension_semantics<parallel>], iteration_bounds = array<i64: 1>, scalar_prefetch = 0 : i64, scratch_operands = 0 : i64, tpu.core_type = #tpu.core_type<tc>, window_params = [{transform_indices = @transform_0, window_bounds = array<i64: 256, 10>}, {pipeline_mode = #tpu.pipeline_mode<synchronous>, transform_indices = @transform_1, window_bounds = array<i64: 10, 30>}, {pipeline_mode = #tpu.pipeline_mode<synchronous>, transform_indices = @transform_2, window_bounds = array<i64: 1, 78>}, {pipeline_mode = #tpu.pipeline_mode<synchronous>, transform_indices = @transform_3, window_bounds = array<i64: 30, 48>}, {transform_indices = @transform_4, window_bounds = array<i64: 256, 16>}, {transform_indices = @transform_5, window_bounds = array<i64: 256, 16>}, {transform_indices = @transform_6, window_bounds = array<i64: 256, 16>}]} {
    %c0 = arith.constant 0 : index
    %c0_0 = arith.constant 0 : index
    %0 = vector.load %arg1[%c0, %c0_0] : memref<256x10xf32, #tpu.memory_space<vmem>>, vector<256x10xf32>
    %c0_1 = arith.constant 0 : index
    %c0_2 = arith.constant 0 : index
    %1 = vector.load %arg3[%c0_1, %c0_2] : memref<1x78xf32, #tpu.memory_space<vmem>>, vector<1x78xf32>
    %2 = vector.extract_strided_slice %1 {offsets = [0, 0], sizes = [1, 30], strides = [1, 1]} : vector<1x78xf32> to vector<1x30xf32>
    %3 = vector.extract_strided_slice %1 {offsets = [0, 30], sizes = [1, 48], strides = [1, 1]} : vector<1x78xf32> to vector<1x48xf32>
    %c0_3 = arith.constant 0 : index
    %c0_4 = arith.constant 0 : index
    %4 = vector.load %arg2[%c0_3, %c0_4] : memref<10x30xf32, #tpu.memory_space<vmem>>, vector<10x30xf32>
    %cst = arith.constant dense<0.000000e+00> : vector<256x30xf32>
    %5 = tpu.matmul %0, %4, %cst {dimension_numbers = #tpu.dot_dimension_numbers<[1], [0], [0], [1], [0, 0, 1, 1], [], []>, precision = #tpu.contract_precision<fp32>} : vector<256x10xf32>, vector<10x30xf32>, vector<256x30xf32> -> vector<256x30xf32>
    %6 = vector.broadcast %2 : vector<1x30xf32> to vector<256x30xf32>
    %7 = arith.addf %5, %6 : vector<256x30xf32>
    %cst_5 = arith.constant 0.000000e+00 : f32
    %8 = vector.broadcast %cst_5 : f32 to vector<256x30xf32>
    %9 = arith.maximumf %7, %8 : vector<256x30xf32>
    %c0_6 = arith.constant 0 : index
    %c0_7 = arith.constant 0 : index
    %10 = vector.load %arg4[%c0_6, %c0_7] : memref<30x48xf32, #tpu.memory_space<vmem>>, vector<30x48xf32>
    %cst_8 = arith.constant dense<0.000000e+00> : vector<256x48xf32>
    %11 = tpu.matmul %9, %10, %cst_8 {dimension_numbers = #tpu.dot_dimension_numbers<[1], [0], [0], [1], [0, 0, 1, 1], [], []>, precision = #tpu.contract_precision<fp32>} : vector<256x30xf32>, vector<30x48xf32>, vector<256x48xf32> -> vector<256x48xf32>
    %12 = vector.broadcast %3 : vector<1x48xf32> to vector<256x48xf32>
    %13 = arith.addf %11, %12 : vector<256x48xf32>
    %14 = vector.extract_strided_slice %13 {offsets = [0, 0], sizes = [256, 16], strides = [1, 1]} : vector<256x48xf32> to vector<256x16xf32>
    %c0_9 = arith.constant 0 : index
    %c0_10 = arith.constant 0 : index
    %15 = vector.load %arg5[%c0_9, %c0_10] : memref<256x16xf32, #tpu.memory_space<vmem>>, vector<256x16xf32>
    tpu.vector_store %arg5[%c0_9, %c0_10], %14 {strides = array<i32>} : memref<256x16xf32, #tpu.memory_space<vmem>>, vector<256x16xf32>,
    %16 = vector.extract_strided_slice %13 {offsets = [0, 16], sizes = [256, 16], strides = [1, 1]} : vector<256x48xf32> to vector<256x16xf32>
    %c0_11 = arith.constant 0 : index
    %c0_12 = arith.constant 0 : index
    %17 = vector.load %arg6[%c0_11, %c0_12] : memref<256x16xf32, #tpu.memory_space<vmem>>, vector<256x16xf32>
    tpu.vector_store %arg6[%c0_11, %c0_12], %16 {strides = array<i32>} : memref<256x16xf32, #tpu.memory_space<vmem>>, vector<256x16xf32>,
    %18 = vector.extract_strided_slice %13 {offsets = [0, 32], sizes = [256, 16], strides = [1, 1]} : vector<256x48xf32> to vector<256x16xf32>
    %cst_13 = arith.constant dense<0xFF800000> : vector<256xf32>
    %19 = vector.multi_reduction <maximumf>, %18, %cst_13 [1] : vector<256x16xf32> to vector<256xf32>
    %20 = vector.shape_cast %19 : vector<256xf32> to vector<256x1xf32>
    %21 = vector.broadcast %20 : vector<256x1xf32> to vector<256x16xf32>
    %22 = arith.subf %18, %21 : vector<256x16xf32>
    %23 = math.exp %22 : vector<256x16xf32>
    %cst_14 = arith.constant dense<0.000000e+00> : vector<256xf32>
    %24 = vector.multi_reduction <add>, %23, %cst_14 [1] : vector<256x16xf32> to vector<256xf32>
    %25 = vector.shape_cast %24 : vector<256xf32> to vector<256x1xf32>
    %26 = vector.broadcast %25 : vector<256x1xf32> to vector<256x16xf32>
    %27 = arith.divf %23, %26 : vector<256x16xf32>
    %c0_15 = arith.constant 0 : index
    %c0_16 = arith.constant 0 : index
    %28 = vector.load %arg7[%c0_15, %c0_16] : memref<256x16xf32, #tpu.memory_space<vmem>>, vector<256x16xf32>
    tpu.vector_store %arg7[%c0_15, %c0_16], %27 {strides = array<i32>} : memref<256x16xf32, #tpu.memory_space<vmem>>, vector<256x16xf32>,
    return
  }
  func.func @transform_0(%arg0: i32) -> (i32, i32) {
    %c0_i32 = arith.constant 0 : i32
    %c0_i32_0 = arith.constant 0 : i32
    return %arg0, %c0_i32 : i32, i32
  }
  func.func @transform_1(%arg0: i32) -> (i32, i32) {
    %c0_i32 = arith.constant 0 : i32
    %c0_i32_0 = arith.constant 0 : i32
    %c0_i32_1 = arith.constant 0 : i32
    return %c0_i32, %c0_i32_0 : i32, i32
  }
  func.func @transform_2(%arg0: i32) -> (i32, i32) {
    %c0_i32 = arith.constant 0 : i32
    %c0_i32_0 = arith.constant 0 : i32
    %c0_i32_1 = arith.constant 0 : i32
    return %c0_i32, %c0_i32_0 : i32, i32
  }
  func.func @transform_3(%arg0: i32) -> (i32, i32) {
    %c0_i32 = arith.constant 0 : i32
    %c0_i32_0 = arith.constant 0 : i32
    %c0_i32_1 = arith.constant 0 : i32
    return %c0_i32, %c0_i32_0 : i32, i32
  }
  func.func @transform_4(%arg0: i32) -> (i32, i32) {
    %c0_i32 = arith.constant 0 : i32
    %c0_i32_0 = arith.constant 0 : i32
    return %arg0, %c0_i32 : i32, i32
  }
  func.func @transform_5(%arg0: i32) -> (i32, i32) {
    %c0_i32 = arith.constant 0 : i32
    %c0_i32_0 = arith.constant 0 : i32
    return %arg0, %c0_i32 : i32, i32
  }
  func.func @transform_6(%arg0: i32) -> (i32, i32) {
    %c0_i32 = arith.constant 0 : i32
    %c0_i32_0 = arith.constant 0 : i32
    return %arg0, %c0_i32 : i32, i32
  }
}

</mosaic_0001>

<llo_original>
// kernel: tpu_custom_call.1
$region0: #{tpu_custom_call.1}
  #allocation0 [shape = 'u32[]', space=smem, size = 0x4, offset = 0x4, fixed_abs, tag = 'smem constant byte address 0x4 - core index']
  #allocation1 [shape = 'u32[144,128]{1,0:T(1,128)}', space=vmem, size = 0x12000, scoped, tag = 'internal scratch']
  %s0 = inlined_call_operand.vmem [shape: f32[256,10], index: 0, kind: input, shape index: {}]
  %s1 = inlined_call_operand.vmem [shape: f32[10,30], index: 1, kind: input, shape index: {}]
  %s2 = inlined_call_operand.vmem [shape: f32[1,78], index: 2, kind: input, shape index: {}]
  %s3 = inlined_call_operand.vmem [shape: f32[30,48], index: 3, kind: input, shape index: {}]
  %s4 = inlined_call_operand.vmem [shape: f32[256,16], index: 4, kind: output, shape index: {0}]
  %s5 = inlined_call_operand.vmem [shape: f32[256,16], index: 5, kind: output, shape index: {1}]
  %s6 = inlined_call_operand.vmem [shape: f32[256,16], index: 6, kind: output, shape index: {2}]
  %7 = xla_tuple %s4, %s5, %s6
  %s8 = sld [smem:[#allocation0]]
  $region42: #{tpu_custom_call.1} parent=0
    _
  %s10 = ssub.s32 1, %s8
  %s11 = scalar_select 0, %s10, %s8
  // Predicated region
  $region2: #{tpu_custom_call.1} parent=0 // pred_check
    _
  $region3: #{tpu_custom_call.1} parent=0 // pred_check_branch
    %13 = sbr.rel (0) target = $region5
  $region4: #{tpu_custom_call.1} parent=0 // pred_region
    _
  $region5: #{tpu_custom_call.1} parent=0 // pred_fallthru
    _
  // Predicated region
  $region6: #{tpu_custom_call.1} parent=0 // pred_check
    _
  $region7: #{tpu_custom_call.1} parent=0 // pred_check_branch
    %15 = sbr.rel (0) target = $region9
  $region8: #{tpu_custom_call.1} parent=0 // pred_region
    _
  $region9: #{tpu_custom_call.1} parent=0 // pred_fallthru
    _
  // Predicated region
  $region10: #{tpu_custom_call.1} parent=0 // pred_check
    _
  $region11: #{tpu_custom_call.1} parent=0 // pred_check_branch
    %17 = sbr.rel (0) target = $region13
  $region12: #{tpu_custom_call.1} parent=0 // pred_region
    _
  $region13: #{tpu_custom_call.1} parent=0 // pred_fallthru
    _
  // Predicated region
  $region14: #{tpu_custom_call.1} parent=0 // pred_check
    _
  $region15: #{tpu_custom_call.1} parent=0 // pred_check_branch
    %19 = sbr.rel (0) target = $region17
  $region16: #{tpu_custom_call.1} parent=0 // pred_region
    _
  $region17: #{tpu_custom_call.1} parent=0 // pred_fallthru
    _
  %v20 = vld [vmem:[%s0] sm:$0xff]
  %v21 = vld [vmem:[%s0 + $0x8] sm:$0xff]
  %v22 = vld [vmem:[%s0 + $0x10] sm:$0xff]
  %v23 = vld [vmem:[%s0 + $0x18] sm:$0xff]
  %v24 = vld [vmem:[%s0 + $0x20] sm:$0xff]
  %v25 = vld [vmem:[%s0 + $0x28] sm:$0xff]
  %v26 = vld [vmem:[%s0 + $0x30] sm:$0xff]
  %v27 = vld [vmem:[%s0 + $0x38] sm:$0xff]
  %v28 = vld [vmem:[%s0 + $0x40] sm:$0xff]
  %v29 = vld [vmem:[%s0 + $0x48] sm:$0xff]
  %v30 = vld [vmem:[%s0 + $0x50] sm:$0xff]
  %v31 = vld [vmem:[%s0 + $0x58] sm:$0xff]
  %v32 = vld [vmem:[%s0 + $0x60] sm:$0xff]
  %v33 = vld [vmem:[%s0 + $0x68] sm:$0xff]
  %v34 = vld [vmem:[%s0 + $0x70] sm:$0xff]
  %v35 = vld [vmem:[%s0 + $0x78] sm:$0xff]
  %v36 = vld [vmem:[%s0 + $0x80] sm:$0xff]
  %v37 = vld [vmem:[%s0 + $0x88] sm:$0xff]
  %v38 = vld [vmem:[%s0 + $0x90] sm:$0xff]
  %v39 = vld [vmem:[%s0 + $0x98] sm:$0xff]
  %v40 = vld [vmem:[%s0 + $0xa0] sm:$0xff]
  %v41 = vld [vmem:[%s0 + $0xa8] sm:$0xff]
  %v42 = vld [vmem:[%s0 + $0xb0] sm:$0xff]
  %v43 = vld [vmem:[%s0 + $0xb8] sm:$0xff]
  %v44 = vld [vmem:[%s0 + $0xc0] sm:$0xff]
  %v45 = vld [vmem:[%s0 + $0xc8] sm:$0xff]
  %v46 = vld [vmem:[%s0 + $0xd0] sm:$0xff]
  %v47 = vld [vmem:[%s0 + $0xd8] sm:$0xff]
  %v48 = vld [vmem:[%s0 + $0xe0] sm:$0xff]
  %v49 = vld [vmem:[%s0 + $0xe8] sm:$0xff]
  %v50 = vld [vmem:[%s0 + $0xf0] sm:$0xff]
  %v51 = vld [vmem:[%s0 + $0xf8] sm:$0xff]
  %v52 = vld [vmem:[%s2] sm:$0x1]
  %v53 = vld [vmem:[%s1] sm:$0xff]
  %v54 = vld [vmem:[%s1 + $0x8] sm:$0x3]
  %v56 = vlaneseq
  %v57 = vshrl.u32 %v56, 7
  %v58 = vsub.s32 0, %v57
  %v59 = vrot.slane %v52, %v58
  %vm61 = vcmask 80896
  %v63 = vsel %vm61, %v20, 0
  %v66 = vsel %vm61, %v21, 0
  %v69 = vsel %vm61, %v22, 0
  %v72 = vsel %vm61, %v23, 0
  %v75 = vsel %vm61, %v24, 0
  %v78 = vsel %vm61, %v25, 0
  %v81 = vsel %vm61, %v26, 0
  %v84 = vsel %vm61, %v27, 0
  %v87 = vsel %vm61, %v28, 0
  %v90 = vsel %vm61, %v29, 0
  %v93 = vsel %vm61, %v30, 0
  %v96 = vsel %vm61, %v31, 0
  %v99 = vsel %vm61, %v32, 0
  %v102 = vsel %vm61, %v33, 0
  %v105 = vsel %vm61, %v34, 0
  %v108 = vsel %vm61, %v35, 0
  %v111 = vsel %vm61, %v36, 0
  %v114 = vsel %vm61, %v37, 0
  %v117 = vsel %vm61, %v38, 0
  %v120 = vsel %vm61, %v39, 0
  %v123 = vsel %vm61, %v40, 0
  %v126 = vsel %vm61, %v41, 0
  %v129 = vsel %vm61, %v42, 0
  %v132 = vsel %vm61, %v43, 0
  %v135 = vsel %vm61, %v44, 0
  %v138 = vsel %vm61, %v45, 0
  %v141 = vsel %vm61, %v46, 0
  %v144 = vsel %vm61, %v47, 0
  %v147 = vsel %vm61, %v48, 0
  %v150 = vsel %vm61, %v49, 0
  %v153 = vsel %vm61, %v50, 0
  %v156 = vsel %vm61, %v51, 0
  %vm158 = vcmask 1041408
  %v160 = vsel %vm158, %v54, 0
  %162 = vmatprep.subr.mxu0 0.0
  %v163 = vand.u32 %v53, 4294901760
  %164 = vmatpush1.msra.mxu0 %v163
  %165 = vmatprep.subr.mxu0 0.0
  %v166 = vand.u32 %v160, 4294901760
  %167 = vmatpush1.msra.mxu0 %v166
  %168 = vmatprep.subr.mxu0 0.0
  %169 = vmatpush1.msra.mxu0 0.0
  %170 = vmatprep.subr.mxu0 0.0
  %171 = vmatpush1.msra.mxu0 0.0
  %172 = vmatprep.subr.mxu0 0.0
  %173 = vmatpush1.msra.mxu0 0.0
  %174 = vmatprep.subr.mxu0 0.0
  %175 = vmatpush1.msra.mxu0 0.0
  %176 = vmatprep.subr.mxu0 0.0
  %177 = vmatpush1.msra.mxu0 0.0
  %178 = vmatprep.subr.mxu0 0.0
  %179 = vmatpush1.msra.mxu0 0.0
  %180 = vmatprep.subr.mxu0 0.0
  %181 = vmatpush1.msra.mxu0 0.0
  %182 = vmatprep.subr.mxu0 0.0
  %183 = vmatpush1.msra.mxu0 0.0
  %184 = vmatprep.subr.mxu0 0.0
  %185 = vmatpush1.msra.mxu0 0.0
  %186 = vmatprep.subr.mxu0 0.0
  %187 = vmatpush1.msra.mxu0 0.0
  %188 = vmatprep.subr.mxu0 0.0
  %189 = vmatpush1.msra.mxu0 0.0
  %190 = vmatprep.subr.mxu0 0.0
  %191 = vmatpush1.msra.mxu0 0.0
  %192 = vmatprep.subr.mxu0 0.0
  %193 = vmatpush1.msra.mxu0 0.0
  %194 = vmatprep.subr.mxu0 0.0
  %195 = vmatpush1.msra.mxu0 0.0
  %196 = vmatprep.subr.mxu0 0.0
  %197 = vmatpush1.msra.mxu0 0.0
  %198 = vmatprep.subr.mxu0 0.0
  %199 = vmatpush1.msra.mxu0 0.0
  %200 = vmatprep.subr.mxu0 0.0
  %201 = vmatpush1.msra.mxu0 0.0
  %202 = vmatprep.subr.mxu0 0.0
  %203 = vmatpush1.msra.mxu0 0.0
  %204 = vmatprep.subr.mxu0 0.0
  %205 = vmatpush1.msra.mxu0 0.0
  %206 = vmatprep.subr.mxu0 0.0
  %207 = vmatpush1.msra.mxu0 0.0
  %208 = vmatprep.subr.mxu0 0.0
  %209 = vmatpush1.msra.mxu0 0.0
  %210 = vmatprep.subr.mxu0 0.0
  %211 = vmatpush1.msra.mxu0 0.0
  %212 = vmatprep.subr.mxu0 0.0
  %213 = vmatpush1.msra.mxu0 0.0
  %214 = vmatprep.subr.mxu0 0.0
  %215 = vmatpush1.msra.mxu0 0.0
  %216 = vmatprep.subr.mxu0 0.0
  %217 = vmatpush1.msra.mxu0 0.0
  %218 = vmatprep.subr.mxu0 0.0
  %219 = vmatpush1.msra.mxu0 0.0
  %220 = vmatprep.subr.mxu0 0.0
  %221 = vmatpush1.msra.mxu0 0.0
  %222 = vmatprep.subr.mxu0 0.0
  %223 = vmatpush1.msra.mxu0 0.0
  %224 = vmatprep.subr.mxu0 0.0
  %225 = vmatpush1.msra.mxu0 0.0
  %226 = vmatprep.subr.mxu0 0.0
  %227 = vmatpush1.msra.mxu0 0.0
  %228 = vmatprep.mubr.f32.mxu0 0.0
  %v229 = vand.u32 %v63, 4294901760
  %v230 = vsub.f32 %v63, %v229
  %v231 = vand.u32 %v230, 4294901760
  %v232 = vsub.f32 %v230, %v231
  %v233 = vand.u32 %v232, 4294901760
  %234 = vmatmul.mubr.f32.gmra.mrb[0].mxu0 %v233
  %v235 = vpop.f32.mrb[0].mxu0
  %v236 = vadd.f32 %v59, %v235
  %v237 = vpop.f32.mrb[0].mxu0
  %238 = vmatprep.mubr.f32.mxu0 0.0
  %v239 = vand.u32 %v66, 4294901760
  %v240 = vsub.f32 %v66, %v239
  %v241 = vand.u32 %v240, 4294901760
  %v242 = vsub.f32 %v240, %v241
  %v243 = vand.u32 %v242, 4294901760
  %244 = vmatmul.mubr.f32.gmra.mrb[0].mxu0 %v243
  %v245 = vpop.f32.mrb[0].mxu0
  %v246 = vadd.f32 %v59, %v245
  %v247 = vpop.f32.mrb[0].mxu0
  %248 = vmatprep.mubr.f32.mxu0 0.0
  %v249 = vand.u32 %v69, 4294901760
  %v250 = vsub.f32 %v69, %v249
  %v251 = vand.u32 %v250, 4294901760
  %v252 = vsub.f32 %v250, %v251
  %v253 = vand.u32 %v252, 4294901760
  %254 = vmatmul.mubr.f32.gmra.mrb[0].mxu0 %v253
  %v255 = vpop.f32.mrb[0].mxu0
  %v256 = vadd.f32 %v59, %v255
  %v257 = vpop.f32.mrb[0].mxu0
  %258 = vmatprep.mubr.f32.mxu0 0.0
  %v259 = vand.u32 %v72, 4294901760
  %v260 = vsub.f32 %v72, %v259
  %v261 = vand.u32 %v260, 4294901760
  %v262 = vsub.f32 %v260, %v261
  %v263 = vand.u32 %v262, 4294901760
  %264 = vmatmul.mubr.f32.gmra.mrb[0].mxu0 %v263
  %v265 = vpop.f32.mrb[0].mxu0
  %v266 = vadd.f32 %v59, %v265
  %v267 = vpop.f32.mrb[0].mxu0
  %268 = vmatprep.mubr.f32.mxu0 0.0
  %v269 = vand.u32 %v75, 4294901760
  %v270 = vsub.f32 %v75, %v269
  %v271 = vand.u32 %v270, 4294901760
  %v272 = vsub.f32 %v270, %v271
  %v273 = vand.u32 %v272, 4294901760
  %274 = vmatmul.mubr.f32.gmra.mrb[0].mxu0 %v273
  %v275 = vpop.f32.mrb[0].mxu0
  %v276 = vadd.f32 %v59, %v275
  %v277 = vpop.f32.mrb[0].mxu0
  %278 = vmatprep.mubr.f32.mxu0 0.0
  %v279 = vand.u32 %v78, 4294901760
  %v280 = vsub.f32 %v78, %v279
  %v281 = vand.u32 %v280, 4294901760
  %v282 = vsub.f32 %v280, %v281
  %v283 = vand.u32 %v282, 4294901760
  %284 = vmatmul.mubr.f32.gmra.mrb[0].mxu0 %v283
  %v285 = vpop.f32.mrb[0].mxu0
  %v286 = vadd.f32 %v59, %v285
  %v287 = vpop.f32.mrb[0].mxu0
  %288 = vmatprep.mubr.f32.mxu0 0.0
  %v289 = vand.u32 %v81, 4294901760
  %v290 = vsub.f32 %v81, %v289
  %v291 = vand.u32 %v290, 4294901760
  %v292 = vsub.f32 %v290, %v291
  %v293 = vand.u32 %v292, 4294901760
  %294 = vmatmul.mubr.f32.gmra.mrb[0].mxu0 %v293
  %v295 = vpop.f32.mrb[0].mxu0
  %v296 = vadd.f32 %v59, %v295
  %v297 = vpop.f32.mrb[0].mxu0
  %298 = vmatprep.mubr.f32.mxu0 0.0
  %v299 = vand.u32 %v84, 4294901760
  %v300 = vsub.f32 %v84, %v299
  %v301 = vand.u32 %v300, 4294901760
  %v302 = vsub.f32 %v300, %v301
  %v303 = vand.u32 %v302, 4294901760
  %304 = vmatmul.mubr.f32.gmra.mrb[0].mxu0 %v303
  %v305 = vpop.f32.mrb[0].mxu0
  %v306 = vadd.f32 %v59, %v305
  %v307 = vpop.f32.mrb[0].mxu0
  %308 = vmatprep.mubr.f32.mxu0 0.0
  %v309 = vand.u32 %v87, 4294901760
  %v310 = vsub.f32 %v87, %v309
  %v311 = vand.u32 %v310, 4294901760
  %v312 = vsub.f32 %v310, %v311
  %v313 = vand.u32 %v312, 4294901760
  %314 = vmatmul.mubr.f32.gmra.mrb[0].mxu0 %v313
  %v315 = vpop.f32.mrb[0].mxu0
  %v316 = vadd.f32 %v59, %v315
  %v317 = vpop.f32.mrb[0].mxu0
  %318 = vmatprep.mubr.f32.mxu0 0.0
  %v319 = vand.u32 %v90, 4294901760
  %v320 = vsub.f32 %v90, %v319
  %v321 = vand.u32 %v320, 4294901760
  %v322 = vsub.f32 %v320, %v321
  %v323 = vand.u32 %v322, 4294901760
  %324 = vmatmul.mubr.f32.gmra.mrb[0].mxu0 %v323
  %v325 = vpop.f32.mrb[0].mxu0
  %v326 = vadd.f32 %v59, %v325
  %v327 = vpop.f32.mrb[0].mxu0
  %328 = vmatprep.mubr.f32.mxu0 0.0
  %v329 = vand.u32 %v93, 4294901760
  %v330 = vsub.f32 %v93, %v329
  %v331 = vand.u32 %v330, 4294901760
  %v332 = vsub.f32 %v330, %v331
  %v333 = vand.u32 %v332, 4294901760
  %334 = vmatmul.mubr.f32.gmra.mrb[0].mxu0 %v333
  %v335 = vpop.f32.mrb[0].mxu0
  %v336 = vadd.f32 %v59, %v335
  %v337 = vpop.f32.mrb[0].mxu0
  %338 = vmatprep.mubr.f32.mxu0 0.0
  %v339 = vand.u32 %v96, 4294901760
  %v340 = vsub.f32 %v96, %v339
  %v341 = vand.u32 %v340, 4294901760
  %v342 = vsub.f32 %v340, %v341
  %v343 = vand.u32 %v342, 4294901760
  %344 = vmatmul.mubr.f32.gmra.mrb[0].mxu0 %v343
  %v345 = vpop.f32.mrb[0].mxu0
  %v346 = vadd.f32 %v59, %v345
  %v347 = vpop.f32.mrb[0].mxu0
  %348 = vmatprep.mubr.f32.mxu0 0.0
  %v349 = vand.u32 %v99, 4294901760
  %v350 = vsub.f32 %v99, %v349
  %v351 = vand.u32 %v350, 4294901760
  %v352 = vsub.f32 %v350, %v351
  %v353 = vand.u32 %v352, 4294901760
  %354 = vmatmul.mubr.f32.gmra.mrb[0].mxu0 %v353
  %v355 = vpop.f32.mrb[0].mxu0
  %v356 = vadd.f32 %v59, %v355
  %v357 = vpop.f32.mrb[0].mxu0
  %358 = vmatprep.mubr.f32.mxu0 0.0
  %v359 = vand.u32 %v102, 4294901760
  %v360 = vsub.f32 %v102, %v359
  %v361 = vand.u32 %v360, 4294901760
  %v362 = vsub.f32 %v360, %v361
  %v363 = vand.u32 %v362, 4294901760
  %364 = vmatmul.mubr.f32.gmra.mrb[0].mxu0 %v363
  %v365 = vpop.f32.mrb[0].mxu0
  %v366 = vadd.f32 %v59, %v365
  %v367 = vpop.f32.mrb[0].mxu0
  %368 = vmatprep.mubr.f32.mxu0 0.0
  %v369 = vand.u32 %v105, 4294901760
  %v370 = vsub.f32 %v105, %v369
  %v371 = vand.u32 %v370, 4294901760
  %v372 = vsub.f32 %v370, %v371
  %v373 = vand.u32 %v372, 4294901760
  %374 = vmatmul.mubr.f32.gmra.mrb[0].mxu0 %v373
  %v375 = vpop.f32.mrb[0].mxu0
  %v376 = vadd.f32 %v59, %v375
  %v377 = vpop.f32.mrb[0].mxu0
  %378 = vmatprep.mubr.f32.mxu0 0.0
  %v379 = vand.u32 %v108, 4294901760
  %v380 = vsub.f32 %v108, %v379
  %v381 = vand.u32 %v380, 4294901760
  %v382 = vsub.f32 %v380, %v381
  %v383 = vand.u32 %v382, 4294901760
  %384 = vmatmul.mubr.f32.gmra.mrb[0].mxu0 %v383
  %v385 = vpop.f32.mrb[0].mxu0
  %v386 = vadd.f32 %v59, %v385
  %v387 = vpop.f32.mrb[0].mxu0
  %388 = vmatprep.mubr.f32.mxu0 0.0
  %v389 = vand.u32 %v111, 4294901760
  %v390 = vsub.f32 %v111, %v389
  %v391 = vand.u32 %v390, 4294901760
  %v392 = vsub.f32 %v390, %v391
  %v393 = vand.u32 %v392, 4294901760
  %394 = vmatmul.mubr.f32.gmra.mrb[0].mxu0 %v393
  %v395 = vpop.f32.mrb[0].mxu0
  %v396 = vadd.f32 %v59, %v395
  %v397 = vpop.f32.mrb[0].mxu0
  %398 = vmatprep.mubr.f32.mxu0 0.0
  %v399 = vand.u32 %v114, 4294901760
  %v400 = vsub.f32 %v114, %v399
  %v401 = vand.u32 %v400, 4294901760
  %v402 = vsub.f32 %v400, %v401
  %v403 = vand.u32 %v402, 4294901760
  %404 = vmatmul.mubr.f32.gmra.mrb[0].mxu0 %v403
  %v405 = vpop.f32.mrb[0].mxu0
  %v406 = vadd.f32 %v59, %v405
  %v407 = vpop.f32.mrb[0].mxu0
  %408 = vmatprep.mubr.f32.mxu0 0.0
  %v409 = vand.u32 %v117, 4294901760
  %v410 = vsub.f32 %v117, %v409
  %v411 = vand.u32 %v410, 4294901760
  %v412 = vsub.f32 %v410, %v411
  %v413 = vand.u32 %v412, 4294901760
  %414 = vmatmul.mubr.f32.gmra.mrb[0].mxu0 %v413
  %v415 = vpop.f32.mrb[0].mxu0
  %v416 = vadd.f32 %v59, %v415
  %v417 = vpop.f32.mrb[0].mxu0
  %418 = vmatprep.mubr.f32.mxu0 0.0
  %v419 = vand.u32 %v120, 4294901760
  %v420 = vsub.f32 %v120, %v419
  %v421 = vand.u32 %v420, 4294901760
  %v422 = vsub.f32 %v420, %v421
  %v423 = vand.u32 %v422, 4294901760
  %424 = vmatmul.mubr.f32.gmra.mrb[0].mxu0 %v423
  %v425 = vpop.f32.mrb[0].mxu0
  %v426 = vadd.f32 %v59, %v425
  %v427 = vpop.f32.mrb[0].mxu0
  %428 = vmatprep.mubr.f32.mxu0 0.0
  %v429 = vand.u32 %v123, 4294901760
  %v430 = vsub.f32 %v123, %v429
  %v431 = vand.u32 %v430, 4294901760
  %v432 = vsub.f32 %v430, %v431
  %v433 = vand.u32 %v432, 4294901760
  %434 = vmatmul.mubr.f32.gmra.mrb[0].mxu0 %v433
  %v435 = vpop.f32.mrb[0].mxu0
  %v436 = vadd.f32 %v59, %v435
  %v437 = vpop.f32.mrb[0].mxu0
  %438 = vmatprep.mubr.f32.mxu0 0.0
  %v439 = vand.u32 %v126, 4294901760
  %v440 = vsub.f32 %v126, %v439
  %v441 = vand.u32 %v440, 4294901760
  %v442 = vsub.f32 %v440, %v441
  %v443 = vand.u32 %v442, 4294901760
  %444 = vmatmul.mubr.f32.gmra.mrb[0].mxu0 %v443
  %v445 = vpop.f32.mrb[0].mxu0
  %v446 = vadd.f32 %v59, %v445
  %v447 = vpop.f32.mrb[0].mxu0
  %448 = vmatprep.mubr.f32.mxu0 0.0
  %v449 = vand.u32 %v129, 4294901760
  %v450 = vsub.f32 %v129, %v449
  %v451 = vand.u32 %v450, 4294901760
  %v452 = vsub.f32 %v450, %v451
  %v453 = vand.u32 %v452, 4294901760
  %454 = vmatmul.mubr.f32.gmra.mrb[0].mxu0 %v453
  %v455 = vpop.f32.mrb[0].mxu0
  %v456 = vadd.f32 %v59, %v455
  %v457 = vpop.f32.mrb[0].mxu0
  %458 = vmatprep.mubr.f32.mxu0 0.0
  %v459 = vand.u32 %v132, 4294901760
  %v460 = vsub.f32 %v132, %v459
  %v461 = vand.u32 %v460, 4294901760
  %v462 = vsub.f32 %v460, %v461
  %v463 = vand.u32 %v462, 4294901760
  %464 = vmatmul.mubr.f32.gmra.mrb[0].mxu0 %v463
  %v465 = vpop.f32.mrb[0].mxu0
  %v466 = vadd.f32 %v59, %v465
  %v467 = vpop.f32.mrb[0].mxu0
  %468 = vmatprep.mubr.f32.mxu0 0.0
  %v469 = vand.u32 %v135, 4294901760
  %v470 = vsub.f32 %v135, %v469
  %v471 = vand.u32 %v470, 4294901760
  %v472 = vsub.f32 %v470, %v471
  %v473 = vand.u32 %v472, 4294901760
  %474 = vmatmul.mubr.f32.gmra.mrb[0].mxu0 %v473
  %v475 = vpop.f32.mrb[0].mxu0
  %v476 = vadd.f32 %v59, %v475
  %v477 = vpop.f32.mrb[0].mxu0
  %478 = vmatprep.mubr.f32.mxu0 0.0
  %v479 = vand.u32 %v138, 4294901760
  %v480 = vsub.f32 %v138, %v479
  %v481 = vand.u32 %v480, 4294901760
  %v482 = vsub.f32 %v480, %v481
  %v483 = vand.u32 %v482, 4294901760
  %484 = vmatmul.mubr.f32.gmra.mrb[0].mxu0 %v483
  %v485 = vpop.f32.mrb[0].mxu0
  %v486 = vadd.f32 %v59, %v485
  %v487 = vpop.f32.mrb[0].mxu0
  %488 = vmatprep.mubr.f32.mxu0 0.0
  %v489 = vand.u32 %v141, 4294901760
  %v490 = vsub.f32 %v141, %v489
  %v491 = vand.u32 %v490, 4294901760
  %v492 = vsub.f32 %v490, %v491
  %v493 = vand.u32 %v492, 4294901760
  %494 = vmatmul.mubr.f32.gmra.mrb[0].mxu0 %v493
  %v495 = vpop.f32.mrb[0].mxu0
  %v496 = vadd.f32 %v59, %v495
  %v497 = vpop.f32.mrb[0].mxu0
  %498 = vmatprep.mubr.f32.mxu0 0.0
  %v499 = vand.u32 %v144, 4294901760
  %v500 = vsub.f32 %v144, %v499
  %v501 = vand.u32 %v500, 4294901760
  %v502 = vsub.f32 %v500, %v501
  %v503 = vand.u32 %v502, 4294901760
  %504 = vmatmul.mubr.f32.gmra.mrb[0].mxu0 %v503
  %v505 = vpop.f32.mrb[0].mxu0
  %v506 = vadd.f32 %v59, %v505
  %v507 = vpop.f32.mrb[0].mxu0
  %508 = vmatprep.mubr.f32.mxu0 0.0
  %v509 = vand.u32 %v147, 4294901760
  %v510 = vsub.f32 %v147, %v509
  %v511 = vand.u32 %v510, 4294901760
  %v512 = vsub.f32 %v510, %v511
  %v513 = vand.u32 %v512, 4294901760
  %514 = vmatmul.mubr.f32.gmra.mrb[0].mxu0 %v513
  %v515 = vpop.f32.mrb[0].mxu0
  %v516 = vadd.f32 %v59, %v515
  %v517 = vpop.f32.mrb[0].mxu0
  %518 = vmatprep.mubr.f32.mxu0 0.0
  %v519 = vand.u32 %v150, 4294901760
  %v520 = vsub.f32 %v150, %v519
  %v521 = vand.u32 %v520, 4294901760
  %v522 = vsub.f32 %v520, %v521
  %v523 = vand.u32 %v522, 4294901760
  %524 = vmatmul.mubr.f32.gmra.mrb[0].mxu0 %v523
  %v525 = vpop.f32.mrb[0].mxu0
  %v526 = vadd.f32 %v59, %v525
  %v527 = vpop.f32.mrb[0].mxu0
  %528 = vmatprep.mubr.f32.mxu0 0.0
  %v529 = vand.u32 %v153, 4294901760
  %v530 = vsub.f32 %v153, %v529
  %v531 = vand.u32 %v530, 4294901760
  %v532 = vsub.f32 %v530, %v531
  %v533 = vand.u32 %v532, 4294901760
  %534 = vmatmul.mubr.f32.gmra.mrb[0].mxu0 %v533
  %v535 = vpop.f32.mrb[0].mxu0
  %v536 = vadd.f32 %v59, %v535
  %v537 = vpop.f32.mrb[0].mxu0
  %538 = vmatprep.mubr.f32.mxu0 0.0
  %v539 = vand.u32 %v156, 4294901760
  %v540 = vsub.f32 %v156, %v539
  %v541 = vand.u32 %v540, 4294901760
  %v542 = vsub.f32 %v540, %v541
  %v543 = vand.u32 %v542, 4294901760
  %544 = vmatmul.mubr.f32.gmra.mrb[0].mxu0 %v543
  %v545 = vpop.f32.mrb[0].mxu0
  %v546 = vadd.f32 %v59, %v545
  %v547 = vpop.f32.mrb[0].mxu0
  %548 = vdwg.mxu0
  %549 = vmatprep.subr.mxu0 0.0
  %v550 = vand.u32 %v53, 4294901760
  %v551 = vsub.f32 %v53, %v550
  %v552 = vand.u32 %v551, 4294901760
  %v553 = vsub.f32 %v551, %v552
  %v554 = vand.u32 %v553, 4294901760
  %555 = vmatpush1.msra.mxu0 %v554
  %556 = vmatprep.subr.mxu0 0.0
  %v557 = vand.u32 %v160, 4294901760
  %v558 = vsub.f32 %v160, %v557
  %v559 = vand.u32 %v558, 4294901760
  %v560 = vsub.f32 %v558, %v559
  %v561 = vand.u32 %v560, 4294901760
  %562 = vmatpush1.msra.mxu0 %v561
  %563 = vmatprep.subr.mxu0 0.0
  %564 = vmatpush1.msra.mxu0 0.0
  %565 = vmatprep.subr.mxu0 0.0
  %566 = vmatpush1.msra.mxu0 0.0
  %567 = vmatprep.subr.mxu0 0.0
  %568 = vmatpush1.msra.mxu0 0.0
  %569 = vmatprep.subr.mxu0 0.0
  %570 = vmatpush1.msra.mxu0 0.0
  %571 = vmatprep.subr.mxu0 0.0
  %572 = vmatpush1.msra.mxu0 0.0
  %573 = vmatprep.subr.mxu0 0.0
  %574 = vmatpush1.msra.mxu0 0.0
  %575 = vmatprep.subr.mxu0 0.0
  %576 = vmatpush1.msra.mxu0 0.0
  %577 = vmatprep.subr.mxu0 0.0
  %578 = vmatpush1.msra.mxu0 0.0
  %579 = vmatprep.subr.mxu0 0.0
  %580 = vmatpush1.msra.mxu0 0.0
  %581 = vmatprep.subr.mxu0 0.0
  %582 = vmatpush1.msra.mxu0 0.0
  %583 = vmatprep.subr.mxu0 0.0
  %584 = vmatpush1.msra.mxu0 0.0
  %585 = vmatprep.subr.mxu0 0.0
  %586 = vmatpush1.msra.mxu0 0.0
  %587 = vmatprep.subr.mxu0 0.0
  %588 = vmatpush1.msra.mxu0 0.0
  %589 = vmatprep.subr.mxu0 0.0
  %590 = vmatpush1.msra.mxu0 0.0
  %591 = vmatprep.subr.mxu0 0.0
  %592 = vmatpush1.msra.mxu0 0.0
  %593 = vmatprep.subr.mxu0 0.0
  %594 = vmatpush1.msra.mxu0 0.0
  %595 = vmatprep.subr.mxu0 0.0
  %596 = vmatpush1.msra.mxu0 0.0
  %597 = vmatprep.subr.mxu0 0.0
  %598 = vmatpush1.msra.mxu0 0.0
  %599 = vmatprep.subr.mxu0 0.0
  %600 = vmatpush1.msra.mxu0 0.0
  %601 = vmatprep.subr.mxu0 0.0
  %602 = vmatpush1.msra.mxu0 0.0
  %603 = vmatprep.subr.mxu0 0.0
  %604 = vmatpush1.msra.mxu0 0.0
  %605 = vmatprep.subr.mxu0 0.0
  %606 = vmatpush1.msra.mxu0 0.0
  %607 = vmatprep.subr.mxu0 0.0
  %608 = vmatpush1.msra.mxu0 0.0
  %609 = vmatprep.subr.mxu0 0.0
  %610 = vmatpush1.msra.mxu0 0.0
  %611 = vmatprep.subr.mxu0 0.0
  %612 = vmatpush1.msra.mxu0 0.0
  %613 = vmatprep.subr.mxu0 0.0
  %614 = vmatpush1.msra.mxu0 0.0
  %615 = vmatprep.subr.mxu0 0.0
  %616 = vmatpush1.msra.mxu0 0.0
  %617 = vmatprep.subr.mxu0 0.0
  %618 = vmatpush1.msra.mxu0 0.0
  %619 = vmatprep.subr.mxu0 0.0
  %620 = vmatpush1.msra.mxu0 0.0
  %621 = vmatprep.subr.mxu0 0.0
  %622 = vmatpush1.msra.mxu0 0.0
  %623 = vmatprep.mubr.f32.mxu0 0.0
  %v624 = vand.u32 %v63, 4294901760
  %625 = vmatmul.mubr.f32.gmra.mrb[0].mxu0 %v624
  %v626 = vpop.f32.mrb[0].mxu0
  %v627 = vadd.f32 %v236, %v626
  %v628 = vpop.f32.mrb[0].mxu0
  %629 = vmatprep.mubr.f32.mxu0 0.0
  %v630 = vand.u32 %v66, 4294901760
  %631 = vmatmul.mubr.f32.gmra.mrb[0].mxu0 %v630
  %v632 = vpop.f32.mrb[0].mxu0
  %v633 = vadd.f32 %v246, %v632
  %v634 = vpop.f32.mrb[0].mxu0
  %635 = vmatprep.mubr.f32.mxu0 0.0
  %v636 = vand.u32 %v69, 4294901760
  %637 = vmatmul.mubr.f32.gmra.mrb[0].mxu0 %v636
  %v638 = vpop.f32.mrb[0].mxu0
  %v639 = vadd.f32 %v256, %v638
  %v640 = vpop.f32.mrb[0].mxu0
  %641 = vmatprep.mubr.f32.mxu0 0.0
  %v642 = vand.u32 %v72, 4294901760
  %643 = vmatmul.mubr.f32.gmra.mrb[0].mxu0 %v642
  %v644 = vpop.f32.mrb[0].mxu0
  %v645 = vadd.f32 %v266, %v644
  %v646 = vpop.f32.mrb[0].mxu0
  %647 = vmatprep.mubr.f32.mxu0 0.0
  %v648 = vand.u32 %v75, 4294901760
  %649 = vmatmul.mubr.f32.gmra.mrb[0].mxu0 %v648
  %v650 = vpop.f32.mrb[0].mxu0
  %v651 = vadd.f32 %v276, %v650
  %v652 = vpop.f32.mrb[0].mxu0
  %653 = vmatprep.mubr.f32.mxu0 0.0
  %v654 = vand.u32 %v78, 4294901760
  %655 = vmatmul.mubr.f32.gmra.mrb[0].mxu0 %v654
  %v656 = vpop.f32.mrb[0].mxu0
  %v657 = vadd.f32 %v286, %v656
  %v658 = vpop.f32.mrb[0].mxu0
  %659 = vmatprep.mubr.f32.mxu0 0.0
  %v660 = vand.u32 %v81, 4294901760
  %661 = vmatmul.mubr.f32.gmra.mrb[0].mxu0 %v660
  %v662 = vpop.f32.mrb[0].mxu0
  %v663 = vadd.f32 %v296, %v662
  %v664 = vpop.f32.mrb[0].mxu0
  %665 = vmatprep.mubr.f32.mxu0 0.0
  %v666 = vand.u32 %v84, 4294901760
  %667 = vmatmul.mubr.f32.gmra.mrb[0].mxu0 %v666
  %v668 = vpop.f32.mrb[0].mxu0
  %v669 = vadd.f32 %v306, %v668
  %v670 = vpop.f32.mrb[0].mxu0
  %671 = vmatprep.mubr.f32.mxu0 0.0
  %v672 = vand.u32 %v87, 4294901760
  %673 = vmatmul.mubr.f32.gmra.mrb[0].mxu0 %v672
  %v674 = vpop.f32.mrb[0].mxu0
  %v675 = vadd.f32 %v316, %v674
  %v676 = vpop.f32.mrb[0].mxu0
  %677 = vmatprep.mubr.f32.mxu0 0.0
  %v678 = vand.u32 %v90, 4294901760
  %679 = vmatmul.mubr.f32.gmra.mrb[0].mxu0 %v678
  %v680 = vpop.f32.mrb[0].mxu0
  %v681 = vadd.f32 %v326, %v680
  %v682 = vpop.f32.mrb[0].mxu0
  %683 = vmatprep.mubr.f32.mxu0 0.0
  %v684 = vand.u32 %v93, 4294901760
  %685 = vmatmul.mubr.f32.gmra.mrb[0].mxu0 %v684
  %v686 = vpop.f32.mrb[0].mxu0
  %v687 = vadd.f32 %v336, %v686
  %v688 = vpop.f32.mrb[0].mxu0
  %689 = vmatprep.mubr.f32.mxu0 0.0
  %v690 = vand.u32 %v96, 4294901760
  %691 = vmatmul.mubr.f32.gmra.mrb[0].mxu0 %v690
  %v692 = vpop.f32.mrb[0].mxu0
  %v693 = vadd.f32 %v346, %v692
  %v694 = vpop.f32.mrb[0].mxu0
  %695 = vmatprep.mubr.f32.mxu0 0.0
  %v696 = vand.u32 %v99, 4294901760
  %697 = vmatmul.mubr.f32.gmra.mrb[0].mxu0 %v696
  %v698 = vpop.f32.mrb[0].mxu0
  %v699 = vadd.f32 %v356, %v698
  %v700 = vpop.f32.mrb[0].mxu0
  %701 = vmatprep.mubr.f32.mxu0 0.0
  %v702 = vand.u32 %v102, 4294901760
  %703 = vmatmul.mubr.f32.gmra.mrb[0].mxu0 %v702
  %v704 = vpop.f32.mrb[0].mxu0
  %v705 = vadd.f32 %v366, %v704
  %v706 = vpop.f32.mrb[0].mxu0
  %707 = vmatprep.mubr.f32.mxu0 0.0
  %v708 = vand.u32 %v105, 4294901760
  %709 = vmatmul.mubr.f32.gmra.mrb[0].mxu0 %v708
  %v710 = vpop.f32.mrb[0].mxu0
  %v711 = vadd.f32 %v376, %v710
  %v712 = vpop.f32.mrb[0].mxu0
  %713 = vmatprep.mubr.f32.mxu0 0.0
  %v714 = vand.u32 %v108, 4294901760
  %715 = vmatmul.mubr.f32.gmra.mrb[0].mxu0 %v714
  %v716 = vpop.f32.mrb[0].mxu0
  %v717 = vadd.f32 %v386, %v716
  %v718 = vpop.f32.mrb[0].mxu0
  %719 = vmatprep.mubr.f32.mxu0 0.0
  %v720 = vand.u32 %v111, 4294901760
  %721 = vmatmul.mubr.f32.gmra.mrb[0].mxu0 %v720
  %v722 = vpop.f32.mrb[0].mxu0
  %v723 = vadd.f32 %v396, %v722
  %v724 = vpop.f32.mrb[0].mxu0
  %725 = vmatprep.mubr.f32.mxu0 0.0
  %v726 = vand.u32 %v114, 4294901760
  %727 = vmatmul.mubr.f32.gmra.mrb[0].mxu0 %v726
  %v728 = vpop.f32.mrb[0].mxu0
  %v729 = vadd.f32 %v406, %v728
  %v730 = vpop.f32.mrb[0].mxu0
  %731 = vmatprep.mubr.f32.mxu0 0.0
  %v732 = vand.u32 %v117, 4294901760
  %733 = vmatmul.mubr.f32.gmra.mrb[0].mxu0 %v732
  %v734 = vpop.f32.mrb[0].mxu0
  %v735 = vadd.f32 %v416, %v734
  %v736 = vpop.f32.mrb[0].mxu0
  %737 = vmatprep.mubr.f32.mxu0 0.0
  %v738 = vand.u32 %v120, 4294901760
  %739 = vmatmul.mubr.f32.gmra.mrb[0].mxu0 %v738
  %v740 = vpop.f32.mrb[0].mxu0
  %v741 = vadd.f32 %v426, %v740
  %v742 = vpop.f32.mrb[0].mxu0
  %743 = vmatprep.mubr.f32.mxu0 0.0
  %v744 = vand.u32 %v123, 4294901760
  %745 = vmatmul.mubr.f32.gmra.mrb[0].mxu0 %v744
  %v746 = vpop.f32.mrb[0].mxu0
  %v747 = vadd.f32 %v436, %v746
  %v748 = vpop.f32.mrb[0].mxu0
  %749 = vmatprep.mubr.f32.mxu0 0.0
  %v750 = vand.u32 %v126, 4294901760
  %751 = vmatmul.mubr.f32.gmra.mrb[0].mxu0 %v750
  %v752 = vpop.f32.mrb[0].mxu0
  %v753 = vadd.f32 %v446, %v752
  %v754 = vpop.f32.mrb[0].mxu0
  %755 = vmatprep.mubr.f32.mxu0 0.0
  %v756 = vand.u32 %v129, 4294901760
  %757 = vmatmul.mubr.f32.gmra.mrb[0].mxu0 %v756
  %v758 = vpop.f32.mrb[0].mxu0
  %v759 = vadd.f32 %v456, %v758
  %v760 = vpop.f32.mrb[0].mxu0
  %761 = vmatprep.mubr.f32.mxu0 0.0
  %v762 = vand.u32 %v132, 4294901760
  %763 = vmatmul.mubr.f32.gmra.mrb[0].mxu0 %v762
  %v764 = vpop.f32.mrb[0].mxu0
  %v765 = vadd.f32 %v466, %v764
  %v766 = vpop.f32.mrb[0].mxu0
  %767 = vmatprep.mubr.f32.mxu0 0.0
  %v768 = vand.u32 %v135, 4294901760
  %769 = vmatmul.mubr.f32.gmra.mrb[0].mxu0 %v768
  %v770 = vpop.f32.mrb[0].mxu0
  %v771 = vadd.f32 %v476, %v770
  %v772 = vpop.f32.mrb[0].mxu0
  %773 = vmatprep.mubr.f32.mxu0 0.0
  %v774 = vand.u32 %v138, 4294901760
  %775 = vmatmul.mubr.f32.gmra.mrb[0].mxu0 %v774
  %v776 = vpop.f32.mrb[0].mxu0
  %v777 = vadd.f32 %v486, %v776
  %v778 = vpop.f32.mrb[0].mxu0
  %779 = vmatprep.mubr.f32.mxu0 0.0
  %v780 = vand.u32 %v141, 4294901760
  %781 = vmatmul.mubr.f32.gmra.mrb[0].mxu0 %v780
  %v782 = vpop.f32.mrb[0].mxu0
  %v783 = vadd.f32 %v496, %v782
  %v784 = vpop.f32.mrb[0].mxu0
  %785 = vmatprep.mubr.f32.mxu0 0.0
  %v786 = vand.u32 %v144, 4294901760
  %787 = vmatmul.mubr.f32.gmra.mrb[0].mxu0 %v786
  %v788 = vpop.f32.mrb[0].mxu0
  %v789 = vadd.f32 %v506, %v788
  %v790 = vpop.f32.mrb[0].mxu0
  %791 = vmatprep.mubr.f32.mxu0 0.0
  %v792 = vand.u32 %v147, 4294901760
  %793 = vmatmul.mubr.f32.gmra.mrb[0].mxu0 %v792
  %v794 = vpop.f32.mrb[0].mxu0
  %v795 = vadd.f32 %v516, %v794
  %v796 = vpop.f32.mrb[0].mxu0
  %797 = vmatprep.mubr.f32.mxu0 0.0
  %v798 = vand.u32 %v150, 4294901760
  %799 = vmatmul.mubr.f32.gmra.mrb[0].mxu0 %v798
  %v800 = vpop.f32.mrb[0].mxu0
  %v801 = vadd.f32 %v526, %v800
  %v802 = vpop.f32.mrb[0].mxu0
  %803 = vmatprep.mubr.f32.mxu0 0.0
  %v804 = vand.u32 %v153, 4294901760
  %805 = vmatmul.mubr.f32.gmra.mrb[0].mxu0 %v804
  %v806 = vpop.f32.mrb[0].mxu0
  %v807 = vadd.f32 %v536, %v806
  %v808 = vpop.f32.mrb[0].mxu0
  %809 = vmatprep.mubr.f32.mxu0 0.0
  %v810 = vand.u32 %v156, 4294901760
  %811 = vmatmul.mubr.f32.gmra.mrb[0].mxu0 %v810
  %v812 = vpop.f32.mrb[0].mxu0
  %v813 = vadd.f32 %v546, %v812
  %v814 = vpop.f32.mrb[0].mxu0
  %815 = vdwg.mxu0
  %816 = vmatprep.subr.mxu0 0.0
  %v817 = vand.u32 %v53, 4294901760
  %v818 = vsub.f32 %v53, %v817
  %819 = vmatpush1.msra.mxu0 %v818
  %820 = vmatprep.subr.mxu0 0.0
  %v821 = vand.u32 %v160, 4294901760
  %v822 = vsub.f32 %v160, %v821
  %823 = vmatpush1.msra.mxu0 %v822
  %824 = vmatprep.subr.mxu0 0.0
  %825 = vmatpush1.msra.mxu0 0.0
  %826 = vmatprep.subr.mxu0 0.0
  %827 = vmatpush1.msra.mxu0 0.0
  %828 = vmatprep.subr.mxu0 0.0
  %829 = vmatpush1.msra.mxu0 0.0
  %830 = vmatprep.subr.mxu0 0.0
  %831 = vmatpush1.msra.mxu0 0.0
  %832 = vmatprep.subr.mxu0 0.0
  %833 = vmatpush1.msra.mxu0 0.0
  %834 = vmatprep.subr.mxu0 0.0
  %835 = vmatpush1.msra.mxu0 0.0
  %836 = vmatprep.subr.mxu0 0.0
  %837 = vmatpush1.msra.mxu0 0.0
  %838 = vmatprep.subr.mxu0 0.0
  %839 = vmatpush1.msra.mxu0 0.0
  %840 = vmatprep.subr.mxu0 0.0
  %841 = vmatpush1.msra.mxu0 0.0
  %842 = vmatprep.subr.mxu0 0.0
  %843 = vmatpush1.msra.mxu0 0.0
  %844 = vmatprep.subr.mxu0 0.0
  %845 = vmatpush1.msra.mxu0 0.0
  %846 = vmatprep.subr.mxu0 0.0
  %847 = vmatpush1.msra.mxu0 0.0
  %848 = vmatprep.subr.mxu0 0.0
  %849 = vmatpush1.msra.mxu0 0.0
  %850 = vmatprep.subr.mxu0 0.0
  %851 = vmatpush1.msra.mxu0 0.0
  %852 = vmatprep.subr.mxu0 0.0
  %853 = vmatpush1.msra.mxu0 0.0
  %854 = vmatprep.subr.mxu0 0.0
  %855 = vmatpush1.msra.mxu0 0.0
  %856 = vmatprep.subr.mxu0 0.0
  %857 = vmatpush1.msra.mxu0 0.0
  %858 = vmatprep.subr.mxu0 0.0
  %859 = vmatpush1.msra.mxu0 0.0
  %860 = vmatprep.subr.mxu0 0.0
  %861 = vmatpush1.msra.mxu0 0.0
  %862 = vmatprep.subr.mxu0 0.0
  %863 = vmatpush1.msra.mxu0 0.0
  %864 = vmatprep.subr.mxu0 0.0
  %865 = vmatpush1.msra.mxu0 0.0
  %866 = vmatprep.subr.mxu0 0.0
  %867 = vmatpush1.msra.mxu0 0.0
  %868 = vmatprep.subr.mxu0 0.0
  %869 = vmatpush1.msra.mxu0 0.0
  %870 = vmatprep.subr.mxu0 0.0
  %871 = vmatpush1.msra.mxu0 0.0
  %872 = vmatprep.subr.mxu0 0.0
  %873 = vmatpush1.msra.mxu0 0.0
  %874 = vmatprep.subr.mxu0 0.0
  %875 = vmatpush1.msra.mxu0 0.0
  %876 = vmatprep.subr.mxu0 0.0
  %877 = vmatpush1.msra.mxu0 0.0
  %878 = vmatprep.subr.mxu0 0.0
  %879 = vmatpush1.msra.mxu0 0.0
  %880 = vmatprep.subr.mxu0 0.0
  %881 = vmatpush1.msra.mxu0 0.0
  %882 = vmatprep.subr.mxu0 0.0
  %883 = vmatpush1.msra.mxu0 0.0
  %884 = vmatprep.mubr.f32.mxu0 0.0
  %v885 = vand.u32 %v63, 4294901760
  %v886 = vsub.f32 %v63, %v885
  %887 = vmatmul.mubr.f32.gmra.mrb[0].mxu0 %v886
  %v888 = vpop.f32.mrb[0].mxu0
  %v889 = vadd.f32 %v627, %v888
  %v890 = vpop.f32.mrb[0].mxu0
  %891 = vmatprep.mubr.f32.mxu0 0.0
  %v892 = vand.u32 %v66, 4294901760
  %v893 = vsub.f32 %v66, %v892
  %894 = vmatmul.mubr.f32.gmra.mrb[0].mxu0 %v893
  %v895 = vpop.f32.mrb[0].mxu0
  %v896 = vadd.f32 %v633, %v895
  %v897 = vpop.f32.mrb[0].mxu0
  %898 = vmatprep.mubr.f32.mxu0 0.0
  %v899 = vand.u32 %v69, 4294901760
  %v900 = vsub.f32 %v69, %v899
  %901 = vmatmul.mubr.f32.gmra.mrb[0].mxu0 %v900
  %v902 = vpop.f32.mrb[0].mxu0
  %v903 = vadd.f32 %v639, %v902
  %v904 = vpop.f32.mrb[0].mxu0
  %905 = vmatprep.mubr.f32.mxu0 0.0
  %v906 = vand.u32 %v72, 4294901760
  %v907 = vsub.f32 %v72, %v906
  %908 = vmatmul.mubr.f32.gmra.mrb[0].mxu0 %v907
  %v909 = vpop.f32.mrb[0].mxu0
  %v910 = vadd.f32 %v645, %v909
  %v911 = vpop.f32.mrb[0].mxu0
  %912 = vmatprep.mubr.f32.mxu0 0.0
  %v913 = vand.u32 %v75, 4294901760
  %v914 = vsub.f32 %v75, %v913
  %915 = vmatmul.mubr.f32.gmra.mrb[0].mxu0 %v914
  %v916 = vpop.f32.mrb[0].mxu0
  %v917 = vadd.f32 %v651, %v916
  %v918 = vpop.f32.mrb[0].mxu0
  %919 = vmatprep.mubr.f32.mxu0 0.0
  %v920 = vand.u32 %v78, 4294901760
  %v921 = vsub.f32 %v78, %v920
  %922 = vmatmul.mubr.f32.gmra.mrb[0].mxu0 %v921
  %v923 = vpop.f32.mrb[0].mxu0
  %v924 = vadd.f32 %v657, %v923
  %v925 = vpop.f32.mrb[0].mxu0
  %926 = vmatprep.mubr.f32.mxu0 0.0
  %v927 = vand.u32 %v81, 4294901760
  %v928 = vsub.f32 %v81, %v927
  %929 = vmatmul.mubr.f32.gmra.mrb[0].mxu0 %v928
  %v930 = vpop.f32.mrb[0].mxu0
  %v931 = vadd.f32 %v663, %v930
  %v932 = vpop.f32.mrb[0].mxu0
  %933 = vmatprep.mubr.f32.mxu0 0.0
  %v934 = vand.u32 %v84, 4294901760
  %v935 = vsub.f32 %v84, %v934
  %936 = vmatmul.mubr.f32.gmra.mrb[0].mxu0 %v935
  %v937 = vpop.f32.mrb[0].mxu0
  %v938 = vadd.f32 %v669, %v937
  %v939 = vpop.f32.mrb[0].mxu0
  %940 = vmatprep.mubr.f32.mxu0 0.0
  %v941 = vand.u32 %v87, 4294901760
  %v942 = vsub.f32 %v87, %v941
  %943 = vmatmul.mubr.f32.gmra.mrb[0].mxu0 %v942
  %v944 = vpop.f32.mrb[0].mxu0
  %v945 = vadd.f32 %v675, %v944
  %v946 = vpop.f32.mrb[0].mxu0
  %947 = vmatprep.mubr.f32.mxu0 0.0
  %v948 = vand.u32 %v90, 4294901760
  %v949 = vsub.f32 %v90, %v948
  %950 = vmatmul.mubr.f32.gmra.mrb[0].mxu0 %v949
  %v951 = vpop.f32.mrb[0].mxu0
  %v952 = vadd.f32 %v681, %v951
  %v953 = vpop.f32.mrb[0].mxu0
  %954 = vmatprep.mubr.f32.mxu0 0.0
  %v955 = vand.u32 %v93, 4294901760
  %v956 = vsub.f32 %v93, %v955
  %957 = vmatmul.mubr.f32.gmra.mrb[0].mxu0 %v956
  %v958 = vpop.f32.mrb[0].mxu0
  %v959 = vadd.f32 %v687, %v958
  %v960 = vpop.f32.mrb[0].mxu0
  %961 = vmatprep.mubr.f32.mxu0 0.0
  %v962 = vand.u32 %v96, 4294901760
  %v963 = vsub.f32 %v96, %v962
  %964 = vmatmul.mubr.f32.gmra.mrb[0].mxu0 %v963
  %v965 = vpop.f32.mrb[0].mxu0
  %v966 = vadd.f32 %v693, %v965
  %v967 = vpop.f32.mrb[0].mxu0
  %968 = vmatprep.mubr.f32.mxu0 0.0
  %v969 = vand.u32 %v99, 4294901760
  %v970 = vsub.f32 %v99, %v969
  %971 = vmatmul.mubr.f32.gmra.mrb[0].mxu0 %v970
  %v972 = vpop.f32.mrb[0].mxu0
  %v973 = vadd.f32 %v699, %v972
  %v974 = vpop.f32.mrb[0].mxu0
  %975 = vmatprep.mubr.f32.mxu0 0.0
  %v976 = vand.u32 %v102, 4294901760
  %v977 = vsub.f32 %v102, %v976
  %978 = vmatmul.mubr.f32.gmra.mrb[0].mxu0 %v977
  %v979 = vpop.f32.mrb[0].mxu0
  %v980 = vadd.f32 %v705, %v979
  %v981 = vpop.f32.mrb[0].mxu0
  %982 = vmatprep.mubr.f32.mxu0 0.0
  %v983 = vand.u32 %v105, 4294901760
  %v984 = vsub.f32 %v105, %v983
  %985 = vmatmul.mubr.f32.gmra.mrb[0].mxu0 %v984
  %v986 = vpop.f32.mrb[0].mxu0
  %v987 = vadd.f32 %v711, %v986
  %v988 = vpop.f32.mrb[0].mxu0
  %989 = vmatprep.mubr.f32.mxu0 0.0
  %v990 = vand.u32 %v108, 4294901760
  %v991 = vsub.f32 %v108, %v990
  %992 = vmatmul.mubr.f32.gmra.mrb[0].mxu0 %v991
  %v993 = vpop.f32.mrb[0].mxu0
  %v994 = vadd.f32 %v717, %v993
  %v995 = vpop.f32.mrb[0].mxu0
  %996 = vmatprep.mubr.f32.mxu0 0.0
  %v997 = vand.u32 %v111, 4294901760
  %v998 = vsub.f32 %v111, %v997
  %999 = vmatmul.mubr.f32.gmra.mrb[0].mxu0 %v998
  %v1000 = vpop.f32.mrb[0].mxu0
  %v1001 = vadd.f32 %v723, %v1000
  %v1002 = vpop.f32.mrb[0].mxu0
  %1003 = vmatprep.mubr.f32.mxu0 0.0
  %v1004 = vand.u32 %v114, 4294901760
  %v1005 = vsub.f32 %v114, %v1004
  %1006 = vmatmul.mubr.f32.gmra.mrb[0].mxu0 %v1005
  %v1007 = vpop.f32.mrb[0].mxu0
  %v1008 = vadd.f32 %v729, %v1007
  %v1009 = vpop.f32.mrb[0].mxu0
  %1010 = vmatprep.mubr.f32.mxu0 0.0
  %v1011 = vand.u32 %v117, 4294901760
  %v1012 = vsub.f32 %v117, %v1011
  %1013 = vmatmul.mubr.f32.gmra.mrb[0].mxu0 %v1012
  %v1014 = vpop.f32.mrb[0].mxu0
  %v1015 = vadd.f32 %v735, %v1014
  %v1016 = vpop.f32.mrb[0].mxu0
  %1017 = vmatprep.mubr.f32.mxu0 0.0
  %v1018 = vand.u32 %v120, 4294901760
  %v1019 = vsub.f32 %v120, %v1018
  %1020 = vmatmul.mubr.f32.gmra.mrb[0].mxu0 %v1019
  %v1021 = vpop.f32.mrb[0].mxu0
  %v1022 = vadd.f32 %v741, %v1021
  %v1023 = vpop.f32.mrb[0].mxu0
  %1024 = vmatprep.mubr.f32.mxu0 0.0
  %v1025 = vand.u32 %v123, 4294901760
  %v1026 = vsub.f32 %v123, %v1025
  %1027 = vmatmul.mubr.f32.gmra.mrb[0].mxu0 %v1026
  %v1028 = vpop.f32.mrb[0].mxu0
  %v1029 = vadd.f32 %v747, %v1028
  %v1030 = vpop.f32.mrb[0].mxu0
  %1031 = vmatprep.mubr.f32.mxu0 0.0
  %v1032 = vand.u32 %v126, 4294901760
  %v1033 = vsub.f32 %v126, %v1032
  %1034 = vmatmul.mubr.f32.gmra.mrb[0].mxu0 %v1033
  %v1035 = vpop.f32.mrb[0].mxu0
  %v1036 = vadd.f32 %v753, %v1035
  %v1037 = vpop.f32.mrb[0].mxu0
  %1038 = vmatprep.mubr.f32.mxu0 0.0
  %v1039 = vand.u32 %v129, 4294901760
  %v1040 = vsub.f32 %v129, %v1039
  %1041 = vmatmul.mubr.f32.gmra.mrb[0].mxu0 %v1040
  %v1042 = vpop.f32.mrb[0].mxu0
  %v1043 = vadd.f32 %v759, %v1042
  %v1044 = vpop.f32.mrb[0].mxu0
  %1045 = vmatprep.mubr.f32.mxu0 0.0
  %v1046 = vand.u32 %v132, 4294901760
  %v1047 = vsub.f32 %v132, %v1046
  %1048 = vmatmul.mubr.f32.gmra.mrb[0].mxu0 %v1047
  %v1049 = vpop.f32.mrb[0].mxu0
  %v1050 = vadd.f32 %v765, %v1049
  %v1051 = vpop.f32.mrb[0].mxu0
  %1052 = vmatprep.mubr.f32.mxu0 0.0
  %v1053 = vand.u32 %v135, 4294901760
  %v1054 = vsub.f32 %v135, %v1053
  %1055 = vmatmul.mubr.f32.gmra.mrb[0].mxu0 %v1054
  %v1056 = vpop.f32.mrb[0].mxu0
  %v1057 = vadd.f32 %v771, %v1056
  %v1058 = vpop.f32.mrb[0].mxu0
  %1059 = vmatprep.mubr.f32.mxu0 0.0
  %v1060 = vand.u32 %v138, 4294901760
  %v1061 = vsub.f32 %v138, %v1060
  %1062 = vmatmul.mubr.f32.gmra.mrb[0].mxu0 %v1061
  %v1063 = vpop.f32.mrb[0].mxu0
  %v1064 = vadd.f32 %v777, %v1063
  %v1065 = vpop.f32.mrb[0].mxu0
  %1066 = vmatprep.mubr.f32.mxu0 0.0
  %v1067 = vand.u32 %v141, 4294901760
  %v1068 = vsub.f32 %v141, %v1067
  %1069 = vmatmul.mubr.f32.gmra.mrb[0].mxu0 %v1068
  %v1070 = vpop.f32.mrb[0].mxu0
  %v1071 = vadd.f32 %v783, %v1070
  %v1072 = vpop.f32.mrb[0].mxu0
  %1073 = vmatprep.mubr.f32.mxu0 0.0
  %v1074 = vand.u32 %v144, 4294901760
  %v1075 = vsub.f32 %v144, %v1074
  %1076 = vmatmul.mubr.f32.gmra.mrb[0].mxu0 %v1075
  %v1077 = vpop.f32.mrb[0].mxu0
  %v1078 = vadd.f32 %v789, %v1077
  %v1079 = vpop.f32.mrb[0].mxu0
  %1080 = vmatprep.mubr.f32.mxu0 0.0
  %v1081 = vand.u32 %v147, 4294901760
  %v1082 = vsub.f32 %v147, %v1081
  %1083 = vmatmul.mubr.f32.gmra.mrb[0].mxu0 %v1082
  %v1084 = vpop.f32.mrb[0].mxu0
  %v1085 = vadd.f32 %v795, %v1084
  %v1086 = vpop.f32.mrb[0].mxu0
  %1087 = vmatprep.mubr.f32.mxu0 0.0
  %v1088 = vand.u32 %v150, 4294901760
  %v1089 = vsub.f32 %v150, %v1088
  %1090 = vmatmul.mubr.f32.gmra.mrb[0].mxu0 %v1089
  %v1091 = vpop.f32.mrb[0].mxu0
  %v1092 = vadd.f32 %v801, %v1091
  %v1093 = vpop.f32.mrb[0].mxu0
  %1094 = vmatprep.mubr.f32.mxu0 0.0
  %v1095 = vand.u32 %v153, 4294901760
  %v1096 = vsub.f32 %v153, %v1095
  %1097 = vmatmul.mubr.f32.gmra.mrb[0].mxu0 %v1096
  %v1098 = vpop.f32.mrb[0].mxu0
  %v1099 = vadd.f32 %v807, %v1098
  %v1100 = vpop.f32.mrb[0].mxu0
  %1101 = vmatprep.mubr.f32.mxu0 0.0
  %v1102 = vand.u32 %v156, 4294901760
  %v1103 = vsub.f32 %v156, %v1102
  %1104 = vmatmul.mubr.f32.gmra.mrb[0].mxu0 %v1103
  %v1105 = vpop.f32.mrb[0].mxu0
  %v1106 = vadd.f32 %v813, %v1105
  %v1107 = vpop.f32.mrb[0].mxu0
  %1108 = vdwg.mxu0
  %1109 = vmatprep.subr.mxu0 0.0
  %v1110 = vand.u32 %v53, 4294901760
  %1111 = vmatpush1.msra.mxu0 %v1110
  %1112 = vmatprep.subr.mxu0 0.0
  %v1113 = vand.u32 %v160, 4294901760
  %1114 = vmatpush1.msra.mxu0 %v1113
  %1115 = vmatprep.subr.mxu0 0.0
  %1116 = vmatpush1.msra.mxu0 0.0
  %1117 = vmatprep.subr.mxu0 0.0
  %1118 = vmatpush1.msra.mxu0 0.0
  %1119 = vmatprep.subr.mxu0 0.0
  %1120 = vmatpush1.msra.mxu0 0.0
  %1121 = vmatprep.subr.mxu0 0.0
  %1122 = vmatpush1.msra.mxu0 0.0
  %1123 = vmatprep.subr.mxu0 0.0
  %1124 = vmatpush1.msra.mxu0 0.0
  %1125 = vmatprep.subr.mxu0 0.0
  %1126 = vmatpush1.msra.mxu0 0.0
  %1127 = vmatprep.subr.mxu0 0.0
  %1128 = vmatpush1.msra.mxu0 0.0
  %1129 = vmatprep.subr.mxu0 0.0
  %1130 = vmatpush1.msra.mxu0 0.0
  %1131 = vmatprep.subr.mxu0 0.0
  %1132 = vmatpush1.msra.mxu0 0.0
  %1133 = vmatprep.subr.mxu0 0.0
  %1134 = vmatpush1.msra.mxu0 0.0
  %1135 = vmatprep.subr.mxu0 0.0
  %1136 = vmatpush1.msra.mxu0 0.0
  %1137 = vmatprep.subr.mxu0 0.0
  %1138 = vmatpush1.msra.mxu0 0.0
  %1139 = vmatprep.subr.mxu0 0.0
  %1140 = vmatpush1.msra.mxu0 0.0
  %1141 = vmatprep.subr.mxu0 0.0
  %1142 = vmatpush1.msra.mxu0 0.0
  %1143 = vmatprep.subr.mxu0 0.0
  %1144 = vmatpush1.msra.mxu0 0.0
  %1145 = vmatprep.subr.mxu0 0.0
  %1146 = vmatpush1.msra.mxu0 0.0
  %1147 = vmatprep.subr.mxu0 0.0
  %1148 = vmatpush1.msra.mxu0 0.0
  %1149 = vmatprep.subr.mxu0 0.0
  %1150 = vmatpush1.msra.mxu0 0.0
  %1151 = vmatprep.subr.mxu0 0.0
  %1152 = vmatpush1.msra.mxu0 0.0
  %1153 = vmatprep.subr.mxu0 0.0
  %1154 = vmatpush1.msra.mxu0 0.0
  %1155 = vmatprep.subr.mxu0 0.0
  %1156 = vmatpush1.msra.mxu0 0.0
  %1157 = vmatprep.subr.mxu0 0.0
  %1158 = vmatpush1.msra.mxu0 0.0
  %1159 = vmatprep.subr.mxu0 0.0
  %1160 = vmatpush1.msra.mxu0 0.0
  %1161 = vmatprep.subr.mxu0 0.0
  %1162 = vmatpush1.msra.mxu0 0.0
  %1163 = vmatprep.subr.mxu0 0.0
  %1164 = vmatpush1.msra.mxu0 0.0
  %1165 = vmatprep.subr.mxu0 0.0
  %1166 = vmatpush1.msra.mxu0 0.0
  %1167 = vmatprep.subr.mxu0 0.0
  %1168 = vmatpush1.msra.mxu0 0.0
  %1169 = vmatprep.subr.mxu0 0.0
  %1170 = vmatpush1.msra.mxu0 0.0
  %1171 = vmatprep.subr.mxu0 0.0
  %1172 = vmatpush1.msra.mxu0 0.0
  %1173 = vmatprep.subr.mxu0 0.0
  %1174 = vmatpush1.msra.mxu0 0.0
  %1175 = vmatprep.mubr.f32.mxu0 0.0
  %v1176 = vand.u32 %v63, 4294901760
  %v1177 = vsub.f32 %v63, %v1176
  %v1178 = vand.u32 %v1177, 4294901760
  %1179 = vmatmul.mubr.f32.gmra.mrb[0].mxu0 %v1178
  %v1180 = vpop.f32.mrb[0].mxu0
  %v1181 = vadd.f32 %v889, %v1180
  %v1182 = vpop.f32.mrb[0].mxu0
  %1183 = vmatprep.mubr.f32.mxu0 0.0
  %v1184 = vand.u32 %v66, 4294901760
  %v1185 = vsub.f32 %v66, %v1184
  %v1186 = vand.u32 %v1185, 4294901760
  %1187 = vmatmul.mubr.f32.gmra.mrb[0].mxu0 %v1186
  %v1188 = vpop.f32.mrb[0].mxu0
  %v1189 = vadd.f32 %v896, %v1188
  %v1190 = vpop.f32.mrb[0].mxu0
  %1191 = vmatprep.mubr.f32.mxu0 0.0
  %v1192 = vand.u32 %v69, 4294901760
  %v1193 = vsub.f32 %v69, %v1192
  %v1194 = vand.u32 %v1193, 4294901760
  %1195 = vmatmul.mubr.f32.gmra.mrb[0].mxu0 %v1194
  %v1196 = vpop.f32.mrb[0].mxu0
  %v1197 = vadd.f32 %v903, %v1196
  %v1198 = vpop.f32.mrb[0].mxu0
  %1199 = vmatprep.mubr.f32.mxu0 0.0
  %v1200 = vand.u32 %v72, 4294901760
  %v1201 = vsub.f32 %v72, %v1200
  %v1202 = vand.u32 %v1201, 4294901760
  %1203 = vmatmul.mubr.f32.gmra.mrb[0].mxu0 %v1202
  %v1204 = vpop.f32.mrb[0].mxu0
  %v1205 = vadd.f32 %v910, %v1204
  %v1206 = vpop.f32.mrb[0].mxu0
  %1207 = vmatprep.mubr.f32.mxu0 0.0
  %v1208 = vand.u32 %v75, 4294901760
  %v1209 = vsub.f32 %v75, %v1208
  %v1210 = vand.u32 %v1209, 4294901760
  %1211 = vmatmul.mubr.f32.gmra.mrb[0].mxu0 %v1210
  %v1212 = vpop.f32.mrb[0].mxu0
  %v1213 = vadd.f32 %v917, %v1212
  %v1214 = vpop.f32.mrb[0].mxu0
  %1215 = vmatprep.mubr.f32.mxu0 0.0
  %v1216 = vand.u32 %v78, 4294901760
  %v1217 = vsub.f32 %v78, %v1216
  %v1218 = vand.u32 %v1217, 4294901760
  %1219 = vmatmul.mubr.f32.gmra.mrb[0].mxu0 %v1218
  %v1220 = vpop.f32.mrb[0].mxu0
  %v1221 = vadd.f32 %v924, %v1220
  %v1222 = vpop.f32.mrb[0].mxu0
  %1223 = vmatprep.mubr.f32.mxu0 0.0
  %v1224 = vand.u32 %v81, 4294901760
  %v1225 = vsub.f32 %v81, %v1224
  %v1226 = vand.u32 %v1225, 4294901760
  %1227 = vmatmul.mubr.f32.gmra.mrb[0].mxu0 %v1226
  %v1228 = vpop.f32.mrb[0].mxu0
  %v1229 = vadd.f32 %v931, %v1228
  %v1230 = vpop.f32.mrb[0].mxu0
  %1231 = vmatprep.mubr.f32.mxu0 0.0
  %v1232 = vand.u32 %v84, 4294901760
  %v1233 = vsub.f32 %v84, %v1232
  %v1234 = vand.u32 %v1233, 4294901760
  %1235 = vmatmul.mubr.f32.gmra.mrb[0].mxu0 %v1234
  %v1236 = vpop.f32.mrb[0].mxu0
  %v1237 = vadd.f32 %v938, %v1236
  %v1238 = vpop.f32.mrb[0].mxu0
  %1239 = vmatprep.mubr.f32.mxu0 0.0
  %v1240 = vand.u32 %v87, 4294901760
  %v1241 = vsub.f32 %v87, %v1240
  %v1242 = vand.u32 %v1241, 4294901760
  %1243 = vmatmul.mubr.f32.gmra.mrb[0].mxu0 %v1242
  %v1244 = vpop.f32.mrb[0].mxu0
  %v1245 = vadd.f32 %v945, %v1244
  %v1246 = vpop.f32.mrb[0].mxu0
  %1247 = vmatprep.mubr.f32.mxu0 0.0
  %v1248 = vand.u32 %v90, 4294901760
  %v1249 = vsub.f32 %v90, %v1248
  %v1250 = vand.u32 %v1249, 4294901760
  %1251 = vmatmul.mubr.f32.gmra.mrb[0].mxu0 %v1250
  %v1252 = vpop.f32.mrb[0].mxu0
  %v1253 = vadd.f32 %v952, %v1252
  %v1254 = vpop.f32.mrb[0].mxu0
  %1255 = vmatprep.mubr.f32.mxu0 0.0
  %v1256 = vand.u32 %v93, 4294901760
  %v1257 = vsub.f32 %v93, %v1256
  %v1258 = vand.u32 %v1257, 4294901760
  %1259 = vmatmul.mubr.f32.gmra.mrb[0].mxu0 %v1258
  %v1260 = vpop.f32.mrb[0].mxu0
  %v1261 = vadd.f32 %v959, %v1260
  %v1262 = vpop.f32.mrb[0].mxu0
  %1263 = vmatprep.mubr.f32.mxu0 0.0
  %v1264 = vand.u32 %v96, 4294901760
  %v1265 = vsub.f32 %v96, %v1264
  %v1266 = vand.u32 %v1265, 4294901760
  %1267 = vmatmul.mubr.f32.gmra.mrb[0].mxu0 %v1266
  %v1268 = vpop.f32.mrb[0].mxu0
  %v1269 = vadd.f32 %v966, %v1268
  %v1270 = vpop.f32.mrb[0].mxu0
  %1271 = vmatprep.mubr.f32.mxu0 0.0
  %v1272 = vand.u32 %v99, 4294901760
  %v1273 = vsub.f32 %v99, %v1272
  %v1274 = vand.u32 %v1273, 4294901760
  %1275 = vmatmul.mubr.f32.gmra.mrb[0].mxu0 %v1274
  %v1276 = vpop.f32.mrb[0].mxu0
  %v1277 = vadd.f32 %v973, %v1276
  %v1278 = vpop.f32.mrb[0].mxu0
  %1279 = vmatprep.mubr.f32.mxu0 0.0
  %v1280 = vand.u32 %v102, 4294901760
  %v1281 = vsub.f32 %v102, %v1280
  %v1282 = vand.u32 %v1281, 4294901760
  %1283 = vmatmul.mubr.f32.gmra.mrb[0].mxu0 %v1282
  %v1284 = vpop.f32.mrb[0].mxu0
  %v1285 = vadd.f32 %v980, %v1284
  %v1286 = vpop.f32.mrb[0].mxu0
  %1287 = vmatprep.mubr.f32.mxu0 0.0
  %v1288 = vand.u32 %v105, 4294901760
  %v1289 = vsub.f32 %v105, %v1288
  %v1290 = vand.u32 %v1289, 4294901760
  %1291 = vmatmul.mubr.f32.gmra.mrb[0].mxu0 %v1290
  %v1292 = vpop.f32.mrb[0].mxu0
  %v1293 = vadd.f32 %v987, %v1292
  %v1294 = vpop.f32.mrb[0].mxu0
  %1295 = vmatprep.mubr.f32.mxu0 0.0
  %v1296 = vand.u32 %v108, 4294901760
  %v1297 = vsub.f32 %v108, %v1296
  %v1298 = vand.u32 %v1297, 4294901760
  %1299 = vmatmul.mubr.f32.gmra.mrb[0].mxu0 %v1298
  %v1300 = vpop.f32.mrb[0].mxu0
  %v1301 = vadd.f32 %v994, %v1300
  %v1302 = vpop.f32.mrb[0].mxu0
  %1303 = vmatprep.mubr.f32.mxu0 0.0
  %v1304 = vand.u32 %v111, 4294901760
  %v1305 = vsub.f32 %v111, %v1304
  %v1306 = vand.u32 %v1305, 4294901760
  %1307 = vmatmul.mubr.f32.gmra.mrb[0].mxu0 %v1306
  %v1308 = vpop.f32.mrb[0].mxu0
  %v1309 = vadd.f32 %v1001, %v1308
  %v1310 = vpop.f32.mrb[0].mxu0
  %1311 = vmatprep.mubr.f32.mxu0 0.0
  %v1312 = vand.u32 %v114, 4294901760
  %v1313 = vsub.f32 %v114, %v1312
  %v1314 = vand.u32 %v1313, 4294901760
  %1315 = vmatmul.mubr.f32.gmra.mrb[0].mxu0 %v1314
  %v1316 = vpop.f32.mrb[0].mxu0
  %v1317 = vadd.f32 %v1008, %v1316
  %v1318 = vpop.f32.mrb[0].mxu0
  %1319 = vmatprep.mubr.f32.mxu0 0.0
  %v1320 = vand.u32 %v117, 4294901760
  %v1321 = vsub.f32 %v117, %v1320
  %v1322 = vand.u32 %v1321, 4294901760
  %1323 = vmatmul.mubr.f32.gmra.mrb[0].mxu0 %v1322
  %v1324 = vpop.f32.mrb[0].mxu0
  %v1325 = vadd.f32 %v1015, %v1324
  %v1326 = vpop.f32.mrb[0].mxu0
  %1327 = vmatprep.mubr.f32.mxu0 0.0
  %v1328 = vand.u32 %v120, 4294901760
  %v1329 = vsub.f32 %v120, %v1328
  %v1330 = vand.u32 %v1329, 4294901760
  %1331 = vmatmul.mubr.f32.gmra.mrb[0].mxu0 %v1330
  %v1332 = vpop.f32.mrb[0].mxu0
  %v1333 = vadd.f32 %v1022, %v1332
  %v1334 = vpop.f32.mrb[0].mxu0
  %1335 = vmatprep.mubr.f32.mxu0 0.0
  %v1336 = vand.u32 %v123, 4294901760
  %v1337 = vsub.f32 %v123, %v1336
  %v1338 = vand.u32 %v1337, 4294901760
  %1339 = vmatmul.mubr.f32.gmra.mrb[0].mxu0 %v1338
  %v1340 = vpop.f32.mrb[0].mxu0
  %v1341 = vadd.f32 %v1029, %v1340
  %v1342 = vpop.f32.mrb[0].mxu0
  %1343 = vmatprep.mubr.f32.mxu0 0.0
  %v1344 = vand.u32 %v126, 4294901760
  %v1345 = vsub.f32 %v126, %v1344
  %v1346 = vand.u32 %v1345, 4294901760
  %1347 = vmatmul.mubr.f32.gmra.mrb[0].mxu0 %v1346
  %v1348 = vpop.f32.mrb[0].mxu0
  %v1349 = vadd.f32 %v1036, %v1348
  %v1350 = vpop.f32.mrb[0].mxu0
  %1351 = vmatprep.mubr.f32.mxu0 0.0
  %v1352 = vand.u32 %v129, 4294901760
  %v1353 = vsub.f32 %v129, %v1352
  %v1354 = vand.u32 %v1353, 4294901760
  %1355 = vmatmul.mubr.f32.gmra.mrb[0].mxu0 %v1354
  %v1356 = vpop.f32.mrb[0].mxu0
  %v1357 = vadd.f32 %v1043, %v1356
  %v1358 = vpop.f32.mrb[0].mxu0
  %1359 = vmatprep.mubr.f32.mxu0 0.0
  %v1360 = vand.u32 %v132, 4294901760
  %v1361 = vsub.f32 %v132, %v1360
  %v1362 = vand.u32 %v1361, 4294901760
  %1363 = vmatmul.mubr.f32.gmra.mrb[0].mxu0 %v1362
  %v1364 = vpop.f32.mrb[0].mxu0
  %v1365 = vadd.f32 %v1050, %v1364
  %v1366 = vpop.f32.mrb[0].mxu0
  %1367 = vmatprep.mubr.f32.mxu0 0.0
  %v1368 = vand.u32 %v135, 4294901760
  %v1369 = vsub.f32 %v135, %v1368
  %v1370 = vand.u32 %v1369, 4294901760
  %1371 = vmatmul.mubr.f32.gmra.mrb[0].mxu0 %v1370
  %v1372 = vpop.f32.mrb[0].mxu0
  %v1373 = vadd.f32 %v1057, %v1372
  %v1374 = vpop.f32.mrb[0].mxu0
  %1375 = vmatprep.mubr.f32.mxu0 0.0
  %v1376 = vand.u32 %v138, 4294901760
  %v1377 = vsub.f32 %v138, %v1376
  %v1378 = vand.u32 %v1377, 4294901760
  %1379 = vmatmul.mubr.f32.gmra.mrb[0].mxu0 %v1378
  %v1380 = vpop.f32.mrb[0].mxu0
  %v1381 = vadd.f32 %v1064, %v1380
  %v1382 = vpop.f32.mrb[0].mxu0
  %1383 = vmatprep.mubr.f32.mxu0 0.0
  %v1384 = vand.u32 %v141, 4294901760
  %v1385 = vsub.f32 %v141, %v1384
  %v1386 = vand.u32 %v1385, 4294901760
  %1387 = vmatmul.mubr.f32.gmra.mrb[0].mxu0 %v1386
  %v1388 = vpop.f32.mrb[0].mxu0
  %v1389 = vadd.f32 %v1071, %v1388
  %v1390 = vpop.f32.mrb[0].mxu0
  %1391 = vmatprep.mubr.f32.mxu0 0.0
  %v1392 = vand.u32 %v144, 4294901760
  %v1393 = vsub.f32 %v144, %v1392
  %v1394 = vand.u32 %v1393, 4294901760
  %1395 = vmatmul.mubr.f32.gmra.mrb[0].mxu0 %v1394
  %v1396 = vpop.f32.mrb[0].mxu0
  %v1397 = vadd.f32 %v1078, %v1396
  %v1398 = vpop.f32.mrb[0].mxu0
  %1399 = vmatprep.mubr.f32.mxu0 0.0
  %v1400 = vand.u32 %v147, 4294901760
  %v1401 = vsub.f32 %v147, %v1400
  %v1402 = vand.u32 %v1401, 4294901760
  %1403 = vmatmul.mubr.f32.gmra.mrb[0].mxu0 %v1402
  %v1404 = vpop.f32.mrb[0].mxu0
  %v1405 = vadd.f32 %v1085, %v1404
  %v1406 = vpop.f32.mrb[0].mxu0
  %1407 = vmatprep.mubr.f32.mxu0 0.0
  %v1408 = vand.u32 %v150, 4294901760
  %v1409 = vsub.f32 %v150, %v1408
  %v1410 = vand.u32 %v1409, 4294901760
  %1411 = vmatmul.mubr.f32.gmra.mrb[0].mxu0 %v1410
  %v1412 = vpop.f32.mrb[0].mxu0
  %v1413 = vadd.f32 %v1092, %v1412
  %v1414 = vpop.f32.mrb[0].mxu0
  %1415 = vmatprep.mubr.f32.mxu0 0.0
  %v1416 = vand.u32 %v153, 4294901760
  %v1417 = vsub.f32 %v153, %v1416
  %v1418 = vand.u32 %v1417, 4294901760
  %1419 = vmatmul.mubr.f32.gmra.mrb[0].mxu0 %v1418
  %v1420 = vpop.f32.mrb[0].mxu0
  %v1421 = vadd.f32 %v1099, %v1420
  %v1422 = vpop.f32.mrb[0].mxu0
  %1423 = vmatprep.mubr.f32.mxu0 0.0
  %v1424 = vand.u32 %v156, 4294901760
  %v1425 = vsub.f32 %v156, %v1424
  %v1426 = vand.u32 %v1425, 4294901760
  %1427 = vmatmul.mubr.f32.gmra.mrb[0].mxu0 %v1426
  %v1428 = vpop.f32.mrb[0].mxu0
  %v1429 = vadd.f32 %v1106, %v1428
  %v1430 = vpop.f32.mrb[0].mxu0
  %1431 = vdwg.mxu0
  %1432 = vmatprep.subr.mxu0 0.0
  %v1433 = vand.u32 %v53, 4294901760
  %v1434 = vsub.f32 %v53, %v1433
  %v1435 = vand.u32 %v1434, 4294901760
  %1436 = vmatpush1.msra.mxu0 %v1435
  %1437 = vmatprep.subr.mxu0 0.0
  %v1438 = vand.u32 %v160, 4294901760
  %v1439 = vsub.f32 %v160, %v1438
  %v1440 = vand.u32 %v1439, 4294901760
  %1441 = vmatpush1.msra.mxu0 %v1440
  %1442 = vmatprep.subr.mxu0 0.0
  %1443 = vmatpush1.msra.mxu0 0.0
  %1444 = vmatprep.subr.mxu0 0.0
  %1445 = vmatpush1.msra.mxu0 0.0
  %1446 = vmatprep.subr.mxu0 0.0
  %1447 = vmatpush1.msra.mxu0 0.0
  %1448 = vmatprep.subr.mxu0 0.0
  %1449 = vmatpush1.msra.mxu0 0.0
  %1450 = vmatprep.subr.mxu0 0.0
  %1451 = vmatpush1.msra.mxu0 0.0
  %1452 = vmatprep.subr.mxu0 0.0
  %1453 = vmatpush1.msra.mxu0 0.0
  %1454 = vmatprep.subr.mxu0 0.0
  %1455 = vmatpush1.msra.mxu0 0.0
  %1456 = vmatprep.subr.mxu0 0.0
  %1457 = vmatpush1.msra.mxu0 0.0
  %1458 = vmatprep.subr.mxu0 0.0
  %1459 = vmatpush1.msra.mxu0 0.0
  %1460 = vmatprep.subr.mxu0 0.0
  %1461 = vmatpush1.msra.mxu0 0.0
  %1462 = vmatprep.subr.mxu0 0.0
  %1463 = vmatpush1.msra.mxu0 0.0
  %1464 = vmatprep.subr.mxu0 0.0
  %1465 = vmatpush1.msra.mxu0 0.0
  %1466 = vmatprep.subr.mxu0 0.0
  %1467 = vmatpush1.msra.mxu0 0.0
  %1468 = vmatprep.subr.mxu0 0.0
  %1469 = vmatpush1.msra.mxu0 0.0
  %1470 = vmatprep.subr.mxu0 0.0
  %1471 = vmatpush1.msra.mxu0 0.0
  %1472 = vmatprep.subr.mxu0 0.0
  %1473 = vmatpush1.msra.mxu0 0.0
  %1474 = vmatprep.subr.mxu0 0.0
  %1475 = vmatpush1.msra.mxu0 0.0
  %1476 = vmatprep.subr.mxu0 0.0
  %1477 = vmatpush1.msra.mxu0 0.0
  %1478 = vmatprep.subr.mxu0 0.0
  %1479 = vmatpush1.msra.mxu0 0.0
  %1480 = vmatprep.subr.mxu0 0.0
  %1481 = vmatpush1.msra.mxu0 0.0
  %1482 = vmatprep.subr.mxu0 0.0
  %1483 = vmatpush1.msra.mxu0 0.0
  %1484 = vmatprep.subr.mxu0 0.0
  %1485 = vmatpush1.msra.mxu0 0.0
  %1486 = vmatprep.subr.mxu0 0.0
  %1487 = vmatpush1.msra.mxu0 0.0
  %1488 = vmatprep.subr.mxu0 0.0
  %1489 = vmatpush1.msra.mxu0 0.0
  %1490 = vmatprep.subr.mxu0 0.0
  %1491 = vmatpush1.msra.mxu0 0.0
  %1492 = vmatprep.subr.mxu0 0.0
  %1493 = vmatpush1.msra.mxu0 0.0
  %1494 = vmatprep.subr.mxu0 0.0
  %1495 = vmatpush1.msra.mxu0 0.0
  %1496 = vmatprep.subr.mxu0 0.0
  %1497 = vmatpush1.msra.mxu0 0.0
  %1498 = vmatprep.subr.mxu0 0.0
  %1499 = vmatpush1.msra.mxu0 0.0
  %1500 = vmatprep.subr.mxu0 0.0
  %1501 = vmatpush1.msra.mxu0 0.0
  %1502 = vmatprep.mubr.f32.mxu0 0.0
  %v1503 = vand.u32 %v63, 4294901760
  %1504 = vmatmul.mubr.f32.gmra.mrb[0].mxu0 %v1503
  %v1505 = vpop.f32.mrb[0].mxu0
  %v1506 = vadd.f32 %v1181, %v1505
  %v1507 = vpop.f32.mrb[0].mxu0
  %1508 = vmatprep.mubr.f32.mxu0 0.0
  %v1509 = vand.u32 %v66, 4294901760
  %1510 = vmatmul.mubr.f32.gmra.mrb[0].mxu0 %v1509
  %v1511 = vpop.f32.mrb[0].mxu0
  %v1512 = vadd.f32 %v1189, %v1511
  %v1513 = vpop.f32.mrb[0].mxu0
  %1514 = vmatprep.mubr.f32.mxu0 0.0
  %v1515 = vand.u32 %v69, 4294901760
  %1516 = vmatmul.mubr.f32.gmra.mrb[0].mxu0 %v1515
  %v1517 = vpop.f32.mrb[0].mxu0
  %v1518 = vadd.f32 %v1197, %v1517
  %v1519 = vpop.f32.mrb[0].mxu0
  %1520 = vmatprep.mubr.f32.mxu0 0.0
  %v1521 = vand.u32 %v72, 4294901760
  %1522 = vmatmul.mubr.f32.gmra.mrb[0].mxu0 %v1521
  %v1523 = vpop.f32.mrb[0].mxu0
  %v1524 = vadd.f32 %v1205, %v1523
  %v1525 = vpop.f32.mrb[0].mxu0
  %1526 = vmatprep.mubr.f32.mxu0 0.0
  %v1527 = vand.u32 %v75, 4294901760
  %1528 = vmatmul.mubr.f32.gmra.mrb[0].mxu0 %v1527
  %v1529 = vpop.f32.mrb[0].mxu0
  %v1530 = vadd.f32 %v1213, %v1529
  %v1531 = vpop.f32.mrb[0].mxu0
  %1532 = vmatprep.mubr.f32.mxu0 0.0
  %v1533 = vand.u32 %v78, 4294901760
  %1534 = vmatmul.mubr.f32.gmra.mrb[0].mxu0 %v1533
  %v1535 = vpop.f32.mrb[0].mxu0
  %v1536 = vadd.f32 %v1221, %v1535
  %v1537 = vpop.f32.mrb[0].mxu0
  %1538 = vmatprep.mubr.f32.mxu0 0.0
  %v1539 = vand.u32 %v81, 4294901760
  %1540 = vmatmul.mubr.f32.gmra.mrb[0].mxu0 %v1539
  %v1541 = vpop.f32.mrb[0].mxu0
  %v1542 = vadd.f32 %v1229, %v1541
  %v1543 = vpop.f32.mrb[0].mxu0
  %1544 = vmatprep.mubr.f32.mxu0 0.0
  %v1545 = vand.u32 %v84, 4294901760
  %1546 = vmatmul.mubr.f32.gmra.mrb[0].mxu0 %v1545
  %v1547 = vpop.f32.mrb[0].mxu0
  %v1548 = vadd.f32 %v1237, %v1547
  %v1549 = vpop.f32.mrb[0].mxu0
  %1550 = vmatprep.mubr.f32.mxu0 0.0
  %v1551 = vand.u32 %v87, 4294901760
  %1552 = vmatmul.mubr.f32.gmra.mrb[0].mxu0 %v1551
  %v1553 = vpop.f32.mrb[0].mxu0
  %v1554 = vadd.f32 %v1245, %v1553
  %v1555 = vpop.f32.mrb[0].mxu0
  %1556 = vmatprep.mubr.f32.mxu0 0.0
  %v1557 = vand.u32 %v90, 4294901760
  %1558 = vmatmul.mubr.f32.gmra.mrb[0].mxu0 %v1557
  %v1559 = vpop.f32.mrb[0].mxu0
  %v1560 = vadd.f32 %v1253, %v1559
  %v1561 = vpop.f32.mrb[0].mxu0
  %1562 = vmatprep.mubr.f32.mxu0 0.0
  %v1563 = vand.u32 %v93, 4294901760
  %1564 = vmatmul.mubr.f32.gmra.mrb[0].mxu0 %v1563
  %v1565 = vpop.f32.mrb[0].mxu0
  %v1566 = vadd.f32 %v1261, %v1565
  %v1567 = vpop.f32.mrb[0].mxu0
  %1568 = vmatprep.mubr.f32.mxu0 0.0
  %v1569 = vand.u32 %v96, 4294901760
  %1570 = vmatmul.mubr.f32.gmra.mrb[0].mxu0 %v1569
  %v1571 = vpop.f32.mrb[0].mxu0
  %v1572 = vadd.f32 %v1269, %v1571
  %v1573 = vpop.f32.mrb[0].mxu0
  %1574 = vmatprep.mubr.f32.mxu0 0.0
  %v1575 = vand.u32 %v99, 4294901760
  %1576 = vmatmul.mubr.f32.gmra.mrb[0].mxu0 %v1575
  %v1577 = vpop.f32.mrb[0].mxu0
  %v1578 = vadd.f32 %v1277, %v1577
  %v1579 = vpop.f32.mrb[0].mxu0
  %1580 = vmatprep.mubr.f32.mxu0 0.0
  %v1581 = vand.u32 %v102, 4294901760
  %1582 = vmatmul.mubr.f32.gmra.mrb[0].mxu0 %v1581
  %v1583 = vpop.f32.mrb[0].mxu0
  %v1584 = vadd.f32 %v1285, %v1583
  %v1585 = vpop.f32.mrb[0].mxu0
  %1586 = vmatprep.mubr.f32.mxu0 0.0
  %v1587 = vand.u32 %v105, 4294901760
  %1588 = vmatmul.mubr.f32.gmra.mrb[0].mxu0 %v1587
  %v1589 = vpop.f32.mrb[0].mxu0
  %v1590 = vadd.f32 %v1293, %v1589
  %v1591 = vpop.f32.mrb[0].mxu0
  %1592 = vmatprep.mubr.f32.mxu0 0.0
  %v1593 = vand.u32 %v108, 4294901760
  %1594 = vmatmul.mubr.f32.gmra.mrb[0].mxu0 %v1593
  %v1595 = vpop.f32.mrb[0].mxu0
  %v1596 = vadd.f32 %v1301, %v1595
  %v1597 = vpop.f32.mrb[0].mxu0
  %1598 = vmatprep.mubr.f32.mxu0 0.0
  %v1599 = vand.u32 %v111, 4294901760
  %1600 = vmatmul.mubr.f32.gmra.mrb[0].mxu0 %v1599
  %v1601 = vpop.f32.mrb[0].mxu0
  %v1602 = vadd.f32 %v1309, %v1601
  %v1603 = vpop.f32.mrb[0].mxu0
  %1604 = vmatprep.mubr.f32.mxu0 0.0
  %v1605 = vand.u32 %v114, 4294901760
  %1606 = vmatmul.mubr.f32.gmra.mrb[0].mxu0 %v1605
  %v1607 = vpop.f32.mrb[0].mxu0
  %v1608 = vadd.f32 %v1317, %v1607
  %v1609 = vpop.f32.mrb[0].mxu0
  %1610 = vmatprep.mubr.f32.mxu0 0.0
  %v1611 = vand.u32 %v117, 4294901760
  %1612 = vmatmul.mubr.f32.gmra.mrb[0].mxu0 %v1611
  %v1613 = vpop.f32.mrb[0].mxu0
  %v1614 = vadd.f32 %v1325, %v1613
  %v1615 = vpop.f32.mrb[0].mxu0
  %1616 = vmatprep.mubr.f32.mxu0 0.0
  %v1617 = vand.u32 %v120, 4294901760
  %1618 = vmatmul.mubr.f32.gmra.mrb[0].mxu0 %v1617
  %v1619 = vpop.f32.mrb[0].mxu0
  %v1620 = vadd.f32 %v1333, %v1619
  %v1621 = vpop.f32.mrb[0].mxu0
  %1622 = vmatprep.mubr.f32.mxu0 0.0
  %v1623 = vand.u32 %v123, 4294901760
  %1624 = vmatmul.mubr.f32.gmra.mrb[0].mxu0 %v1623
  %v1625 = vpop.f32.mrb[0].mxu0
  %v1626 = vadd.f32 %v1341, %v1625
  %v1627 = vpop.f32.mrb[0].mxu0
  %1628 = vmatprep.mubr.f32.mxu0 0.0
  %v1629 = vand.u32 %v126, 4294901760
  %1630 = vmatmul.mubr.f32.gmra.mrb[0].mxu0 %v1629
  %v1631 = vpop.f32.mrb[0].mxu0
  %v1632 = vadd.f32 %v1349, %v1631
  %v1633 = vpop.f32.mrb[0].mxu0
  %1634 = vmatprep.mubr.f32.mxu0 0.0
  %v1635 = vand.u32 %v129, 4294901760
  %1636 = vmatmul.mubr.f32.gmra.mrb[0].mxu0 %v1635
  %v1637 = vpop.f32.mrb[0].mxu0
  %v1638 = vadd.f32 %v1357, %v1637
  %v1639 = vpop.f32.mrb[0].mxu0
  %1640 = vmatprep.mubr.f32.mxu0 0.0
  %v1641 = vand.u32 %v132, 4294901760
  %1642 = vmatmul.mubr.f32.gmra.mrb[0].mxu0 %v1641
  %v1643 = vpop.f32.mrb[0].mxu0
  %v1644 = vadd.f32 %v1365, %v1643
  %v1645 = vpop.f32.mrb[0].mxu0
  %1646 = vmatprep.mubr.f32.mxu0 0.0
  %v1647 = vand.u32 %v135, 4294901760
  %1648 = vmatmul.mubr.f32.gmra.mrb[0].mxu0 %v1647
  %v1649 = vpop.f32.mrb[0].mxu0
  %v1650 = vadd.f32 %v1373, %v1649
  %v1651 = vpop.f32.mrb[0].mxu0
  %1652 = vmatprep.mubr.f32.mxu0 0.0
  %v1653 = vand.u32 %v138, 4294901760
  %1654 = vmatmul.mubr.f32.gmra.mrb[0].mxu0 %v1653
  %v1655 = vpop.f32.mrb[0].mxu0
  %v1656 = vadd.f32 %v1381, %v1655
  %v1657 = vpop.f32.mrb[0].mxu0
  %1658 = vmatprep.mubr.f32.mxu0 0.0
  %v1659 = vand.u32 %v141, 4294901760
  %1660 = vmatmul.mubr.f32.gmra.mrb[0].mxu0 %v1659
  %v1661 = vpop.f32.mrb[0].mxu0
  %v1662 = vadd.f32 %v1389, %v1661
  %v1663 = vpop.f32.mrb[0].mxu0
  %1664 = vmatprep.mubr.f32.mxu0 0.0
  %v1665 = vand.u32 %v144, 4294901760
  %1666 = vmatmul.mubr.f32.gmra.mrb[0].mxu0 %v1665
  %v1667 = vpop.f32.mrb[0].mxu0
  %v1668 = vadd.f32 %v1397, %v1667
  %v1669 = vpop.f32.mrb[0].mxu0
  %1670 = vmatprep.mubr.f32.mxu0 0.0
  %v1671 = vand.u32 %v147, 4294901760
  %1672 = vmatmul.mubr.f32.gmra.mrb[0].mxu0 %v1671
  %v1673 = vpop.f32.mrb[0].mxu0
  %v1674 = vadd.f32 %v1405, %v1673
  %v1675 = vpop.f32.mrb[0].mxu0
  %1676 = vmatprep.mubr.f32.mxu0 0.0
  %v1677 = vand.u32 %v150, 4294901760
  %1678 = vmatmul.mubr.f32.gmra.mrb[0].mxu0 %v1677
  %v1679 = vpop.f32.mrb[0].mxu0
  %v1680 = vadd.f32 %v1413, %v1679
  %v1681 = vpop.f32.mrb[0].mxu0
  %1682 = vmatprep.mubr.f32.mxu0 0.0
  %v1683 = vand.u32 %v153, 4294901760
  %1684 = vmatmul.mubr.f32.gmra.mrb[0].mxu0 %v1683
  %v1685 = vpop.f32.mrb[0].mxu0
  %v1686 = vadd.f32 %v1421, %v1685
  %v1687 = vpop.f32.mrb[0].mxu0
  %1688 = vmatprep.mubr.f32.mxu0 0.0
  %v1689 = vand.u32 %v156, 4294901760
  %1690 = vmatmul.mubr.f32.gmra.mrb[0].mxu0 %v1689
  %v1691 = vpop.f32.mrb[0].mxu0
  %v1692 = vadd.f32 %v1429, %v1691
  %v1693 = vpop.f32.mrb[0].mxu0
  %1694 = vdwg.mxu0
  %1695 = vmatprep.subr.mxu0 0.0
  %v1696 = vand.u32 %v53, 4294901760
  %1697 = vmatpush1.msra.mxu0 %v1696
  %1698 = vmatprep.subr.mxu0 0.0
  %v1699 = vand.u32 %v160, 4294901760
  %1700 = vmatpush1.msra.mxu0 %v1699
  %1701 = vmatprep.subr.mxu0 0.0
  %1702 = vmatpush1.msra.mxu0 0.0
  %1703 = vmatprep.subr.mxu0 0.0
  %1704 = vmatpush1.msra.mxu0 0.0
  %1705 = vmatprep.subr.mxu0 0.0
  %1706 = vmatpush1.msra.mxu0 0.0
  %1707 = vmatprep.subr.mxu0 0.0
  %1708 = vmatpush1.msra.mxu0 0.0
  %1709 = vmatprep.subr.mxu0 0.0
  %1710 = vmatpush1.msra.mxu0 0.0
  %1711 = vmatprep.subr.mxu0 0.0
  %1712 = vmatpush1.msra.mxu0 0.0
  %1713 = vmatprep.subr.mxu0 0.0
  %1714 = vmatpush1.msra.mxu0 0.0
  %1715 = vmatprep.subr.mxu0 0.0
  %1716 = vmatpush1.msra.mxu0 0.0
  %1717 = vmatprep.subr.mxu0 0.0
  %1718 = vmatpush1.msra.mxu0 0.0
  %1719 = vmatprep.subr.mxu0 0.0
  %1720 = vmatpush1.msra.mxu0 0.0
  %1721 = vmatprep.subr.mxu0 0.0
  %1722 = vmatpush1.msra.mxu0 0.0
  %1723 = vmatprep.subr.mxu0 0.0
  %1724 = vmatpush1.msra.mxu0 0.0
  %1725 = vmatprep.subr.mxu0 0.0
  %1726 = vmatpush1.msra.mxu0 0.0
  %1727 = vmatprep.subr.mxu0 0.0
  %1728 = vmatpush1.msra.mxu0 0.0
  %1729 = vmatprep.subr.mxu0 0.0
  %1730 = vmatpush1.msra.mxu0 0.0
  %1731 = vmatprep.subr.mxu0 0.0
  %1732 = vmatpush1.msra.mxu0 0.0
  %1733 = vmatprep.subr.mxu0 0.0
  %1734 = vmatpush1.msra.mxu0 0.0
  %1735 = vmatprep.subr.mxu0 0.0
  %1736 = vmatpush1.msra.mxu0 0.0
  %1737 = vmatprep.subr.mxu0 0.0
  %1738 = vmatpush1.msra.mxu0 0.0
  %1739 = vmatprep.subr.mxu0 0.0
  %1740 = vmatpush1.msra.mxu0 0.0
  %1741 = vmatprep.subr.mxu0 0.0
  %1742 = vmatpush1.msra.mxu0 0.0
  %1743 = vmatprep.subr.mxu0 0.0
  %1744 = vmatpush1.msra.mxu0 0.0
  %1745 = vmatprep.subr.mxu0 0.0
  %1746 = vmatpush1.msra.mxu0 0.0
  %1747 = vmatprep.subr.mxu0 0.0
  %1748 = vmatpush1.msra.mxu0 0.0
  %1749 = vmatprep.subr.mxu0 0.0
  %1750 = vmatpush1.msra.mxu0 0.0
  %1751 = vmatprep.subr.mxu0 0.0
  %1752 = vmatpush1.msra.mxu0 0.0
  %1753 = vmatprep.subr.mxu0 0.0
  %1754 = vmatpush1.msra.mxu0 0.0
  %1755 = vmatprep.subr.mxu0 0.0
  %1756 = vmatpush1.msra.mxu0 0.0
  %1757 = vmatprep.subr.mxu0 0.0
  %1758 = vmatpush1.msra.mxu0 0.0
  %1759 = vmatprep.subr.mxu0 0.0
  %1760 = vmatpush1.msra.mxu0 0.0
  %1761 = vmatprep.mubr.f32.mxu0 0.0
  %v1762 = vand.u32 %v63, 4294901760
  %1763 = vmatmul.mubr.f32.gmra.mrb[0].mxu0 %v1762
  %v1764 = vpop.f32.mrb[0].mxu0
  %v1765 = vadd.f32 %v1506, %v1764
  %v1766 = vpop.f32.mrb[0].mxu0
  %1767 = vmatprep.mubr.f32.mxu0 0.0
  %v1768 = vand.u32 %v66, 4294901760
  %1769 = vmatmul.mubr.f32.gmra.mrb[0].mxu0 %v1768
  %v1770 = vpop.f32.mrb[0].mxu0
  %v1771 = vadd.f32 %v1512, %v1770
  %v1772 = vpop.f32.mrb[0].mxu0
  %1773 = vmatprep.mubr.f32.mxu0 0.0
  %v1774 = vand.u32 %v69, 4294901760
  %1775 = vmatmul.mubr.f32.gmra.mrb[0].mxu0 %v1774
  %v1776 = vpop.f32.mrb[0].mxu0
  %v1777 = vadd.f32 %v1518, %v1776
  %v1778 = vpop.f32.mrb[0].mxu0
  %1779 = vmatprep.mubr.f32.mxu0 0.0
  %v1780 = vand.u32 %v72, 4294901760
  %1781 = vmatmul.mubr.f32.gmra.mrb[0].mxu0 %v1780
  %v1782 = vpop.f32.mrb[0].mxu0
  %v1783 = vadd.f32 %v1524, %v1782
  %v1784 = vpop.f32.mrb[0].mxu0
  %1785 = vmatprep.mubr.f32.mxu0 0.0
  %v1786 = vand.u32 %v75, 4294901760
  %1787 = vmatmul.mubr.f32.gmra.mrb[0].mxu0 %v1786
  %v1788 = vpop.f32.mrb[0].mxu0
  %v1789 = vadd.f32 %v1530, %v1788
  %v1790 = vpop.f32.mrb[0].mxu0
  %1791 = vmatprep.mubr.f32.mxu0 0.0
  %v1792 = vand.u32 %v78, 4294901760
  %1793 = vmatmul.mubr.f32.gmra.mrb[0].mxu0 %v1792
  %v1794 = vpop.f32.mrb[0].mxu0
  %v1795 = vadd.f32 %v1536, %v1794
  %v1796 = vpop.f32.mrb[0].mxu0
  %1797 = vmatprep.mubr.f32.mxu0 0.0
  %v1798 = vand.u32 %v81, 4294901760
  %1799 = vmatmul.mubr.f32.gmra.mrb[0].mxu0 %v1798
  %v1800 = vpop.f32.mrb[0].mxu0
  %v1801 = vadd.f32 %v1542, %v1800
  %v1802 = vpop.f32.mrb[0].mxu0
  %1803 = vmatprep.mubr.f32.mxu0 0.0
  %v1804 = vand.u32 %v84, 4294901760
  %1805 = vmatmul.mubr.f32.gmra.mrb[0].mxu0 %v1804
  %v1806 = vpop.f32.mrb[0].mxu0
  %v1807 = vadd.f32 %v1548, %v1806
  %v1808 = vpop.f32.mrb[0].mxu0
  %1809 = vmatprep.mubr.f32.mxu0 0.0
  %v1810 = vand.u32 %v87, 4294901760
  %1811 = vmatmul.mubr.f32.gmra.mrb[0].mxu0 %v1810
  %v1812 = vpop.f32.mrb[0].mxu0
  %v1813 = vadd.f32 %v1554, %v1812
  %v1814 = vpop.f32.mrb[0].mxu0
  %1815 = vmatprep.mubr.f32.mxu0 0.0
  %v1816 = vand.u32 %v90, 4294901760
  %1817 = vmatmul.mubr.f32.gmra.mrb[0].mxu0 %v1816
  %v1818 = vpop.f32.mrb[0].mxu0
  %v1819 = vadd.f32 %v1560, %v1818
  %v1820 = vpop.f32.mrb[0].mxu0
  %1821 = vmatprep.mubr.f32.mxu0 0.0
  %v1822 = vand.u32 %v93, 4294901760
  %1823 = vmatmul.mubr.f32.gmra.mrb[0].mxu0 %v1822
  %v1824 = vpop.f32.mrb[0].mxu0
  %v1825 = vadd.f32 %v1566, %v1824
  %v1826 = vpop.f32.mrb[0].mxu0
  %1827 = vmatprep.mubr.f32.mxu0 0.0
  %v1828 = vand.u32 %v96, 4294901760
  %1829 = vmatmul.mubr.f32.gmra.mrb[0].mxu0 %v1828
  %v1830 = vpop.f32.mrb[0].mxu0
  %v1831 = vadd.f32 %v1572, %v1830
  %v1832 = vpop.f32.mrb[0].mxu0
  %1833 = vmatprep.mubr.f32.mxu0 0.0
  %v1834 = vand.u32 %v99, 4294901760
  %1835 = vmatmul.mubr.f32.gmra.mrb[0].mxu0 %v1834
  %v1836 = vpop.f32.mrb[0].mxu0
  %v1837 = vadd.f32 %v1578, %v1836
  %v1838 = vpop.f32.mrb[0].mxu0
  %1839 = vmatprep.mubr.f32.mxu0 0.0
  %v1840 = vand.u32 %v102, 4294901760
  %1841 = vmatmul.mubr.f32.gmra.mrb[0].mxu0 %v1840
  %v1842 = vpop.f32.mrb[0].mxu0
  %v1843 = vadd.f32 %v1584, %v1842
  %v1844 = vpop.f32.mrb[0].mxu0
  %1845 = vmatprep.mubr.f32.mxu0 0.0
  %v1846 = vand.u32 %v105, 4294901760
  %1847 = vmatmul.mubr.f32.gmra.mrb[0].mxu0 %v1846
  %v1848 = vpop.f32.mrb[0].mxu0
  %v1849 = vadd.f32 %v1590, %v1848
  %v1850 = vpop.f32.mrb[0].mxu0
  %1851 = vmatprep.mubr.f32.mxu0 0.0
  %v1852 = vand.u32 %v108, 4294901760
  %1853 = vmatmul.mubr.f32.gmra.mrb[0].mxu0 %v1852
  %v1854 = vpop.f32.mrb[0].mxu0
  %v1855 = vadd.f32 %v1596, %v1854
  %v1856 = vpop.f32.mrb[0].mxu0
  %1857 = vmatprep.mubr.f32.mxu0 0.0
  %v1858 = vand.u32 %v111, 4294901760
  %1859 = vmatmul.mubr.f32.gmra.mrb[0].mxu0 %v1858
  %v1860 = vpop.f32.mrb[0].mxu0
  %v1861 = vadd.f32 %v1602, %v1860
  %v1862 = vpop.f32.mrb[0].mxu0
  %1863 = vmatprep.mubr.f32.mxu0 0.0
  %v1864 = vand.u32 %v114, 4294901760
  %1865 = vmatmul.mubr.f32.gmra.mrb[0].mxu0 %v1864
  %v1866 = vpop.f32.mrb[0].mxu0
  %v1867 = vadd.f32 %v1608, %v1866
  %v1868 = vpop.f32.mrb[0].mxu0
  %1869 = vmatprep.mubr.f32.mxu0 0.0
  %v1870 = vand.u32 %v117, 4294901760
  %1871 = vmatmul.mubr.f32.gmra.mrb[0].mxu0 %v1870
  %v1872 = vpop.f32.mrb[0].mxu0
  %v1873 = vadd.f32 %v1614, %v1872
  %v1874 = vpop.f32.mrb[0].mxu0
  %1875 = vmatprep.mubr.f32.mxu0 0.0
  %v1876 = vand.u32 %v120, 4294901760
  %1877 = vmatmul.mubr.f32.gmra.mrb[0].mxu0 %v1876
  %v1878 = vpop.f32.mrb[0].mxu0
  %v1879 = vadd.f32 %v1620, %v1878
  %v1880 = vpop.f32.mrb[0].mxu0
  %1881 = vmatprep.mubr.f32.mxu0 0.0
  %v1882 = vand.u32 %v123, 4294901760
  %1883 = vmatmul.mubr.f32.gmra.mrb[0].mxu0 %v1882
  %v1884 = vpop.f32.mrb[0].mxu0
  %v1885 = vadd.f32 %v1626, %v1884
  %v1886 = vpop.f32.mrb[0].mxu0
  %1887 = vmatprep.mubr.f32.mxu0 0.0
  %v1888 = vand.u32 %v126, 4294901760
  %1889 = vmatmul.mubr.f32.gmra.mrb[0].mxu0 %v1888
  %v1890 = vpop.f32.mrb[0].mxu0
  %v1891 = vadd.f32 %v1632, %v1890
  %v1892 = vpop.f32.mrb[0].mxu0
  %1893 = vmatprep.mubr.f32.mxu0 0.0
  %v1894 = vand.u32 %v129, 4294901760
  %1895 = vmatmul.mubr.f32.gmra.mrb[0].mxu0 %v1894
  %v1896 = vpop.f32.mrb[0].mxu0
  %v1897 = vadd.f32 %v1638, %v1896
  %v1898 = vpop.f32.mrb[0].mxu0
  %1899 = vmatprep.mubr.f32.mxu0 0.0
  %v1900 = vand.u32 %v132, 4294901760
  %1901 = vmatmul.mubr.f32.gmra.mrb[0].mxu0 %v1900
  %v1902 = vpop.f32.mrb[0].mxu0
  %v1903 = vadd.f32 %v1644, %v1902
  %v1904 = vpop.f32.mrb[0].mxu0
  %1905 = vmatprep.mubr.f32.mxu0 0.0
  %v1906 = vand.u32 %v135, 4294901760
  %1907 = vmatmul.mubr.f32.gmra.mrb[0].mxu0 %v1906
  %v1908 = vpop.f32.mrb[0].mxu0
  %v1909 = vadd.f32 %v1650, %v1908
  %v1910 = vpop.f32.mrb[0].mxu0
  %1911 = vmatprep.mubr.f32.mxu0 0.0
  %v1912 = vand.u32 %v138, 4294901760
  %1913 = vmatmul.mubr.f32.gmra.mrb[0].mxu0 %v1912
  %v1914 = vpop.f32.mrb[0].mxu0
  %v1915 = vadd.f32 %v1656, %v1914
  %v1916 = vpop.f32.mrb[0].mxu0
  %1917 = vmatprep.mubr.f32.mxu0 0.0
  %v1918 = vand.u32 %v141, 4294901760
  %1919 = vmatmul.mubr.f32.gmra.mrb[0].mxu0 %v1918
  %v1920 = vpop.f32.mrb[0].mxu0
  %v1921 = vadd.f32 %v1662, %v1920
  %v1922 = vpop.f32.mrb[0].mxu0
  %1923 = vmatprep.mubr.f32.mxu0 0.0
  %v1924 = vand.u32 %v144, 4294901760
  %1925 = vmatmul.mubr.f32.gmra.mrb[0].mxu0 %v1924
  %v1926 = vpop.f32.mrb[0].mxu0
  %v1927 = vadd.f32 %v1668, %v1926
  %v1928 = vpop.f32.mrb[0].mxu0
  %1929 = vmatprep.mubr.f32.mxu0 0.0
  %v1930 = vand.u32 %v147, 4294901760
  %1931 = vmatmul.mubr.f32.gmra.mrb[0].mxu0 %v1930
  %v1932 = vpop.f32.mrb[0].mxu0
  %v1933 = vadd.f32 %v1674, %v1932
  %v1934 = vpop.f32.mrb[0].mxu0
  %1935 = vmatprep.mubr.f32.mxu0 0.0
  %v1936 = vand.u32 %v150, 4294901760
  %1937 = vmatmul.mubr.f32.gmra.mrb[0].mxu0 %v1936
  %v1938 = vpop.f32.mrb[0].mxu0
  %v1939 = vadd.f32 %v1680, %v1938
  %v1940 = vpop.f32.mrb[0].mxu0
  %1941 = vmatprep.mubr.f32.mxu0 0.0
  %v1942 = vand.u32 %v153, 4294901760
  %1943 = vmatmul.mubr.f32.gmra.mrb[0].mxu0 %v1942
  %v1944 = vpop.f32.mrb[0].mxu0
  %v1945 = vadd.f32 %v1686, %v1944
  %v1946 = vpop.f32.mrb[0].mxu0
  %1947 = vmatprep.mubr.f32.mxu0 0.0
  %v1948 = vand.u32 %v156, 4294901760
  %1949 = vmatmul.mubr.f32.gmra.mrb[0].mxu0 %v1948
  %v1950 = vpop.f32.mrb[0].mxu0
  %v1951 = vadd.f32 %v1692, %v1950
  %v1952 = vpop.f32.mrb[0].mxu0
  %1953 = vdwg.mxu0
  %v1954 = vmax.f32 %v1765, 0.0
  %v1955 = vmax.f32 %v1771, 0.0
  %v1956 = vmax.f32 %v1777, 0.0
  %v1957 = vmax.f32 %v1783, 0.0
  %v1958 = vmax.f32 %v1789, 0.0
  %v1959 = vmax.f32 %v1795, 0.0
  %v1960 = vmax.f32 %v1801, 0.0
  %v1961 = vmax.f32 %v1807, 0.0
  %v1962 = vmax.f32 %v1813, 0.0
  %v1963 = vmax.f32 %v1819, 0.0
  %v1964 = vmax.f32 %v1825, 0.0
  %v1965 = vmax.f32 %v1831, 0.0
  %v1966 = vmax.f32 %v1837, 0.0
  %v1967 = vmax.f32 %v1843, 0.0
  %v1968 = vmax.f32 %v1849, 0.0
  %v1969 = vmax.f32 %v1855, 0.0
  %v1970 = vmax.f32 %v1861, 0.0
  %v1971 = vmax.f32 %v1867, 0.0
  %v1972 = vmax.f32 %v1873, 0.0
  %v1973 = vmax.f32 %v1879, 0.0
  %v1974 = vmax.f32 %v1885, 0.0
  %v1975 = vmax.f32 %v1891, 0.0
  %v1976 = vmax.f32 %v1897, 0.0
  %v1977 = vmax.f32 %v1903, 0.0
  %v1978 = vmax.f32 %v1909, 0.0
  %v1979 = vmax.f32 %v1915, 0.0
  %v1980 = vmax.f32 %v1921, 0.0
  %v1981 = vmax.f32 %v1927, 0.0
  %v1982 = vmax.f32 %v1933, 0.0
  %v1983 = vmax.f32 %v1939, 0.0
  %v1984 = vmax.f32 %v1945, 0.0
  %v1985 = vmax.f32 %v1951, 0.0
  %v1986 = vld [vmem:[%s3] sm:$0xff]
  %v1987 = vld [vmem:[%s3 + $0x8] sm:$0xff]
  %v1988 = vld [vmem:[%s3 + $0x10] sm:$0xff]
  %v1989 = vld [vmem:[%s3 + $0x18] sm:$0x3f]
  %1990 = vrot.lane.b32.xlu0 %v59, 98
  %v1991 = vpop.permute.xlu0 %1990
  %vm1993 = vcmask 244736
  %v1995 = vsel %vm1993, %v1954, 0
  %v1998 = vsel %vm1993, %v1955, 0
  %v2001 = vsel %vm1993, %v1956, 0
  %v2004 = vsel %vm1993, %v1957, 0
  %v2007 = vsel %vm1993, %v1958, 0
  %v2010 = vsel %vm1993, %v1959, 0
  %v2013 = vsel %vm1993, %v1960, 0
  %v2016 = vsel %vm1993, %v1961, 0
  %v2019 = vsel %vm1993, %v1962, 0
  %v2022 = vsel %vm1993, %v1963, 0
  %v2025 = vsel %vm1993, %v1964, 0
  %v2028 = vsel %vm1993, %v1965, 0
  %v2031 = vsel %vm1993, %v1966, 0
  %v2034 = vsel %vm1993, %v1967, 0
  %v2037 = vsel %vm1993, %v1968, 0
  %v2040 = vsel %vm1993, %v1969, 0
  %v2043 = vsel %vm1993, %v1970, 0
  %v2046 = vsel %vm1993, %v1971, 0
  %v2049 = vsel %vm1993, %v1972, 0
  %v2052 = vsel %vm1993, %v1973, 0
  %v2055 = vsel %vm1993, %v1974, 0
  %v2058 = vsel %vm1993, %v1975, 0
  %v2061 = vsel %vm1993, %v1976, 0
  %v2064 = vsel %vm1993, %v1977, 0
  %v2067 = vsel %vm1993, %v1978, 0
  %v2070 = vsel %vm1993, %v1979, 0
  %v2073 = vsel %vm1993, %v1980, 0
  %v2076 = vsel %vm1993, %v1981, 0
  %v2079 = vsel %vm1993, %v1982, 0
  %v2082 = vsel %vm1993, %v1983, 0
  %v2085 = vsel %vm1993, %v1984, 0
  %v2088 = vsel %vm1993, %v1985, 0
  %vm2090 = vcmask 1045504
  %v2092 = vsel %vm2090, %v1989, 0
  %2094 = vmatprep.subr.mxu0 0.0
  %v2095 = vand.u32 %v1986, 4294901760
  %2096 = vmatpush1.msra.mxu0 %v2095
  %2097 = vmatprep.subr.mxu0 0.0
  %v2098 = vand.u32 %v1987, 4294901760
  %2099 = vmatpush1.msra.mxu0 %v2098
  %2100 = vmatprep.subr.mxu0 0.0
  %v2101 = vand.u32 %v1988, 4294901760
  %2102 = vmatpush1.msra.mxu0 %v2101
  %2103 = vmatprep.subr.mxu0 0.0
  %v2104 = vand.u32 %v2092, 4294901760
  %2105 = vmatpush1.msra.mxu0 %v2104
  %2106 = vmatprep.subr.mxu0 0.0
  %2107 = vmatpush1.msra.mxu0 0.0
  %2108 = vmatprep.subr.mxu0 0.0
  %2109 = vmatpush1.msra.mxu0 0.0
  %2110 = vmatprep.subr.mxu0 0.0
  %2111 = vmatpush1.msra.mxu0 0.0
  %2112 = vmatprep.subr.mxu0 0.0
  %2113 = vmatpush1.msra.mxu0 0.0
  %2114 = vmatprep.subr.mxu0 0.0
  %2115 = vmatpush1.msra.mxu0 0.0
  %2116 = vmatprep.subr.mxu0 0.0
  %2117 = vmatpush1.msra.mxu0 0.0
  %2118 = vmatprep.subr.mxu0 0.0
  %2119 = vmatpush1.msra.mxu0 0.0
  %2120 = vmatprep.subr.mxu0 0.0
  %2121 = vmatpush1.msra.mxu0 0.0
  %2122 = vmatprep.subr.mxu0 0.0
  %2123 = vmatpush1.msra.mxu0 0.0
  %2124 = vmatprep.subr.mxu0 0.0
  %2125 = vmatpush1.msra.mxu0 0.0
  %2126 = vmatprep.subr.mxu0 0.0
  %2127 = vmatpush1.msra.mxu0 0.0
  %2128 = vmatprep.subr.mxu0 0.0
  %2129 = vmatpush1.msra.mxu0 0.0
  %2130 = vmatprep.subr.mxu0 0.0
  %2131 = vmatpush1.msra.mxu0 0.0
  %2132 = vmatprep.subr.mxu0 0.0
  %2133 = vmatpush1.msra.mxu0 0.0
  %2134 = vmatprep.subr.mxu0 0.0
  %2135 = vmatpush1.msra.mxu0 0.0
  %2136 = vmatprep.subr.mxu0 0.0
  %2137 = vmatpush1.msra.mxu0 0.0
  %2138 = vmatprep.subr.mxu0 0.0
  %2139 = vmatpush1.msra.mxu0 0.0
  %2140 = vmatprep.subr.mxu0 0.0
  %2141 = vmatpush1.msra.mxu0 0.0
  %2142 = vmatprep.subr.mxu0 0.0
  %2143 = vmatpush1.msra.mxu0 0.0
  %2144 = vmatprep.subr.mxu0 0.0
  %2145 = vmatpush1.msra.mxu0 0.0
  %2146 = vmatprep.subr.mxu0 0.0
  %2147 = vmatpush1.msra.mxu0 0.0
  %2148 = vmatprep.subr.mxu0 0.0
  %2149 = vmatpush1.msra.mxu0 0.0
  %2150 = vmatprep.subr.mxu0 0.0
  %2151 = vmatpush1.msra.mxu0 0.0
  %2152 = vmatprep.subr.mxu0 0.0
  %2153 = vmatpush1.msra.mxu0 0.0
  %2154 = vmatprep.subr.mxu0 0.0
  %2155 = vmatpush1.msra.mxu0 0.0
  %2156 = vmatprep.subr.mxu0 0.0
  %2157 = vmatpush1.msra.mxu0 0.0
  %2158 = vmatprep.subr.mxu0 0.0
  %2159 = vmatpush1.msra.mxu0 0.0
  %2160 = vmatprep.subr.mxu0 0.0
  %2161 = vmatpush1.msra.mxu0 0.0
  %2162 = vmatprep.mubr.f32.mxu0 0.0
  %v2163 = vand.u32 %v1995, 4294901760
  %v2164 = vsub.f32 %v1995, %v2163
  %v2165 = vand.u32 %v2164, 4294901760
  %v2166 = vsub.f32 %v2164, %v2165
  %v2167 = vand.u32 %v2166, 4294901760
  %2168 = vmatmul.mubr.f32.gmra.mrb[0].mxu0 %v2167
  %v2169 = vpop.f32.mrb[0].mxu0
  %v2170 = vadd.f32 %v1991, %v2169
  %v2171 = vpop.f32.mrb[0].mxu0
  %2172 = vmatprep.mubr.f32.mxu0 0.0
  %v2173 = vand.u32 %v1998, 4294901760
  %v2174 = vsub.f32 %v1998, %v2173
  %v2175 = vand.u32 %v2174, 4294901760
  %v2176 = vsub.f32 %v2174, %v2175
  %v2177 = vand.u32 %v2176, 4294901760
  %2178 = vmatmul.mubr.f32.gmra.mrb[0].mxu0 %v2177
  %v2179 = vpop.f32.mrb[0].mxu0
  %v2180 = vadd.f32 %v1991, %v2179
  %v2181 = vpop.f32.mrb[0].mxu0
  %2182 = vmatprep.mubr.f32.mxu0 0.0
  %v2183 = vand.u32 %v2001, 4294901760
  %v2184 = vsub.f32 %v2001, %v2183
  %v2185 = vand.u32 %v2184, 4294901760
  %v2186 = vsub.f32 %v2184, %v2185
  %v2187 = vand.u32 %v2186, 4294901760
  %2188 = vmatmul.mubr.f32.gmra.mrb[0].mxu0 %v2187
  %v2189 = vpop.f32.mrb[0].mxu0
  %v2190 = vadd.f32 %v1991, %v2189
  %v2191 = vpop.f32.mrb[0].mxu0
  %2192 = vmatprep.mubr.f32.mxu0 0.0
  %v2193 = vand.u32 %v2004, 4294901760
  %v2194 = vsub.f32 %v2004, %v2193
  %v2195 = vand.u32 %v2194, 4294901760
  %v2196 = vsub.f32 %v2194, %v2195
  %v2197 = vand.u32 %v2196, 4294901760
  %2198 = vmatmul.mubr.f32.gmra.mrb[0].mxu0 %v2197
  %v2199 = vpop.f32.mrb[0].mxu0
  %v2200 = vadd.f32 %v1991, %v2199
  %v2201 = vpop.f32.mrb[0].mxu0
  %2202 = vmatprep.mubr.f32.mxu0 0.0
  %v2203 = vand.u32 %v2007, 4294901760
  %v2204 = vsub.f32 %v2007, %v2203
  %v2205 = vand.u32 %v2204, 4294901760
  %v2206 = vsub.f32 %v2204, %v2205
  %v2207 = vand.u32 %v2206, 4294901760
  %2208 = vmatmul.mubr.f32.gmra.mrb[0].mxu0 %v2207
  %v2209 = vpop.f32.mrb[0].mxu0
  %v2210 = vadd.f32 %v1991, %v2209
  %v2211 = vpop.f32.mrb[0].mxu0
  %2212 = vmatprep.mubr.f32.mxu0 0.0
  %v2213 = vand.u32 %v2010, 4294901760
  %v2214 = vsub.f32 %v2010, %v2213
  %v2215 = vand.u32 %v2214, 4294901760
  %v2216 = vsub.f32 %v2214, %v2215
  %v2217 = vand.u32 %v2216, 4294901760
  %2218 = vmatmul.mubr.f32.gmra.mrb[0].mxu0 %v2217
  %v2219 = vpop.f32.mrb[0].mxu0
  %v2220 = vadd.f32 %v1991, %v2219
  %v2221 = vpop.f32.mrb[0].mxu0
  %2222 = vmatprep.mubr.f32.mxu0 0.0
  %v2223 = vand.u32 %v2013, 4294901760
  %v2224 = vsub.f32 %v2013, %v2223
  %v2225 = vand.u32 %v2224, 4294901760
  %v2226 = vsub.f32 %v2224, %v2225
  %v2227 = vand.u32 %v2226, 4294901760
  %2228 = vmatmul.mubr.f32.gmra.mrb[0].mxu0 %v2227
  %v2229 = vpop.f32.mrb[0].mxu0
  %v2230 = vadd.f32 %v1991, %v2229
  %v2231 = vpop.f32.mrb[0].mxu0
  %2232 = vmatprep.mubr.f32.mxu0 0.0
  %v2233 = vand.u32 %v2016, 4294901760
  %v2234 = vsub.f32 %v2016, %v2233
  %v2235 = vand.u32 %v2234, 4294901760
  %v2236 = vsub.f32 %v2234, %v2235
  %v2237 = vand.u32 %v2236, 4294901760
  %2238 = vmatmul.mubr.f32.gmra.mrb[0].mxu0 %v2237
  %v2239 = vpop.f32.mrb[0].mxu0
  %v2240 = vadd.f32 %v1991, %v2239
  %v2241 = vpop.f32.mrb[0].mxu0
  %2242 = vmatprep.mubr.f32.mxu0 0.0
  %v2243 = vand.u32 %v2019, 4294901760
  %v2244 = vsub.f32 %v2019, %v2243
  %v2245 = vand.u32 %v2244, 4294901760
  %v2246 = vsub.f32 %v2244, %v2245
  %v2247 = vand.u32 %v2246, 4294901760
  %2248 = vmatmul.mubr.f32.gmra.mrb[0].mxu0 %v2247
  %v2249 = vpop.f32.mrb[0].mxu0
  %v2250 = vadd.f32 %v1991, %v2249
  %v2251 = vpop.f32.mrb[0].mxu0
  %2252 = vmatprep.mubr.f32.mxu0 0.0
  %v2253 = vand.u32 %v2022, 4294901760
  %v2254 = vsub.f32 %v2022, %v2253
  %v2255 = vand.u32 %v2254, 4294901760
  %v2256 = vsub.f32 %v2254, %v2255
  %v2257 = vand.u32 %v2256, 4294901760
  %2258 = vmatmul.mubr.f32.gmra.mrb[0].mxu0 %v2257
  %v2259 = vpop.f32.mrb[0].mxu0
  %v2260 = vadd.f32 %v1991, %v2259
  %v2261 = vpop.f32.mrb[0].mxu0
  %2262 = vmatprep.mubr.f32.mxu0 0.0
  %v2263 = vand.u32 %v2025, 4294901760
  %v2264 = vsub.f32 %v2025, %v2263
  %v2265 = vand.u32 %v2264, 4294901760
  %v2266 = vsub.f32 %v2264, %v2265
  %v2267 = vand.u32 %v2266, 4294901760
  %2268 = vmatmul.mubr.f32.gmra.mrb[0].mxu0 %v2267
  %v2269 = vpop.f32.mrb[0].mxu0
  %v2270 = vadd.f32 %v1991, %v2269
  %v2271 = vpop.f32.mrb[0].mxu0
  %2272 = vmatprep.mubr.f32.mxu0 0.0
  %v2273 = vand.u32 %v2028, 4294901760
  %v2274 = vsub.f32 %v2028, %v2273
  %v2275 = vand.u32 %v2274, 4294901760
  %v2276 = vsub.f32 %v2274, %v2275
  %v2277 = vand.u32 %v2276, 4294901760
  %2278 = vmatmul.mubr.f32.gmra.mrb[0].mxu0 %v2277
  %v2279 = vpop.f32.mrb[0].mxu0
  %v2280 = vadd.f32 %v1991, %v2279
  %v2281 = vpop.f32.mrb[0].mxu0
  %2282 = vmatprep.mubr.f32.mxu0 0.0
  %v2283 = vand.u32 %v2031, 4294901760
  %v2284 = vsub.f32 %v2031, %v2283
  %v2285 = vand.u32 %v2284, 4294901760
  %v2286 = vsub.f32 %v2284, %v2285
  %v2287 = vand.u32 %v2286, 4294901760
  %2288 = vmatmul.mubr.f32.gmra.mrb[0].mxu0 %v2287
  %v2289 = vpop.f32.mrb[0].mxu0
  %v2290 = vadd.f32 %v1991, %v2289
  %v2291 = vpop.f32.mrb[0].mxu0
  %2292 = vmatprep.mubr.f32.mxu0 0.0
  %v2293 = vand.u32 %v2034, 4294901760
  %v2294 = vsub.f32 %v2034, %v2293
  %v2295 = vand.u32 %v2294, 4294901760
  %v2296 = vsub.f32 %v2294, %v2295
  %v2297 = vand.u32 %v2296, 4294901760
  %2298 = vmatmul.mubr.f32.gmra.mrb[0].mxu0 %v2297
  %v2299 = vpop.f32.mrb[0].mxu0
  %v2300 = vadd.f32 %v1991, %v2299
  %v2301 = vpop.f32.mrb[0].mxu0
  %2302 = vmatprep.mubr.f32.mxu0 0.0
  %v2303 = vand.u32 %v2037, 4294901760
  %v2304 = vsub.f32 %v2037, %v2303
  %v2305 = vand.u32 %v2304, 4294901760
  %v2306 = vsub.f32 %v2304, %v2305
  %v2307 = vand.u32 %v2306, 4294901760
  %2308 = vmatmul.mubr.f32.gmra.mrb[0].mxu0 %v2307
  %v2309 = vpop.f32.mrb[0].mxu0
  %v2310 = vadd.f32 %v1991, %v2309
  %v2311 = vpop.f32.mrb[0].mxu0
  %2312 = vmatprep.mubr.f32.mxu0 0.0
  %v2313 = vand.u32 %v2040, 4294901760
  %v2314 = vsub.f32 %v2040, %v2313
  %v2315 = vand.u32 %v2314, 4294901760
  %v2316 = vsub.f32 %v2314, %v2315
  %v2317 = vand.u32 %v2316, 4294901760
  %2318 = vmatmul.mubr.f32.gmra.mrb[0].mxu0 %v2317
  %v2319 = vpop.f32.mrb[0].mxu0
  %v2320 = vadd.f32 %v1991, %v2319
  %v2321 = vpop.f32.mrb[0].mxu0
  %2322 = vmatprep.mubr.f32.mxu0 0.0
  %v2323 = vand.u32 %v2043, 4294901760
  %v2324 = vsub.f32 %v2043, %v2323
  %v2325 = vand.u32 %v2324, 4294901760
  %v2326 = vsub.f32 %v2324, %v2325
  %v2327 = vand.u32 %v2326, 4294901760
  %2328 = vmatmul.mubr.f32.gmra.mrb[0].mxu0 %v2327
  %v2329 = vpop.f32.mrb[0].mxu0
  %v2330 = vadd.f32 %v1991, %v2329
  %v2331 = vpop.f32.mrb[0].mxu0
  %2332 = vmatprep.mubr.f32.mxu0 0.0
  %v2333 = vand.u32 %v2046, 4294901760
  %v2334 = vsub.f32 %v2046, %v2333
  %v2335 = vand.u32 %v2334, 4294901760
  %v2336 = vsub.f32 %v2334, %v2335
  %v2337 = vand.u32 %v2336, 4294901760
  %2338 = vmatmul.mubr.f32.gmra.mrb[0].mxu0 %v2337
  %v2339 = vpop.f32.mrb[0].mxu0
  %v2340 = vadd.f32 %v1991, %v2339
  %v2341 = vpop.f32.mrb[0].mxu0
  %2342 = vmatprep.mubr.f32.mxu0 0.0
  %v2343 = vand.u32 %v2049, 4294901760
  %v2344 = vsub.f32 %v2049, %v2343
  %v2345 = vand.u32 %v2344, 4294901760
  %v2346 = vsub.f32 %v2344, %v2345
  %v2347 = vand.u32 %v2346, 4294901760
  %2348 = vmatmul.mubr.f32.gmra.mrb[0].mxu0 %v2347
  %v2349 = vpop.f32.mrb[0].mxu0
  %v2350 = vadd.f32 %v1991, %v2349
  %v2351 = vpop.f32.mrb[0].mxu0
  %2352 = vmatprep.mubr.f32.mxu0 0.0
  %v2353 = vand.u32 %v2052, 4294901760
  %v2354 = vsub.f32 %v2052, %v2353
  %v2355 = vand.u32 %v2354, 4294901760
  %v2356 = vsub.f32 %v2354, %v2355
  %v2357 = vand.u32 %v2356, 4294901760
  %2358 = vmatmul.mubr.f32.gmra.mrb[0].mxu0 %v2357
  %v2359 = vpop.f32.mrb[0].mxu0
  %v2360 = vadd.f32 %v1991, %v2359
  %v2361 = vpop.f32.mrb[0].mxu0
  %2362 = vmatprep.mubr.f32.mxu0 0.0
  %v2363 = vand.u32 %v2055, 4294901760
  %v2364 = vsub.f32 %v2055, %v2363
  %v2365 = vand.u32 %v2364, 4294901760
  %v2366 = vsub.f32 %v2364, %v2365
  %v2367 = vand.u32 %v2366, 4294901760
  %2368 = vmatmul.mubr.f32.gmra.mrb[0].mxu0 %v2367
  %v2369 = vpop.f32.mrb[0].mxu0
  %v2370 = vadd.f32 %v1991, %v2369
  %v2371 = vpop.f32.mrb[0].mxu0
  %2372 = vmatprep.mubr.f32.mxu0 0.0
  %v2373 = vand.u32 %v2058, 4294901760
  %v2374 = vsub.f32 %v2058, %v2373
  %v2375 = vand.u32 %v2374, 4294901760
  %v2376 = vsub.f32 %v2374, %v2375
  %v2377 = vand.u32 %v2376, 4294901760
  %2378 = vmatmul.mubr.f32.gmra.mrb[0].mxu0 %v2377
  %v2379 = vpop.f32.mrb[0].mxu0
  %v2380 = vadd.f32 %v1991, %v2379
  %v2381 = vpop.f32.mrb[0].mxu0
  %2382 = vmatprep.mubr.f32.mxu0 0.0
  %v2383 = vand.u32 %v2061, 4294901760
  %v2384 = vsub.f32 %v2061, %v2383
  %v2385 = vand.u32 %v2384, 4294901760
  %v2386 = vsub.f32 %v2384, %v2385
  %v2387 = vand.u32 %v2386, 4294901760
  %2388 = vmatmul.mubr.f32.gmra.mrb[0].mxu0 %v2387
  %v2389 = vpop.f32.mrb[0].mxu0
  %v2390 = vadd.f32 %v1991, %v2389
  %v2391 = vpop.f32.mrb[0].mxu0
  %2392 = vmatprep.mubr.f32.mxu0 0.0
  %v2393 = vand.u32 %v2064, 4294901760
  %v2394 = vsub.f32 %v2064, %v2393
  %v2395 = vand.u32 %v2394, 4294901760
  %v2396 = vsub.f32 %v2394, %v2395
  %v2397 = vand.u32 %v2396, 4294901760
  %2398 = vmatmul.mubr.f32.gmra.mrb[0].mxu0 %v2397
  %v2399 = vpop.f32.mrb[0].mxu0
  %v2400 = vadd.f32 %v1991, %v2399
  %v2401 = vpop.f32.mrb[0].mxu0
  %2402 = vmatprep.mubr.f32.mxu0 0.0
  %v2403 = vand.u32 %v2067, 4294901760
  %v2404 = vsub.f32 %v2067, %v2403
  %v2405 = vand.u32 %v2404, 4294901760
  %v2406 = vsub.f32 %v2404, %v2405
  %v2407 = vand.u32 %v2406, 4294901760
  %2408 = vmatmul.mubr.f32.gmra.mrb[0].mxu0 %v2407
  %v2409 = vpop.f32.mrb[0].mxu0
  %v2410 = vadd.f32 %v1991, %v2409
  %v2411 = vpop.f32.mrb[0].mxu0
  %2412 = vmatprep.mubr.f32.mxu0 0.0
  %v2413 = vand.u32 %v2070, 4294901760
  %v2414 = vsub.f32 %v2070, %v2413
  %v2415 = vand.u32 %v2414, 4294901760
  %v2416 = vsub.f32 %v2414, %v2415
  %v2417 = vand.u32 %v2416, 4294901760
  %2418 = vmatmul.mubr.f32.gmra.mrb[0].mxu0 %v2417
  %v2419 = vpop.f32.mrb[0].mxu0
  %v2420 = vadd.f32 %v1991, %v2419
  %v2421 = vpop.f32.mrb[0].mxu0
  %2422 = vmatprep.mubr.f32.mxu0 0.0
  %v2423 = vand.u32 %v2073, 4294901760
  %v2424 = vsub.f32 %v2073, %v2423
  %v2425 = vand.u32 %v2424, 4294901760
  %v2426 = vsub.f32 %v2424, %v2425
  %v2427 = vand.u32 %v2426, 4294901760
  %2428 = vmatmul.mubr.f32.gmra.mrb[0].mxu0 %v2427
  %v2429 = vpop.f32.mrb[0].mxu0
  %v2430 = vadd.f32 %v1991, %v2429
  %v2431 = vpop.f32.mrb[0].mxu0
  %2432 = vmatprep.mubr.f32.mxu0 0.0
  %v2433 = vand.u32 %v2076, 4294901760
  %v2434 = vsub.f32 %v2076, %v2433
  %v2435 = vand.u32 %v2434, 4294901760
  %v2436 = vsub.f32 %v2434, %v2435
  %v2437 = vand.u32 %v2436, 4294901760
  %2438 = vmatmul.mubr.f32.gmra.mrb[0].mxu0 %v2437
  %v2439 = vpop.f32.mrb[0].mxu0
  %v2440 = vadd.f32 %v1991, %v2439
  %v2441 = vpop.f32.mrb[0].mxu0
  %2442 = vmatprep.mubr.f32.mxu0 0.0
  %v2443 = vand.u32 %v2079, 4294901760
  %v2444 = vsub.f32 %v2079, %v2443
  %v2445 = vand.u32 %v2444, 4294901760
  %v2446 = vsub.f32 %v2444, %v2445
  %v2447 = vand.u32 %v2446, 4294901760
  %2448 = vmatmul.mubr.f32.gmra.mrb[0].mxu0 %v2447
  %v2449 = vpop.f32.mrb[0].mxu0
  %v2450 = vadd.f32 %v1991, %v2449
  %v2451 = vpop.f32.mrb[0].mxu0
  %2452 = vmatprep.mubr.f32.mxu0 0.0
  %v2453 = vand.u32 %v2082, 4294901760
  %v2454 = vsub.f32 %v2082, %v2453
  %v2455 = vand.u32 %v2454, 4294901760
  %v2456 = vsub.f32 %v2454, %v2455
  %v2457 = vand.u32 %v2456, 4294901760
  %2458 = vmatmul.mubr.f32.gmra.mrb[0].mxu0 %v2457
  %v2459 = vpop.f32.mrb[0].mxu0
  %v2460 = vadd.f32 %v1991, %v2459
  %v2461 = vpop.f32.mrb[0].mxu0
  %2462 = vmatprep.mubr.f32.mxu0 0.0
  %v2463 = vand.u32 %v2085, 4294901760
  %v2464 = vsub.f32 %v2085, %v2463
  %v2465 = vand.u32 %v2464, 4294901760
  %v2466 = vsub.f32 %v2464, %v2465
  %v2467 = vand.u32 %v2466, 4294901760
  %2468 = vmatmul.mubr.f32.gmra.mrb[0].mxu0 %v2467
  %v2469 = vpop.f32.mrb[0].mxu0
  %v2470 = vadd.f32 %v1991, %v2469
  %v2471 = vpop.f32.mrb[0].mxu0
  %2472 = vmatprep.mubr.f32.mxu0 0.0
  %v2473 = vand.u32 %v2088, 4294901760
  %v2474 = vsub.f32 %v2088, %v2473
  %v2475 = vand.u32 %v2474, 4294901760
  %v2476 = vsub.f32 %v2474, %v2475
  %v2477 = vand.u32 %v2476, 4294901760
  %2478 = vmatmul.mubr.f32.gmra.mrb[0].mxu0 %v2477
  %v2479 = vpop.f32.mrb[0].mxu0
  %v2480 = vadd.f32 %v1991, %v2479
  %v2481 = vpop.f32.mrb[0].mxu0
  %2482 = vdwg.mxu0
  %2483 = vmatprep.subr.mxu0 0.0
  %v2484 = vand.u32 %v1986, 4294901760
  %v2485 = vsub.f32 %v1986, %v2484
  %v2486 = vand.u32 %v2485, 4294901760
  %v2487 = vsub.f32 %v2485, %v2486
  %v2488 = vand.u32 %v2487, 4294901760
  %2489 = vmatpush1.msra.mxu0 %v2488
  %2490 = vmatprep.subr.mxu0 0.0
  %v2491 = vand.u32 %v1987, 4294901760
  %v2492 = vsub.f32 %v1987, %v2491
  %v2493 = vand.u32 %v2492, 4294901760
  %v2494 = vsub.f32 %v2492, %v2493
  %v2495 = vand.u32 %v2494, 4294901760
  %2496 = vmatpush1.msra.mxu0 %v2495
  %2497 = vmatprep.subr.mxu0 0.0
  %v2498 = vand.u32 %v1988, 4294901760
  %v2499 = vsub.f32 %v1988, %v2498
  %v2500 = vand.u32 %v2499, 4294901760
  %v2501 = vsub.f32 %v2499, %v2500
  %v2502 = vand.u32 %v2501, 4294901760
  %2503 = vmatpush1.msra.mxu0 %v2502
  %2504 = vmatprep.subr.mxu0 0.0
  %v2505 = vand.u32 %v2092, 4294901760
  %v2506 = vsub.f32 %v2092, %v2505
  %v2507 = vand.u32 %v2506, 4294901760
  %v2508 = vsub.f32 %v2506, %v2507
  %v2509 = vand.u32 %v2508, 4294901760
  %2510 = vmatpush1.msra.mxu0 %v2509
  %2511 = vmatprep.subr.mxu0 0.0
  %2512 = vmatpush1.msra.mxu0 0.0
  %2513 = vmatprep.subr.mxu0 0.0
  %2514 = vmatpush1.msra.mxu0 0.0
  %2515 = vmatprep.subr.mxu0 0.0
  %2516 = vmatpush1.msra.mxu0 0.0
  %2517 = vmatprep.subr.mxu0 0.0
  %2518 = vmatpush1.msra.mxu0 0.0
  %2519 = vmatprep.subr.mxu0 0.0
  %2520 = vmatpush1.msra.mxu0 0.0
  %2521 = vmatprep.subr.mxu0 0.0
  %2522 = vmatpush1.msra.mxu0 0.0
  %2523 = vmatprep.subr.mxu0 0.0
  %2524 = vmatpush1.msra.mxu0 0.0
  %2525 = vmatprep.subr.mxu0 0.0
  %2526 = vmatpush1.msra.mxu0 0.0
  %2527 = vmatprep.subr.mxu0 0.0
  %2528 = vmatpush1.msra.mxu0 0.0
  %2529 = vmatprep.subr.mxu0 0.0
  %2530 = vmatpush1.msra.mxu0 0.0
  %2531 = vmatprep.subr.mxu0 0.0
  %2532 = vmatpush1.msra.mxu0 0.0
  %2533 = vmatprep.subr.mxu0 0.0
  %2534 = vmatpush1.msra.mxu0 0.0
  %2535 = vmatprep.subr.mxu0 0.0
  %2536 = vmatpush1.msra.mxu0 0.0
  %2537 = vmatprep.subr.mxu0 0.0
  %2538 = vmatpush1.msra.mxu0 0.0
  %2539 = vmatprep.subr.mxu0 0.0
  %2540 = vmatpush1.msra.mxu0 0.0
  %2541 = vmatprep.subr.mxu0 0.0
  %2542 = vmatpush1.msra.mxu0 0.0
  %2543 = vmatprep.subr.mxu0 0.0
  %2544 = vmatpush1.msra.mxu0 0.0
  %2545 = vmatprep.subr.mxu0 0.0
  %2546 = vmatpush1.msra.mxu0 0.0
  %2547 = vmatprep.subr.mxu0 0.0
  %2548 = vmatpush1.msra.mxu0 0.0
  %2549 = vmatprep.subr.mxu0 0.0
  %2550 = vmatpush1.msra.mxu0 0.0
  %2551 = vmatprep.subr.mxu0 0.0
  %2552 = vmatpush1.msra.mxu0 0.0
  %2553 = vmatprep.subr.mxu0 0.0
  %2554 = vmatpush1.msra.mxu0 0.0
  %2555 = vmatprep.subr.mxu0 0.0
  %2556 = vmatpush1.msra.mxu0 0.0
  %2557 = vmatprep.subr.mxu0 0.0
  %2558 = vmatpush1.msra.mxu0 0.0
  %2559 = vmatprep.subr.mxu0 0.0
  %2560 = vmatpush1.msra.mxu0 0.0
  %2561 = vmatprep.subr.mxu0 0.0
  %2562 = vmatpush1.msra.mxu0 0.0
  %2563 = vmatprep.subr.mxu0 0.0
  %2564 = vmatpush1.msra.mxu0 0.0
  %2565 = vmatprep.subr.mxu0 0.0
  %2566 = vmatpush1.msra.mxu0 0.0
  %2567 = vmatprep.mubr.f32.mxu0 0.0
  %v2568 = vand.u32 %v1995, 4294901760
  %2569 = vmatmul.mubr.f32.gmra.mrb[0].mxu0 %v2568
  %v2570 = vpop.f32.mrb[0].mxu0
  %v2571 = vadd.f32 %v2170, %v2570
  %v2572 = vpop.f32.mrb[0].mxu0
  %2573 = vmatprep.mubr.f32.mxu0 0.0
  %v2574 = vand.u32 %v1998, 4294901760
  %2575 = vmatmul.mubr.f32.gmra.mrb[0].mxu0 %v2574
  %v2576 = vpop.f32.mrb[0].mxu0
  %v2577 = vadd.f32 %v2180, %v2576
  %v2578 = vpop.f32.mrb[0].mxu0
  %2579 = vmatprep.mubr.f32.mxu0 0.0
  %v2580 = vand.u32 %v2001, 4294901760
  %2581 = vmatmul.mubr.f32.gmra.mrb[0].mxu0 %v2580
  %v2582 = vpop.f32.mrb[0].mxu0
  %v2583 = vadd.f32 %v2190, %v2582
  %v2584 = vpop.f32.mrb[0].mxu0
  %2585 = vmatprep.mubr.f32.mxu0 0.0
  %v2586 = vand.u32 %v2004, 4294901760
  %2587 = vmatmul.mubr.f32.gmra.mrb[0].mxu0 %v2586
  %v2588 = vpop.f32.mrb[0].mxu0
  %v2589 = vadd.f32 %v2200, %v2588
  %v2590 = vpop.f32.mrb[0].mxu0
  %2591 = vmatprep.mubr.f32.mxu0 0.0
  %v2592 = vand.u32 %v2007, 4294901760
  %2593 = vmatmul.mubr.f32.gmra.mrb[0].mxu0 %v2592
  %v2594 = vpop.f32.mrb[0].mxu0
  %v2595 = vadd.f32 %v2210, %v2594
  %v2596 = vpop.f32.mrb[0].mxu0
  %2597 = vmatprep.mubr.f32.mxu0 0.0
  %v2598 = vand.u32 %v2010, 4294901760
  %2599 = vmatmul.mubr.f32.gmra.mrb[0].mxu0 %v2598
  %v2600 = vpop.f32.mrb[0].mxu0
  %v2601 = vadd.f32 %v2220, %v2600
  %v2602 = vpop.f32.mrb[0].mxu0
  %2603 = vmatprep.mubr.f32.mxu0 0.0
  %v2604 = vand.u32 %v2013, 4294901760
  %2605 = vmatmul.mubr.f32.gmra.mrb[0].mxu0 %v2604
  %v2606 = vpop.f32.mrb[0].mxu0
  %v2607 = vadd.f32 %v2230, %v2606
  %v2608 = vpop.f32.mrb[0].mxu0
  %2609 = vmatprep.mubr.f32.mxu0 0.0
  %v2610 = vand.u32 %v2016, 4294901760
  %2611 = vmatmul.mubr.f32.gmra.mrb[0].mxu0 %v2610
  %v2612 = vpop.f32.mrb[0].mxu0
  %v2613 = vadd.f32 %v2240, %v2612
  %v2614 = vpop.f32.mrb[0].mxu0
  %2615 = vmatprep.mubr.f32.mxu0 0.0
  %v2616 = vand.u32 %v2019, 4294901760
  %2617 = vmatmul.mubr.f32.gmra.mrb[0].mxu0 %v2616
  %v2618 = vpop.f32.mrb[0].mxu0
  %v2619 = vadd.f32 %v2250, %v2618
  %v2620 = vpop.f32.mrb[0].mxu0
  %2621 = vmatprep.mubr.f32.mxu0 0.0
  %v2622 = vand.u32 %v2022, 4294901760
  %2623 = vmatmul.mubr.f32.gmra.mrb[0].mxu0 %v2622
  %v2624 = vpop.f32.mrb[0].mxu0
  %v2625 = vadd.f32 %v2260, %v2624
  %v2626 = vpop.f32.mrb[0].mxu0
  %2627 = vmatprep.mubr.f32.mxu0 0.0
  %v2628 = vand.u32 %v2025, 4294901760
  %2629 = vmatmul.mubr.f32.gmra.mrb[0].mxu0 %v2628
  %v2630 = vpop.f32.mrb[0].mxu0
  %v2631 = vadd.f32 %v2270, %v2630
  %v2632 = vpop.f32.mrb[0].mxu0
  %2633 = vmatprep.mubr.f32.mxu0 0.0
  %v2634 = vand.u32 %v2028, 4294901760
  %2635 = vmatmul.mubr.f32.gmra.mrb[0].mxu0 %v2634
  %v2636 = vpop.f32.mrb[0].mxu0
  %v2637 = vadd.f32 %v2280, %v2636
  %v2638 = vpop.f32.mrb[0].mxu0
  %2639 = vmatprep.mubr.f32.mxu0 0.0
  %v2640 = vand.u32 %v2031, 4294901760
  %2641 = vmatmul.mubr.f32.gmra.mrb[0].mxu0 %v2640
  %v2642 = vpop.f32.mrb[0].mxu0
  %v2643 = vadd.f32 %v2290, %v2642
  %v2644 = vpop.f32.mrb[0].mxu0
  %2645 = vmatprep.mubr.f32.mxu0 0.0
  %v2646 = vand.u32 %v2034, 4294901760
  %2647 = vmatmul.mubr.f32.gmra.mrb[0].mxu0 %v2646
  %v2648 = vpop.f32.mrb[0].mxu0
  %v2649 = vadd.f32 %v2300, %v2648
  %v2650 = vpop.f32.mrb[0].mxu0
  %2651 = vmatprep.mubr.f32.mxu0 0.0
  %v2652 = vand.u32 %v2037, 4294901760
  %2653 = vmatmul.mubr.f32.gmra.mrb[0].mxu0 %v2652
  %v2654 = vpop.f32.mrb[0].mxu0
  %v2655 = vadd.f32 %v2310, %v2654
  %v2656 = vpop.f32.mrb[0].mxu0
  %2657 = vmatprep.mubr.f32.mxu0 0.0
  %v2658 = vand.u32 %v2040, 4294901760
  %2659 = vmatmul.mubr.f32.gmra.mrb[0].mxu0 %v2658
  %v2660 = vpop.f32.mrb[0].mxu0
  %v2661 = vadd.f32 %v2320, %v2660
  %v2662 = vpop.f32.mrb[0].mxu0
  %2663 = vmatprep.mubr.f32.mxu0 0.0
  %v2664 = vand.u32 %v2043, 4294901760
  %2665 = vmatmul.mubr.f32.gmra.mrb[0].mxu0 %v2664
  %v2666 = vpop.f32.mrb[0].mxu0
  %v2667 = vadd.f32 %v2330, %v2666
  %v2668 = vpop.f32.mrb[0].mxu0
  %2669 = vmatprep.mubr.f32.mxu0 0.0
  %v2670 = vand.u32 %v2046, 4294901760
  %2671 = vmatmul.mubr.f32.gmra.mrb[0].mxu0 %v2670
  %v2672 = vpop.f32.mrb[0].mxu0
  %v2673 = vadd.f32 %v2340, %v2672
  %v2674 = vpop.f32.mrb[0].mxu0
  %2675 = vmatprep.mubr.f32.mxu0 0.0
  %v2676 = vand.u32 %v2049, 4294901760
  %2677 = vmatmul.mubr.f32.gmra.mrb[0].mxu0 %v2676
  %v2678 = vpop.f32.mrb[0].mxu0
  %v2679 = vadd.f32 %v2350, %v2678
  %v2680 = vpop.f32.mrb[0].mxu0
  %2681 = vmatprep.mubr.f32.mxu0 0.0
  %v2682 = vand.u32 %v2052, 4294901760
  %2683 = vmatmul.mubr.f32.gmra.mrb[0].mxu0 %v2682
  %v2684 = vpop.f32.mrb[0].mxu0
  %v2685 = vadd.f32 %v2360, %v2684
  %v2686 = vpop.f32.mrb[0].mxu0
  %2687 = vmatprep.mubr.f32.mxu0 0.0
  %v2688 = vand.u32 %v2055, 4294901760
  %2689 = vmatmul.mubr.f32.gmra.mrb[0].mxu0 %v2688
  %v2690 = vpop.f32.mrb[0].mxu0
  %v2691 = vadd.f32 %v2370, %v2690
  %v2692 = vpop.f32.mrb[0].mxu0
  %2693 = vmatprep.mubr.f32.mxu0 0.0
  %v2694 = vand.u32 %v2058, 4294901760
  %2695 = vmatmul.mubr.f32.gmra.mrb[0].mxu0 %v2694
  %v2696 = vpop.f32.mrb[0].mxu0
  %v2697 = vadd.f32 %v2380, %v2696
  %v2698 = vpop.f32.mrb[0].mxu0
  %2699 = vmatprep.mubr.f32.mxu0 0.0
  %v2700 = vand.u32 %v2061, 4294901760
  %2701 = vmatmul.mubr.f32.gmra.mrb[0].mxu0 %v2700
  %v2702 = vpop.f32.mrb[0].mxu0
  %v2703 = vadd.f32 %v2390, %v2702
  %v2704 = vpop.f32.mrb[0].mxu0
  %2705 = vmatprep.mubr.f32.mxu0 0.0
  %v2706 = vand.u32 %v2064, 4294901760
  %2707 = vmatmul.mubr.f32.gmra.mrb[0].mxu0 %v2706
  %v2708 = vpop.f32.mrb[0].mxu0
  %v2709 = vadd.f32 %v2400, %v2708
  %v2710 = vpop.f32.mrb[0].mxu0
  %2711 = vmatprep.mubr.f32.mxu0 0.0
  %v2712 = vand.u32 %v2067, 4294901760
  %2713 = vmatmul.mubr.f32.gmra.mrb[0].mxu0 %v2712
  %v2714 = vpop.f32.mrb[0].mxu0
  %v2715 = vadd.f32 %v2410, %v2714
  %v2716 = vpop.f32.mrb[0].mxu0
  %2717 = vmatprep.mubr.f32.mxu0 0.0
  %v2718 = vand.u32 %v2070, 4294901760
  %2719 = vmatmul.mubr.f32.gmra.mrb[0].mxu0 %v2718
  %v2720 = vpop.f32.mrb[0].mxu0
  %v2721 = vadd.f32 %v2420, %v2720
  %v2722 = vpop.f32.mrb[0].mxu0
  %2723 = vmatprep.mubr.f32.mxu0 0.0
  %v2724 = vand.u32 %v2073, 4294901760
  %2725 = vmatmul.mubr.f32.gmra.mrb[0].mxu0 %v2724
  %v2726 = vpop.f32.mrb[0].mxu0
  %v2727 = vadd.f32 %v2430, %v2726
  %v2728 = vpop.f32.mrb[0].mxu0
  %2729 = vmatprep.mubr.f32.mxu0 0.0
  %v2730 = vand.u32 %v2076, 4294901760
  %2731 = vmatmul.mubr.f32.gmra.mrb[0].mxu0 %v2730
  %v2732 = vpop.f32.mrb[0].mxu0
  %v2733 = vadd.f32 %v2440, %v2732
  %v2734 = vpop.f32.mrb[0].mxu0
  %2735 = vmatprep.mubr.f32.mxu0 0.0
  %v2736 = vand.u32 %v2079, 4294901760
  %2737 = vmatmul.mubr.f32.gmra.mrb[0].mxu0 %v2736
  %v2738 = vpop.f32.mrb[0].mxu0
  %v2739 = vadd.f32 %v2450, %v2738
  %v2740 = vpop.f32.mrb[0].mxu0
  %2741 = vmatprep.mubr.f32.mxu0 0.0
  %v2742 = vand.u32 %v2082, 4294901760
  %2743 = vmatmul.mubr.f32.gmra.mrb[0].mxu0 %v2742
  %v2744 = vpop.f32.mrb[0].mxu0
  %v2745 = vadd.f32 %v2460, %v2744
  %v2746 = vpop.f32.mrb[0].mxu0
  %2747 = vmatprep.mubr.f32.mxu0 0.0
  %v2748 = vand.u32 %v2085, 4294901760
  %2749 = vmatmul.mubr.f32.gmra.mrb[0].mxu0 %v2748
  %v2750 = vpop.f32.mrb[0].mxu0
  %v2751 = vadd.f32 %v2470, %v2750
  %v2752 = vpop.f32.mrb[0].mxu0
  %2753 = vmatprep.mubr.f32.mxu0 0.0
  %v2754 = vand.u32 %v2088, 4294901760
  %2755 = vmatmul.mubr.f32.gmra.mrb[0].mxu0 %v2754
  %v2756 = vpop.f32.mrb[0].mxu0
  %v2757 = vadd.f32 %v2480, %v2756
  %v2758 = vpop.f32.mrb[0].mxu0
  %2759 = vdwg.mxu0
  %2760 = vmatprep.subr.mxu0 0.0
  %v2761 = vand.u32 %v1986, 4294901760
  %v2762 = vsub.f32 %v1986, %v2761
  %2763 = vmatpush1.msra.mxu0 %v2762
  %2764 = vmatprep.subr.mxu0 0.0
  %v2765 = vand.u32 %v1987, 4294901760
  %v2766 = vsub.f32 %v1987, %v2765
  %2767 = vmatpush1.msra.mxu0 %v2766
  %2768 = vmatprep.subr.mxu0 0.0
  %v2769 = vand.u32 %v1988, 4294901760
  %v2770 = vsub.f32 %v1988, %v2769
  %2771 = vmatpush1.msra.mxu0 %v2770
  %2772 = vmatprep.subr.mxu0 0.0
  %v2773 = vand.u32 %v2092, 4294901760
  %v2774 = vsub.f32 %v2092, %v2773
  %2775 = vmatpush1.msra.mxu0 %v2774
  %2776 = vmatprep.subr.mxu0 0.0
  %2777 = vmatpush1.msra.mxu0 0.0
  %2778 = vmatprep.subr.mxu0 0.0
  %2779 = vmatpush1.msra.mxu0 0.0
  %2780 = vmatprep.subr.mxu0 0.0
  %2781 = vmatpush1.msra.mxu0 0.0
  %2782 = vmatprep.subr.mxu0 0.0
  %2783 = vmatpush1.msra.mxu0 0.0
  %2784 = vmatprep.subr.mxu0 0.0
  %2785 = vmatpush1.msra.mxu0 0.0
  %2786 = vmatprep.subr.mxu0 0.0
  %2787 = vmatpush1.msra.mxu0 0.0
  %2788 = vmatprep.subr.mxu0 0.0
  %2789 = vmatpush1.msra.mxu0 0.0
  %2790 = vmatprep.subr.mxu0 0.0
  %2791 = vmatpush1.msra.mxu0 0.0
  %2792 = vmatprep.subr.mxu0 0.0
  %2793 = vmatpush1.msra.mxu0 0.0
  %2794 = vmatprep.subr.mxu0 0.0
  %2795 = vmatpush1.msra.mxu0 0.0
  %2796 = vmatprep.subr.mxu0 0.0
  %2797 = vmatpush1.msra.mxu0 0.0
  %2798 = vmatprep.subr.mxu0 0.0
  %2799 = vmatpush1.msra.mxu0 0.0
  %2800 = vmatprep.subr.mxu0 0.0
  %2801 = vmatpush1.msra.mxu0 0.0
  %2802 = vmatprep.subr.mxu0 0.0
  %2803 = vmatpush1.msra.mxu0 0.0
  %2804 = vmatprep.subr.mxu0 0.0
  %2805 = vmatpush1.msra.mxu0 0.0
  %2806 = vmatprep.subr.mxu0 0.0
  %2807 = vmatpush1.msra.mxu0 0.0
  %2808 = vmatprep.subr.mxu0 0.0
  %2809 = vmatpush1.msra.mxu0 0.0
  %2810 = vmatprep.subr.mxu0 0.0
  %2811 = vmatpush1.msra.mxu0 0.0
  %2812 = vmatprep.subr.mxu0 0.0
  %2813 = vmatpush1.msra.mxu0 0.0
  %2814 = vmatprep.subr.mxu0 0.0
  %2815 = vmatpush1.msra.mxu0 0.0
  %2816 = vmatprep.subr.mxu0 0.0
  %2817 = vmatpush1.msra.mxu0 0.0
  %2818 = vmatprep.subr.mxu0 0.0
  %2819 = vmatpush1.msra.mxu0 0.0
  %2820 = vmatprep.subr.mxu0 0.0
  %2821 = vmatpush1.msra.mxu0 0.0
  %2822 = vmatprep.subr.mxu0 0.0
  %2823 = vmatpush1.msra.mxu0 0.0
  %2824 = vmatprep.subr.mxu0 0.0
  %2825 = vmatpush1.msra.mxu0 0.0
  %2826 = vmatprep.subr.mxu0 0.0
  %2827 = vmatpush1.msra.mxu0 0.0
  %2828 = vmatprep.subr.mxu0 0.0
  %2829 = vmatpush1.msra.mxu0 0.0
  %2830 = vmatprep.subr.mxu0 0.0
  %2831 = vmatpush1.msra.mxu0 0.0
  %2832 = vmatprep.mubr.f32.mxu0 0.0
  %v2833 = vand.u32 %v1995, 4294901760
  %v2834 = vsub.f32 %v1995, %v2833
  %2835 = vmatmul.mubr.f32.gmra.mrb[0].mxu0 %v2834
  %v2836 = vpop.f32.mrb[0].mxu0
  %v2837 = vadd.f32 %v2571, %v2836
  %v2838 = vpop.f32.mrb[0].mxu0
  %2839 = vmatprep.mubr.f32.mxu0 0.0
  %v2840 = vand.u32 %v1998, 4294901760
  %v2841 = vsub.f32 %v1998, %v2840
  %2842 = vmatmul.mubr.f32.gmra.mrb[0].mxu0 %v2841
  %v2843 = vpop.f32.mrb[0].mxu0
  %v2844 = vadd.f32 %v2577, %v2843
  %v2845 = vpop.f32.mrb[0].mxu0
  %2846 = vmatprep.mubr.f32.mxu0 0.0
  %v2847 = vand.u32 %v2001, 4294901760
  %v2848 = vsub.f32 %v2001, %v2847
  %2849 = vmatmul.mubr.f32.gmra.mrb[0].mxu0 %v2848
  %v2850 = vpop.f32.mrb[0].mxu0
  %v2851 = vadd.f32 %v2583, %v2850
  %v2852 = vpop.f32.mrb[0].mxu0
  %2853 = vmatprep.mubr.f32.mxu0 0.0
  %v2854 = vand.u32 %v2004, 4294901760
  %v2855 = vsub.f32 %v2004, %v2854
  %2856 = vmatmul.mubr.f32.gmra.mrb[0].mxu0 %v2855
  %v2857 = vpop.f32.mrb[0].mxu0
  %v2858 = vadd.f32 %v2589, %v2857
  %v2859 = vpop.f32.mrb[0].mxu0
  %2860 = vmatprep.mubr.f32.mxu0 0.0
  %v2861 = vand.u32 %v2007, 4294901760
  %v2862 = vsub.f32 %v2007, %v2861
  %2863 = vmatmul.mubr.f32.gmra.mrb[0].mxu0 %v2862
  %v2864 = vpop.f32.mrb[0].mxu0
  %v2865 = vadd.f32 %v2595, %v2864
  %v2866 = vpop.f32.mrb[0].mxu0
  %2867 = vmatprep.mubr.f32.mxu0 0.0
  %v2868 = vand.u32 %v2010, 4294901760
  %v2869 = vsub.f32 %v2010, %v2868
  %2870 = vmatmul.mubr.f32.gmra.mrb[0].mxu0 %v2869
  %v2871 = vpop.f32.mrb[0].mxu0
  %v2872 = vadd.f32 %v2601, %v2871
  %v2873 = vpop.f32.mrb[0].mxu0
  %2874 = vmatprep.mubr.f32.mxu0 0.0
  %v2875 = vand.u32 %v2013, 4294901760
  %v2876 = vsub.f32 %v2013, %v2875
  %2877 = vmatmul.mubr.f32.gmra.mrb[0].mxu0 %v2876
  %v2878 = vpop.f32.mrb[0].mxu0
  %v2879 = vadd.f32 %v2607, %v2878
  %v2880 = vpop.f32.mrb[0].mxu0
  %2881 = vmatprep.mubr.f32.mxu0 0.0
  %v2882 = vand.u32 %v2016, 4294901760
  %v2883 = vsub.f32 %v2016, %v2882
  %2884 = vmatmul.mubr.f32.gmra.mrb[0].mxu0 %v2883
  %v2885 = vpop.f32.mrb[0].mxu0
  %v2886 = vadd.f32 %v2613, %v2885
  %v2887 = vpop.f32.mrb[0].mxu0
  %2888 = vmatprep.mubr.f32.mxu0 0.0
  %v2889 = vand.u32 %v2019, 4294901760
  %v2890 = vsub.f32 %v2019, %v2889
  %2891 = vmatmul.mubr.f32.gmra.mrb[0].mxu0 %v2890
  %v2892 = vpop.f32.mrb[0].mxu0
  %v2893 = vadd.f32 %v2619, %v2892
  %v2894 = vpop.f32.mrb[0].mxu0
  %2895 = vmatprep.mubr.f32.mxu0 0.0
  %v2896 = vand.u32 %v2022, 4294901760
  %v2897 = vsub.f32 %v2022, %v2896
  %2898 = vmatmul.mubr.f32.gmra.mrb[0].mxu0 %v2897
  %v2899 = vpop.f32.mrb[0].mxu0
  %v2900 = vadd.f32 %v2625, %v2899
  %v2901 = vpop.f32.mrb[0].mxu0
  %2902 = vmatprep.mubr.f32.mxu0 0.0
  %v2903 = vand.u32 %v2025, 4294901760
  %v2904 = vsub.f32 %v2025, %v2903
  %2905 = vmatmul.mubr.f32.gmra.mrb[0].mxu0 %v2904
  %v2906 = vpop.f32.mrb[0].mxu0
  %v2907 = vadd.f32 %v2631, %v2906
  %v2908 = vpop.f32.mrb[0].mxu0
  %2909 = vmatprep.mubr.f32.mxu0 0.0
  %v2910 = vand.u32 %v2028, 4294901760
  %v2911 = vsub.f32 %v2028, %v2910
  %2912 = vmatmul.mubr.f32.gmra.mrb[0].mxu0 %v2911
  %v2913 = vpop.f32.mrb[0].mxu0
  %v2914 = vadd.f32 %v2637, %v2913
  %v2915 = vpop.f32.mrb[0].mxu0
  %2916 = vmatprep.mubr.f32.mxu0 0.0
  %v2917 = vand.u32 %v2031, 4294901760
  %v2918 = vsub.f32 %v2031, %v2917
  %2919 = vmatmul.mubr.f32.gmra.mrb[0].mxu0 %v2918
  %v2920 = vpop.f32.mrb[0].mxu0
  %v2921 = vadd.f32 %v2643, %v2920
  %v2922 = vpop.f32.mrb[0].mxu0
  %2923 = vmatprep.mubr.f32.mxu0 0.0
  %v2924 = vand.u32 %v2034, 4294901760
  %v2925 = vsub.f32 %v2034, %v2924
  %2926 = vmatmul.mubr.f32.gmra.mrb[0].mxu0 %v2925
  %v2927 = vpop.f32.mrb[0].mxu0
  %v2928 = vadd.f32 %v2649, %v2927
  %v2929 = vpop.f32.mrb[0].mxu0
  %2930 = vmatprep.mubr.f32.mxu0 0.0
  %v2931 = vand.u32 %v2037, 4294901760
  %v2932 = vsub.f32 %v2037, %v2931
  %2933 = vmatmul.mubr.f32.gmra.mrb[0].mxu0 %v2932
  %v2934 = vpop.f32.mrb[0].mxu0
  %v2935 = vadd.f32 %v2655, %v2934
  %v2936 = vpop.f32.mrb[0].mxu0
  %2937 = vmatprep.mubr.f32.mxu0 0.0
  %v2938 = vand.u32 %v2040, 4294901760
  %v2939 = vsub.f32 %v2040, %v2938
  %2940 = vmatmul.mubr.f32.gmra.mrb[0].mxu0 %v2939
  %v2941 = vpop.f32.mrb[0].mxu0
  %v2942 = vadd.f32 %v2661, %v2941
  %v2943 = vpop.f32.mrb[0].mxu0
  %2944 = vmatprep.mubr.f32.mxu0 0.0
  %v2945 = vand.u32 %v2043, 4294901760
  %v2946 = vsub.f32 %v2043, %v2945
  %2947 = vmatmul.mubr.f32.gmra.mrb[0].mxu0 %v2946
  %v2948 = vpop.f32.mrb[0].mxu0
  %v2949 = vadd.f32 %v2667, %v2948
  %v2950 = vpop.f32.mrb[0].mxu0
  %2951 = vmatprep.mubr.f32.mxu0 0.0
  %v2952 = vand.u32 %v2046, 4294901760
  %v2953 = vsub.f32 %v2046, %v2952
  %2954 = vmatmul.mubr.f32.gmra.mrb[0].mxu0 %v2953
  %v2955 = vpop.f32.mrb[0].mxu0
  %v2956 = vadd.f32 %v2673, %v2955
  %v2957 = vpop.f32.mrb[0].mxu0
  %2958 = vmatprep.mubr.f32.mxu0 0.0
  %v2959 = vand.u32 %v2049, 4294901760
  %v2960 = vsub.f32 %v2049, %v2959
  %2961 = vmatmul.mubr.f32.gmra.mrb[0].mxu0 %v2960
  %v2962 = vpop.f32.mrb[0].mxu0
  %v2963 = vadd.f32 %v2679, %v2962
  %v2964 = vpop.f32.mrb[0].mxu0
  %2965 = vmatprep.mubr.f32.mxu0 0.0
  %v2966 = vand.u32 %v2052, 4294901760
  %v2967 = vsub.f32 %v2052, %v2966
  %2968 = vmatmul.mubr.f32.gmra.mrb[0].mxu0 %v2967
  %v2969 = vpop.f32.mrb[0].mxu0
  %v2970 = vadd.f32 %v2685, %v2969
  %v2971 = vpop.f32.mrb[0].mxu0
  %2972 = vmatprep.mubr.f32.mxu0 0.0
  %v2973 = vand.u32 %v2055, 4294901760
  %v2974 = vsub.f32 %v2055, %v2973
  %2975 = vmatmul.mubr.f32.gmra.mrb[0].mxu0 %v2974
  %v2976 = vpop.f32.mrb[0].mxu0
  %v2977 = vadd.f32 %v2691, %v2976
  %v2978 = vpop.f32.mrb[0].mxu0
  %2979 = vmatprep.mubr.f32.mxu0 0.0
  %v2980 = vand.u32 %v2058, 4294901760
  %v2981 = vsub.f32 %v2058, %v2980
  %2982 = vmatmul.mubr.f32.gmra.mrb[0].mxu0 %v2981
  %v2983 = vpop.f32.mrb[0].mxu0
  %v2984 = vadd.f32 %v2697, %v2983
  %v2985 = vpop.f32.mrb[0].mxu0
  %2986 = vmatprep.mubr.f32.mxu0 0.0
  %v2987 = vand.u32 %v2061, 4294901760
  %v2988 = vsub.f32 %v2061, %v2987
  %2989 = vmatmul.mubr.f32.gmra.mrb[0].mxu0 %v2988
  %v2990 = vpop.f32.mrb[0].mxu0
  %v2991 = vadd.f32 %v2703, %v2990
  %v2992 = vpop.f32.mrb[0].mxu0
  %2993 = vmatprep.mubr.f32.mxu0 0.0
  %v2994 = vand.u32 %v2064, 4294901760
  %v2995 = vsub.f32 %v2064, %v2994
  %2996 = vmatmul.mubr.f32.gmra.mrb[0].mxu0 %v2995
  %v2997 = vpop.f32.mrb[0].mxu0
  %v2998 = vadd.f32 %v2709, %v2997
  %v2999 = vpop.f32.mrb[0].mxu0
  %3000 = vmatprep.mubr.f32.mxu0 0.0
  %v3001 = vand.u32 %v2067, 4294901760
  %v3002 = vsub.f32 %v2067, %v3001
  %3003 = vmatmul.mubr.f32.gmra.mrb[0].mxu0 %v3002
  %v3004 = vpop.f32.mrb[0].mxu0
  %v3005 = vadd.f32 %v2715, %v3004
  %v3006 = vpop.f32.mrb[0].mxu0
  %3007 = vmatprep.mubr.f32.mxu0 0.0
  %v3008 = vand.u32 %v2070, 4294901760
  %v3009 = vsub.f32 %v2070, %v3008
  %3010 = vmatmul.mubr.f32.gmra.mrb[0].mxu0 %v3009
  %v3011 = vpop.f32.mrb[0].mxu0
  %v3012 = vadd.f32 %v2721, %v3011
  %v3013 = vpop.f32.mrb[0].mxu0
  %3014 = vmatprep.mubr.f32.mxu0 0.0
  %v3015 = vand.u32 %v2073, 4294901760
  %v3016 = vsub.f32 %v2073, %v3015
  %3017 = vmatmul.mubr.f32.gmra.mrb[0].mxu0 %v3016
  %v3018 = vpop.f32.mrb[0].mxu0
  %v3019 = vadd.f32 %v2727, %v3018
  %v3020 = vpop.f32.mrb[0].mxu0
  %3021 = vmatprep.mubr.f32.mxu0 0.0
  %v3022 = vand.u32 %v2076, 4294901760
  %v3023 = vsub.f32 %v2076, %v3022
  %3024 = vmatmul.mubr.f32.gmra.mrb[0].mxu0 %v3023
  %v3025 = vpop.f32.mrb[0].mxu0
  %v3026 = vadd.f32 %v2733, %v3025
  %v3027 = vpop.f32.mrb[0].mxu0
  %3028 = vmatprep.mubr.f32.mxu0 0.0
  %v3029 = vand.u32 %v2079, 4294901760
  %v3030 = vsub.f32 %v2079, %v3029
  %3031 = vmatmul.mubr.f32.gmra.mrb[0].mxu0 %v3030
  %v3032 = vpop.f32.mrb[0].mxu0
  %v3033 = vadd.f32 %v2739, %v3032
  %v3034 = vpop.f32.mrb[0].mxu0
  %3035 = vmatprep.mubr.f32.mxu0 0.0
  %v3036 = vand.u32 %v2082, 4294901760
  %v3037 = vsub.f32 %v2082, %v3036
  %3038 = vmatmul.mubr.f32.gmra.mrb[0].mxu0 %v3037
  %v3039 = vpop.f32.mrb[0].mxu0
  %v3040 = vadd.f32 %v2745, %v3039
  %v3041 = vpop.f32.mrb[0].mxu0
  %3042 = vmatprep.mubr.f32.mxu0 0.0
  %v3043 = vand.u32 %v2085, 4294901760
  %v3044 = vsub.f32 %v2085, %v3043
  %3045 = vmatmul.mubr.f32.gmra.mrb[0].mxu0 %v3044
  %v3046 = vpop.f32.mrb[0].mxu0
  %v3047 = vadd.f32 %v2751, %v3046
  %v3048 = vpop.f32.mrb[0].mxu0
  %3049 = vmatprep.mubr.f32.mxu0 0.0
  %v3050 = vand.u32 %v2088, 4294901760
  %v3051 = vsub.f32 %v2088, %v3050
  %3052 = vmatmul.mubr.f32.gmra.mrb[0].mxu0 %v3051
  %v3053 = vpop.f32.mrb[0].mxu0
  %v3054 = vadd.f32 %v2757, %v3053
  %v3055 = vpop.f32.mrb[0].mxu0
  %3056 = vdwg.mxu0
  %3057 = vmatprep.subr.mxu0 0.0
  %v3058 = vand.u32 %v1986, 4294901760
  %3059 = vmatpush1.msra.mxu0 %v3058
  %3060 = vmatprep.subr.mxu0 0.0
  %v3061 = vand.u32 %v1987, 4294901760
  %3062 = vmatpush1.msra.mxu0 %v3061
  %3063 = vmatprep.subr.mxu0 0.0
  %v3064 = vand.u32 %v1988, 4294901760
  %3065 = vmatpush1.msra.mxu0 %v3064
  %3066 = vmatprep.subr.mxu0 0.0
  %v3067 = vand.u32 %v2092, 4294901760
  %3068 = vmatpush1.msra.mxu0 %v3067
  %3069 = vmatprep.subr.mxu0 0.0
  %3070 = vmatpush1.msra.mxu0 0.0
  %3071 = vmatprep.subr.mxu0 0.0
  %3072 = vmatpush1.msra.mxu0 0.0
  %3073 = vmatprep.subr.mxu0 0.0
  %3074 = vmatpush1.msra.mxu0 0.0
  %3075 = vmatprep.subr.mxu0 0.0
  %3076 = vmatpush1.msra.mxu0 0.0
  %3077 = vmatprep.subr.mxu0 0.0
  %3078 = vmatpush1.msra.mxu0 0.0
  %3079 = vmatprep.subr.mxu0 0.0
  %3080 = vmatpush1.msra.mxu0 0.0
  %3081 = vmatprep.subr.mxu0 0.0
  %3082 = vmatpush1.msra.mxu0 0.0
  %3083 = vmatprep.subr.mxu0 0.0
  %3084 = vmatpush1.msra.mxu0 0.0
  %3085 = vmatprep.subr.mxu0 0.0
  %3086 = vmatpush1.msra.mxu0 0.0
  %3087 = vmatprep.subr.mxu0 0.0
  %3088 = vmatpush1.msra.mxu0 0.0
  %3089 = vmatprep.subr.mxu0 0.0
  %3090 = vmatpush1.msra.mxu0 0.0
  %3091 = vmatprep.subr.mxu0 0.0
  %3092 = vmatpush1.msra.mxu0 0.0
  %3093 = vmatprep.subr.mxu0 0.0
  %3094 = vmatpush1.msra.mxu0 0.0
  %3095 = vmatprep.subr.mxu0 0.0
  %3096 = vmatpush1.msra.mxu0 0.0
  %3097 = vmatprep.subr.mxu0 0.0
  %3098 = vmatpush1.msra.mxu0 0.0
  %3099 = vmatprep.subr.mxu0 0.0
  %3100 = vmatpush1.msra.mxu0 0.0
  %3101 = vmatprep.subr.mxu0 0.0
  %3102 = vmatpush1.msra.mxu0 0.0
  %3103 = vmatprep.subr.mxu0 0.0
  %3104 = vmatpush1.msra.mxu0 0.0
  %3105 = vmatprep.subr.mxu0 0.0
  %3106 = vmatpush1.msra.mxu0 0.0
  %3107 = vmatprep.subr.mxu0 0.0
  %3108 = vmatpush1.msra.mxu0 0.0
  %3109 = vmatprep.subr.mxu0 0.0
  %3110 = vmatpush1.msra.mxu0 0.0
  %3111 = vmatprep.subr.mxu0 0.0
  %3112 = vmatpush1.msra.mxu0 0.0
  %3113 = vmatprep.subr.mxu0 0.0
  %3114 = vmatpush1.msra.mxu0 0.0
  %3115 = vmatprep.subr.mxu0 0.0
  %3116 = vmatpush1.msra.mxu0 0.0
  %3117 = vmatprep.subr.mxu0 0.0
  %3118 = vmatpush1.msra.mxu0 0.0
  %3119 = vmatprep.subr.mxu0 0.0
  %3120 = vmatpush1.msra.mxu0 0.0
  %3121 = vmatprep.subr.mxu0 0.0
  %3122 = vmatpush1.msra.mxu0 0.0
  %3123 = vmatprep.subr.mxu0 0.0
  %3124 = vmatpush1.msra.mxu0 0.0
  %3125 = vmatprep.mubr.f32.mxu0 0.0
  %v3126 = vand.u32 %v1995, 4294901760
  %v3127 = vsub.f32 %v1995, %v3126
  %v3128 = vand.u32 %v3127, 4294901760
  %3129 = vmatmul.mubr.f32.gmra.mrb[0].mxu0 %v3128
  %v3130 = vpop.f32.mrb[0].mxu0
  %v3131 = vadd.f32 %v2837, %v3130
  %v3132 = vpop.f32.mrb[0].mxu0
  %3133 = vmatprep.mubr.f32.mxu0 0.0
  %v3134 = vand.u32 %v1998, 4294901760
  %v3135 = vsub.f32 %v1998, %v3134
  %v3136 = vand.u32 %v3135, 4294901760
  %3137 = vmatmul.mubr.f32.gmra.mrb[0].mxu0 %v3136
  %v3138 = vpop.f32.mrb[0].mxu0
  %v3139 = vadd.f32 %v2844, %v3138
  %v3140 = vpop.f32.mrb[0].mxu0
  %3141 = vmatprep.mubr.f32.mxu0 0.0
  %v3142 = vand.u32 %v2001, 4294901760
  %v3143 = vsub.f32 %v2001, %v3142
  %v3144 = vand.u32 %v3143, 4294901760
  %3145 = vmatmul.mubr.f32.gmra.mrb[0].mxu0 %v3144
  %v3146 = vpop.f32.mrb[0].mxu0
  %v3147 = vadd.f32 %v2851, %v3146
  %v3148 = vpop.f32.mrb[0].mxu0
  %3149 = vmatprep.mubr.f32.mxu0 0.0
  %v3150 = vand.u32 %v2004, 4294901760
  %v3151 = vsub.f32 %v2004, %v3150
  %v3152 = vand.u32 %v3151, 4294901760
  %3153 = vmatmul.mubr.f32.gmra.mrb[0].mxu0 %v3152
  %v3154 = vpop.f32.mrb[0].mxu0
  %v3155 = vadd.f32 %v2858, %v3154
  %v3156 = vpop.f32.mrb[0].mxu0
  %3157 = vmatprep.mubr.f32.mxu0 0.0
  %v3158 = vand.u32 %v2007, 4294901760
  %v3159 = vsub.f32 %v2007, %v3158
  %v3160 = vand.u32 %v3159, 4294901760
  %3161 = vmatmul.mubr.f32.gmra.mrb[0].mxu0 %v3160
  %v3162 = vpop.f32.mrb[0].mxu0
  %v3163 = vadd.f32 %v2865, %v3162
  %v3164 = vpop.f32.mrb[0].mxu0
  %3165 = vmatprep.mubr.f32.mxu0 0.0
  %v3166 = vand.u32 %v2010, 4294901760
  %v3167 = vsub.f32 %v2010, %v3166
  %v3168 = vand.u32 %v3167, 4294901760
  %3169 = vmatmul.mubr.f32.gmra.mrb[0].mxu0 %v3168
  %v3170 = vpop.f32.mrb[0].mxu0
  %v3171 = vadd.f32 %v2872, %v3170
  %v3172 = vpop.f32.mrb[0].mxu0
  %3173 = vmatprep.mubr.f32.mxu0 0.0
  %v3174 = vand.u32 %v2013, 4294901760
  %v3175 = vsub.f32 %v2013, %v3174
  %v3176 = vand.u32 %v3175, 4294901760
  %3177 = vmatmul.mubr.f32.gmra.mrb[0].mxu0 %v3176
  %v3178 = vpop.f32.mrb[0].mxu0
  %v3179 = vadd.f32 %v2879, %v3178
  %v3180 = vpop.f32.mrb[0].mxu0
  %3181 = vmatprep.mubr.f32.mxu0 0.0
  %v3182 = vand.u32 %v2016, 4294901760
  %v3183 = vsub.f32 %v2016, %v3182
  %v3184 = vand.u32 %v3183, 4294901760
  %3185 = vmatmul.mubr.f32.gmra.mrb[0].mxu0 %v3184
  %v3186 = vpop.f32.mrb[0].mxu0
  %v3187 = vadd.f32 %v2886, %v3186
  %v3188 = vpop.f32.mrb[0].mxu0
  %3189 = vmatprep.mubr.f32.mxu0 0.0
  %v3190 = vand.u32 %v2019, 4294901760
  %v3191 = vsub.f32 %v2019, %v3190
  %v3192 = vand.u32 %v3191, 4294901760
  %3193 = vmatmul.mubr.f32.gmra.mrb[0].mxu0 %v3192
  %v3194 = vpop.f32.mrb[0].mxu0
  %v3195 = vadd.f32 %v2893, %v3194
  %v3196 = vpop.f32.mrb[0].mxu0
  %3197 = vmatprep.mubr.f32.mxu0 0.0
  %v3198 = vand.u32 %v2022, 4294901760
  %v3199 = vsub.f32 %v2022, %v3198
  %v3200 = vand.u32 %v3199, 4294901760
  %3201 = vmatmul.mubr.f32.gmra.mrb[0].mxu0 %v3200
  %v3202 = vpop.f32.mrb[0].mxu0
  %v3203 = vadd.f32 %v2900, %v3202
  %v3204 = vpop.f32.mrb[0].mxu0
  %3205 = vmatprep.mubr.f32.mxu0 0.0
  %v3206 = vand.u32 %v2025, 4294901760
  %v3207 = vsub.f32 %v2025, %v3206
  %v3208 = vand.u32 %v3207, 4294901760
  %3209 = vmatmul.mubr.f32.gmra.mrb[0].mxu0 %v3208
  %v3210 = vpop.f32.mrb[0].mxu0
  %v3211 = vadd.f32 %v2907, %v3210
  %v3212 = vpop.f32.mrb[0].mxu0
  %3213 = vmatprep.mubr.f32.mxu0 0.0
  %v3214 = vand.u32 %v2028, 4294901760
  %v3215 = vsub.f32 %v2028, %v3214
  %v3216 = vand.u32 %v3215, 4294901760
  %3217 = vmatmul.mubr.f32.gmra.mrb[0].mxu0 %v3216
  %v3218 = vpop.f32.mrb[0].mxu0
  %v3219 = vadd.f32 %v2914, %v3218
  %v3220 = vpop.f32.mrb[0].mxu0
  %3221 = vmatprep.mubr.f32.mxu0 0.0
  %v3222 = vand.u32 %v2031, 4294901760
  %v3223 = vsub.f32 %v2031, %v3222
  %v3224 = vand.u32 %v3223, 4294901760
  %3225 = vmatmul.mubr.f32.gmra.mrb[0].mxu0 %v3224
  %v3226 = vpop.f32.mrb[0].mxu0
  %v3227 = vadd.f32 %v2921, %v3226
  %v3228 = vpop.f32.mrb[0].mxu0
  %3229 = vmatprep.mubr.f32.mxu0 0.0
  %v3230 = vand.u32 %v2034, 4294901760
  %v3231 = vsub.f32 %v2034, %v3230
  %v3232 = vand.u32 %v3231, 4294901760
  %3233 = vmatmul.mubr.f32.gmra.mrb[0].mxu0 %v3232
  %v3234 = vpop.f32.mrb[0].mxu0
  %v3235 = vadd.f32 %v2928, %v3234
  %v3236 = vpop.f32.mrb[0].mxu0
  %3237 = vmatprep.mubr.f32.mxu0 0.0
  %v3238 = vand.u32 %v2037, 4294901760
  %v3239 = vsub.f32 %v2037, %v3238
  %v3240 = vand.u32 %v3239, 4294901760
  %3241 = vmatmul.mubr.f32.gmra.mrb[0].mxu0 %v3240
  %v3242 = vpop.f32.mrb[0].mxu0
  %v3243 = vadd.f32 %v2935, %v3242
  %v3244 = vpop.f32.mrb[0].mxu0
  %3245 = vmatprep.mubr.f32.mxu0 0.0
  %v3246 = vand.u32 %v2040, 4294901760
  %v3247 = vsub.f32 %v2040, %v3246
  %v3248 = vand.u32 %v3247, 4294901760
  %3249 = vmatmul.mubr.f32.gmra.mrb[0].mxu0 %v3248
  %v3250 = vpop.f32.mrb[0].mxu0
  %v3251 = vadd.f32 %v2942, %v3250
  %v3252 = vpop.f32.mrb[0].mxu0
  %3253 = vmatprep.mubr.f32.mxu0 0.0
  %v3254 = vand.u32 %v2043, 4294901760
  %v3255 = vsub.f32 %v2043, %v3254
  %v3256 = vand.u32 %v3255, 4294901760
  %3257 = vmatmul.mubr.f32.gmra.mrb[0].mxu0 %v3256
  %v3258 = vpop.f32.mrb[0].mxu0
  %v3259 = vadd.f32 %v2949, %v3258
  %v3260 = vpop.f32.mrb[0].mxu0
  %3261 = vmatprep.mubr.f32.mxu0 0.0
  %v3262 = vand.u32 %v2046, 4294901760
  %v3263 = vsub.f32 %v2046, %v3262
  %v3264 = vand.u32 %v3263, 4294901760
  %3265 = vmatmul.mubr.f32.gmra.mrb[0].mxu0 %v3264
  %v3266 = vpop.f32.mrb[0].mxu0
  %v3267 = vadd.f32 %v2956, %v3266
  %v3268 = vpop.f32.mrb[0].mxu0
  %3269 = vmatprep.mubr.f32.mxu0 0.0
  %v3270 = vand.u32 %v2049, 4294901760
  %v3271 = vsub.f32 %v2049, %v3270
  %v3272 = vand.u32 %v3271, 4294901760
  %3273 = vmatmul.mubr.f32.gmra.mrb[0].mxu0 %v3272
  %v3274 = vpop.f32.mrb[0].mxu0
  %v3275 = vadd.f32 %v2963, %v3274
  %v3276 = vpop.f32.mrb[0].mxu0
  %3277 = vmatprep.mubr.f32.mxu0 0.0
  %v3278 = vand.u32 %v2052, 4294901760
  %v3279 = vsub.f32 %v2052, %v3278
  %v3280 = vand.u32 %v3279, 4294901760
  %3281 = vmatmul.mubr.f32.gmra.mrb[0].mxu0 %v3280
  %v3282 = vpop.f32.mrb[0].mxu0
  %v3283 = vadd.f32 %v2970, %v3282
  %v3284 = vpop.f32.mrb[0].mxu0
  %3285 = vmatprep.mubr.f32.mxu0 0.0
  %v3286 = vand.u32 %v2055, 4294901760
  %v3287 = vsub.f32 %v2055, %v3286
  %v3288 = vand.u32 %v3287, 4294901760
  %3289 = vmatmul.mubr.f32.gmra.mrb[0].mxu0 %v3288
  %v3290 = vpop.f32.mrb[0].mxu0
  %v3291 = vadd.f32 %v2977, %v3290
  %v3292 = vpop.f32.mrb[0].mxu0
  %3293 = vmatprep.mubr.f32.mxu0 0.0
  %v3294 = vand.u32 %v2058, 4294901760
  %v3295 = vsub.f32 %v2058, %v3294
  %v3296 = vand.u32 %v3295, 4294901760
  %3297 = vmatmul.mubr.f32.gmra.mrb[0].mxu0 %v3296
  %v3298 = vpop.f32.mrb[0].mxu0
  %v3299 = vadd.f32 %v2984, %v3298
  %v3300 = vpop.f32.mrb[0].mxu0
  %3301 = vmatprep.mubr.f32.mxu0 0.0
  %v3302 = vand.u32 %v2061, 4294901760
  %v3303 = vsub.f32 %v2061, %v3302
  %v3304 = vand.u32 %v3303, 4294901760
  %3305 = vmatmul.mubr.f32.gmra.mrb[0].mxu0 %v3304
  %v3306 = vpop.f32.mrb[0].mxu0
  %v3307 = vadd.f32 %v2991, %v3306
  %v3308 = vpop.f32.mrb[0].mxu0
  %3309 = vmatprep.mubr.f32.mxu0 0.0
  %v3310 = vand.u32 %v2064, 4294901760
  %v3311 = vsub.f32 %v2064, %v3310
  %v3312 = vand.u32 %v3311, 4294901760
  %3313 = vmatmul.mubr.f32.gmra.mrb[0].mxu0 %v3312
  %v3314 = vpop.f32.mrb[0].mxu0
  %v3315 = vadd.f32 %v2998, %v3314
  %v3316 = vpop.f32.mrb[0].mxu0
  %3317 = vmatprep.mubr.f32.mxu0 0.0
  %v3318 = vand.u32 %v2067, 4294901760
  %v3319 = vsub.f32 %v2067, %v3318
  %v3320 = vand.u32 %v3319, 4294901760
  %3321 = vmatmul.mubr.f32.gmra.mrb[0].mxu0 %v3320
  %v3322 = vpop.f32.mrb[0].mxu0
  %v3323 = vadd.f32 %v3005, %v3322
  %v3324 = vpop.f32.mrb[0].mxu0
  %3325 = vmatprep.mubr.f32.mxu0 0.0
  %v3326 = vand.u32 %v2070, 4294901760
  %v3327 = vsub.f32 %v2070, %v3326
  %v3328 = vand.u32 %v3327, 4294901760
  %3329 = vmatmul.mubr.f32.gmra.mrb[0].mxu0 %v3328
  %v3330 = vpop.f32.mrb[0].mxu0
  %v3331 = vadd.f32 %v3012, %v3330
  %v3332 = vpop.f32.mrb[0].mxu0
  %3333 = vmatprep.mubr.f32.mxu0 0.0
  %v3334 = vand.u32 %v2073, 4294901760
  %v3335 = vsub.f32 %v2073, %v3334
  %v3336 = vand.u32 %v3335, 4294901760
  %3337 = vmatmul.mubr.f32.gmra.mrb[0].mxu0 %v3336
  %v3338 = vpop.f32.mrb[0].mxu0
  %v3339 = vadd.f32 %v3019, %v3338
  %v3340 = vpop.f32.mrb[0].mxu0
  %3341 = vmatprep.mubr.f32.mxu0 0.0
  %v3342 = vand.u32 %v2076, 4294901760
  %v3343 = vsub.f32 %v2076, %v3342
  %v3344 = vand.u32 %v3343, 4294901760
  %3345 = vmatmul.mubr.f32.gmra.mrb[0].mxu0 %v3344
  %v3346 = vpop.f32.mrb[0].mxu0
  %v3347 = vadd.f32 %v3026, %v3346
  %v3348 = vpop.f32.mrb[0].mxu0
  %3349 = vmatprep.mubr.f32.mxu0 0.0
  %v3350 = vand.u32 %v2079, 4294901760
  %v3351 = vsub.f32 %v2079, %v3350
  %v3352 = vand.u32 %v3351, 4294901760
  %3353 = vmatmul.mubr.f32.gmra.mrb[0].mxu0 %v3352
  %v3354 = vpop.f32.mrb[0].mxu0
  %v3355 = vadd.f32 %v3033, %v3354
  %v3356 = vpop.f32.mrb[0].mxu0
  %3357 = vmatprep.mubr.f32.mxu0 0.0
  %v3358 = vand.u32 %v2082, 4294901760
  %v3359 = vsub.f32 %v2082, %v3358
  %v3360 = vand.u32 %v3359, 4294901760
  %3361 = vmatmul.mubr.f32.gmra.mrb[0].mxu0 %v3360
  %v3362 = vpop.f32.mrb[0].mxu0
  %v3363 = vadd.f32 %v3040, %v3362
  %v3364 = vpop.f32.mrb[0].mxu0
  %3365 = vmatprep.mubr.f32.mxu0 0.0
  %v3366 = vand.u32 %v2085, 4294901760
  %v3367 = vsub.f32 %v2085, %v3366
  %v3368 = vand.u32 %v3367, 4294901760
  %3369 = vmatmul.mubr.f32.gmra.mrb[0].mxu0 %v3368
  %v3370 = vpop.f32.mrb[0].mxu0
  %v3371 = vadd.f32 %v3047, %v3370
  %v3372 = vpop.f32.mrb[0].mxu0
  %3373 = vmatprep.mubr.f32.mxu0 0.0
  %v3374 = vand.u32 %v2088, 4294901760
  %v3375 = vsub.f32 %v2088, %v3374
  %v3376 = vand.u32 %v3375, 4294901760
  %3377 = vmatmul.mubr.f32.gmra.mrb[0].mxu0 %v3376
  %v3378 = vpop.f32.mrb[0].mxu0
  %v3379 = vadd.f32 %v3054, %v3378
  %v3380 = vpop.f32.mrb[0].mxu0
  %3381 = vdwg.mxu0
  %3382 = vmatprep.subr.mxu0 0.0
  %v3383 = vand.u32 %v1986, 4294901760
  %v3384 = vsub.f32 %v1986, %v3383
  %v3385 = vand.u32 %v3384, 4294901760
  %3386 = vmatpush1.msra.mxu0 %v3385
  %3387 = vmatprep.subr.mxu0 0.0
  %v3388 = vand.u32 %v1987, 4294901760
  %v3389 = vsub.f32 %v1987, %v3388
  %v3390 = vand.u32 %v3389, 4294901760
  %3391 = vmatpush1.msra.mxu0 %v3390
  %3392 = vmatprep.subr.mxu0 0.0
  %v3393 = vand.u32 %v1988, 4294901760
  %v3394 = vsub.f32 %v1988, %v3393
  %v3395 = vand.u32 %v3394, 4294901760
  %3396 = vmatpush1.msra.mxu0 %v3395
  %3397 = vmatprep.subr.mxu0 0.0
  %v3398 = vand.u32 %v2092, 4294901760
  %v3399 = vsub.f32 %v2092, %v3398
  %v3400 = vand.u32 %v3399, 4294901760
  %3401 = vmatpush1.msra.mxu0 %v3400
  %3402 = vmatprep.subr.mxu0 0.0
  %3403 = vmatpush1.msra.mxu0 0.0
  %3404 = vmatprep.subr.mxu0 0.0
  %3405 = vmatpush1.msra.mxu0 0.0
  %3406 = vmatprep.subr.mxu0 0.0
  %3407 = vmatpush1.msra.mxu0 0.0
  %3408 = vmatprep.subr.mxu0 0.0
  %3409 = vmatpush1.msra.mxu0 0.0
  %3410 = vmatprep.subr.mxu0 0.0
  %3411 = vmatpush1.msra.mxu0 0.0
  %3412 = vmatprep.subr.mxu0 0.0
  %3413 = vmatpush1.msra.mxu0 0.0
  %3414 = vmatprep.subr.mxu0 0.0
  %3415 = vmatpush1.msra.mxu0 0.0
  %3416 = vmatprep.subr.mxu0 0.0
  %3417 = vmatpush1.msra.mxu0 0.0
  %3418 = vmatprep.subr.mxu0 0.0
  %3419 = vmatpush1.msra.mxu0 0.0
  %3420 = vmatprep.subr.mxu0 0.0
  %3421 = vmatpush1.msra.mxu0 0.0
  %3422 = vmatprep.subr.mxu0 0.0
  %3423 = vmatpush1.msra.mxu0 0.0
  %3424 = vmatprep.subr.mxu0 0.0
  %3425 = vmatpush1.msra.mxu0 0.0
  %3426 = vmatprep.subr.mxu0 0.0
  %3427 = vmatpush1.msra.mxu0 0.0
  %3428 = vmatprep.subr.mxu0 0.0
  %3429 = vmatpush1.msra.mxu0 0.0
  %3430 = vmatprep.subr.mxu0 0.0
  %3431 = vmatpush1.msra.mxu0 0.0
  %3432 = vmatprep.subr.mxu0 0.0
  %3433 = vmatpush1.msra.mxu0 0.0
  %3434 = vmatprep.subr.mxu0 0.0
  %3435 = vmatpush1.msra.mxu0 0.0
  %3436 = vmatprep.subr.mxu0 0.0
  %3437 = vmatpush1.msra.mxu0 0.0
  %3438 = vmatprep.subr.mxu0 0.0
  %3439 = vmatpush1.msra.mxu0 0.0
  %3440 = vmatprep.subr.mxu0 0.0
  %3441 = vmatpush1.msra.mxu0 0.0
  %3442 = vmatprep.subr.mxu0 0.0
  %3443 = vmatpush1.msra.mxu0 0.0
  %3444 = vmatprep.subr.mxu0 0.0
  %3445 = vmatpush1.msra.mxu0 0.0
  %3446 = vmatprep.subr.mxu0 0.0
  %3447 = vmatpush1.msra.mxu0 0.0
  %3448 = vmatprep.subr.mxu0 0.0
  %3449 = vmatpush1.msra.mxu0 0.0
  %3450 = vmatprep.subr.mxu0 0.0
  %3451 = vmatpush1.msra.mxu0 0.0
  %3452 = vmatprep.subr.mxu0 0.0
  %3453 = vmatpush1.msra.mxu0 0.0
  %3454 = vmatprep.subr.mxu0 0.0
  %3455 = vmatpush1.msra.mxu0 0.0
  %3456 = vmatprep.subr.mxu0 0.0
  %3457 = vmatpush1.msra.mxu0 0.0
  %3458 = vmatprep.mubr.f32.mxu0 0.0
  %v3459 = vand.u32 %v1995, 4294901760
  %3460 = vmatmul.mubr.f32.gmra.mrb[0].mxu0 %v3459
  %v3461 = vpop.f32.mrb[0].mxu0
  %v3462 = vadd.f32 %v3131, %v3461
  %v3463 = vpop.f32.mrb[0].mxu0
  %3464 = vmatprep.mubr.f32.mxu0 0.0
  %v3465 = vand.u32 %v1998, 4294901760
  %3466 = vmatmul.mubr.f32.gmra.mrb[0].mxu0 %v3465
  %v3467 = vpop.f32.mrb[0].mxu0
  %v3468 = vadd.f32 %v3139, %v3467
  %v3469 = vpop.f32.mrb[0].mxu0
  %3470 = vmatprep.mubr.f32.mxu0 0.0
  %v3471 = vand.u32 %v2001, 4294901760
  %3472 = vmatmul.mubr.f32.gmra.mrb[0].mxu0 %v3471
  %v3473 = vpop.f32.mrb[0].mxu0
  %v3474 = vadd.f32 %v3147, %v3473
  %v3475 = vpop.f32.mrb[0].mxu0
  %3476 = vmatprep.mubr.f32.mxu0 0.0
  %v3477 = vand.u32 %v2004, 4294901760
  %3478 = vmatmul.mubr.f32.gmra.mrb[0].mxu0 %v3477
  %v3479 = vpop.f32.mrb[0].mxu0
  %v3480 = vadd.f32 %v3155, %v3479
  %v3481 = vpop.f32.mrb[0].mxu0
  %3482 = vmatprep.mubr.f32.mxu0 0.0
  %v3483 = vand.u32 %v2007, 4294901760
  %3484 = vmatmul.mubr.f32.gmra.mrb[0].mxu0 %v3483
  %v3485 = vpop.f32.mrb[0].mxu0
  %v3486 = vadd.f32 %v3163, %v3485
  %v3487 = vpop.f32.mrb[0].mxu0
  %3488 = vmatprep.mubr.f32.mxu0 0.0
  %v3489 = vand.u32 %v2010, 4294901760
  %3490 = vmatmul.mubr.f32.gmra.mrb[0].mxu0 %v3489
  %v3491 = vpop.f32.mrb[0].mxu0
  %v3492 = vadd.f32 %v3171, %v3491
  %v3493 = vpop.f32.mrb[0].mxu0
  %3494 = vmatprep.mubr.f32.mxu0 0.0
  %v3495 = vand.u32 %v2013, 4294901760
  %3496 = vmatmul.mubr.f32.gmra.mrb[0].mxu0 %v3495
  %v3497 = vpop.f32.mrb[0].mxu0
  %v3498 = vadd.f32 %v3179, %v3497
  %v3499 = vpop.f32.mrb[0].mxu0
  %3500 = vmatprep.mubr.f32.mxu0 0.0
  %v3501 = vand.u32 %v2016, 4294901760
  %3502 = vmatmul.mubr.f32.gmra.mrb[0].mxu0 %v3501
  %v3503 = vpop.f32.mrb[0].mxu0
  %v3504 = vadd.f32 %v3187, %v3503
  %v3505 = vpop.f32.mrb[0].mxu0
  %3506 = vmatprep.mubr.f32.mxu0 0.0
  %v3507 = vand.u32 %v2019, 4294901760
  %3508 = vmatmul.mubr.f32.gmra.mrb[0].mxu0 %v3507
  %v3509 = vpop.f32.mrb[0].mxu0
  %v3510 = vadd.f32 %v3195, %v3509
  %v3511 = vpop.f32.mrb[0].mxu0
  %3512 = vmatprep.mubr.f32.mxu0 0.0
  %v3513 = vand.u32 %v2022, 4294901760
  %3514 = vmatmul.mubr.f32.gmra.mrb[0].mxu0 %v3513
  %v3515 = vpop.f32.mrb[0].mxu0
  %v3516 = vadd.f32 %v3203, %v3515
  %v3517 = vpop.f32.mrb[0].mxu0
  %3518 = vmatprep.mubr.f32.mxu0 0.0
  %v3519 = vand.u32 %v2025, 4294901760
  %3520 = vmatmul.mubr.f32.gmra.mrb[0].mxu0 %v3519
  %v3521 = vpop.f32.mrb[0].mxu0
  %v3522 = vadd.f32 %v3211, %v3521
  %v3523 = vpop.f32.mrb[0].mxu0
  %3524 = vmatprep.mubr.f32.mxu0 0.0
  %v3525 = vand.u32 %v2028, 4294901760
  %3526 = vmatmul.mubr.f32.gmra.mrb[0].mxu0 %v3525
  %v3527 = vpop.f32.mrb[0].mxu0
  %v3528 = vadd.f32 %v3219, %v3527
  %v3529 = vpop.f32.mrb[0].mxu0
  %3530 = vmatprep.mubr.f32.mxu0 0.0
  %v3531 = vand.u32 %v2031, 4294901760
  %3532 = vmatmul.mubr.f32.gmra.mrb[0].mxu0 %v3531
  %v3533 = vpop.f32.mrb[0].mxu0
  %v3534 = vadd.f32 %v3227, %v3533
  %v3535 = vpop.f32.mrb[0].mxu0
  %3536 = vmatprep.mubr.f32.mxu0 0.0
  %v3537 = vand.u32 %v2034, 4294901760
  %3538 = vmatmul.mubr.f32.gmra.mrb[0].mxu0 %v3537
  %v3539 = vpop.f32.mrb[0].mxu0
  %v3540 = vadd.f32 %v3235, %v3539
  %v3541 = vpop.f32.mrb[0].mxu0
  %3542 = vmatprep.mubr.f32.mxu0 0.0
  %v3543 = vand.u32 %v2037, 4294901760
  %3544 = vmatmul.mubr.f32.gmra.mrb[0].mxu0 %v3543
  %v3545 = vpop.f32.mrb[0].mxu0
  %v3546 = vadd.f32 %v3243, %v3545
  %v3547 = vpop.f32.mrb[0].mxu0
  %3548 = vmatprep.mubr.f32.mxu0 0.0
  %v3549 = vand.u32 %v2040, 4294901760
  %3550 = vmatmul.mubr.f32.gmra.mrb[0].mxu0 %v3549
  %v3551 = vpop.f32.mrb[0].mxu0
  %v3552 = vadd.f32 %v3251, %v3551
  %v3553 = vpop.f32.mrb[0].mxu0
  %3554 = vmatprep.mubr.f32.mxu0 0.0
  %v3555 = vand.u32 %v2043, 4294901760
  %3556 = vmatmul.mubr.f32.gmra.mrb[0].mxu0 %v3555
  %v3557 = vpop.f32.mrb[0].mxu0
  %v3558 = vadd.f32 %v3259, %v3557
  %v3559 = vpop.f32.mrb[0].mxu0
  %3560 = vmatprep.mubr.f32.mxu0 0.0
  %v3561 = vand.u32 %v2046, 4294901760
  %3562 = vmatmul.mubr.f32.gmra.mrb[0].mxu0 %v3561
  %v3563 = vpop.f32.mrb[0].mxu0
  %v3564 = vadd.f32 %v3267, %v3563
  %v3565 = vpop.f32.mrb[0].mxu0
  %3566 = vmatprep.mubr.f32.mxu0 0.0
  %v3567 = vand.u32 %v2049, 4294901760
  %3568 = vmatmul.mubr.f32.gmra.mrb[0].mxu0 %v3567
  %v3569 = vpop.f32.mrb[0].mxu0
  %v3570 = vadd.f32 %v3275, %v3569
  %v3571 = vpop.f32.mrb[0].mxu0
  %3572 = vmatprep.mubr.f32.mxu0 0.0
  %v3573 = vand.u32 %v2052, 4294901760
  %3574 = vmatmul.mubr.f32.gmra.mrb[0].mxu0 %v3573
  %v3575 = vpop.f32.mrb[0].mxu0
  %v3576 = vadd.f32 %v3283, %v3575
  %v3577 = vpop.f32.mrb[0].mxu0
  %3578 = vmatprep.mubr.f32.mxu0 0.0
  %v3579 = vand.u32 %v2055, 4294901760
  %3580 = vmatmul.mubr.f32.gmra.mrb[0].mxu0 %v3579
  %v3581 = vpop.f32.mrb[0].mxu0
  %v3582 = vadd.f32 %v3291, %v3581
  %v3583 = vpop.f32.mrb[0].mxu0
  %3584 = vmatprep.mubr.f32.mxu0 0.0
  %v3585 = vand.u32 %v2058, 4294901760
  %3586 = vmatmul.mubr.f32.gmra.mrb[0].mxu0 %v3585
  %v3587 = vpop.f32.mrb[0].mxu0
  %v3588 = vadd.f32 %v3299, %v3587
  %v3589 = vpop.f32.mrb[0].mxu0
  %3590 = vmatprep.mubr.f32.mxu0 0.0
  %v3591 = vand.u32 %v2061, 4294901760
  %3592 = vmatmul.mubr.f32.gmra.mrb[0].mxu0 %v3591
  %v3593 = vpop.f32.mrb[0].mxu0
  %v3594 = vadd.f32 %v3307, %v3593
  %v3595 = vpop.f32.mrb[0].mxu0
  %3596 = vmatprep.mubr.f32.mxu0 0.0
  %v3597 = vand.u32 %v2064, 4294901760
  %3598 = vmatmul.mubr.f32.gmra.mrb[0].mxu0 %v3597
  %v3599 = vpop.f32.mrb[0].mxu0
  %v3600 = vadd.f32 %v3315, %v3599
  %v3601 = vpop.f32.mrb[0].mxu0
  %3602 = vmatprep.mubr.f32.mxu0 0.0
  %v3603 = vand.u32 %v2067, 4294901760
  %3604 = vmatmul.mubr.f32.gmra.mrb[0].mxu0 %v3603
  %v3605 = vpop.f32.mrb[0].mxu0
  %v3606 = vadd.f32 %v3323, %v3605
  %v3607 = vpop.f32.mrb[0].mxu0
  %3608 = vmatprep.mubr.f32.mxu0 0.0
  %v3609 = vand.u32 %v2070, 4294901760
  %3610 = vmatmul.mubr.f32.gmra.mrb[0].mxu0 %v3609
  %v3611 = vpop.f32.mrb[0].mxu0
  %v3612 = vadd.f32 %v3331, %v3611
  %v3613 = vpop.f32.mrb[0].mxu0
  %3614 = vmatprep.mubr.f32.mxu0 0.0
  %v3615 = vand.u32 %v2073, 4294901760
  %3616 = vmatmul.mubr.f32.gmra.mrb[0].mxu0 %v3615
  %v3617 = vpop.f32.mrb[0].mxu0
  %v3618 = vadd.f32 %v3339, %v3617
  %v3619 = vpop.f32.mrb[0].mxu0
  %3620 = vmatprep.mubr.f32.mxu0 0.0
  %v3621 = vand.u32 %v2076, 4294901760
  %3622 = vmatmul.mubr.f32.gmra.mrb[0].mxu0 %v3621
  %v3623 = vpop.f32.mrb[0].mxu0
  %v3624 = vadd.f32 %v3347, %v3623
  %v3625 = vpop.f32.mrb[0].mxu0
  %3626 = vmatprep.mubr.f32.mxu0 0.0
  %v3627 = vand.u32 %v2079, 4294901760
  %3628 = vmatmul.mubr.f32.gmra.mrb[0].mxu0 %v3627
  %v3629 = vpop.f32.mrb[0].mxu0
  %v3630 = vadd.f32 %v3355, %v3629
  %v3631 = vpop.f32.mrb[0].mxu0
  %3632 = vmatprep.mubr.f32.mxu0 0.0
  %v3633 = vand.u32 %v2082, 4294901760
  %3634 = vmatmul.mubr.f32.gmra.mrb[0].mxu0 %v3633
  %v3635 = vpop.f32.mrb[0].mxu0
  %v3636 = vadd.f32 %v3363, %v3635
  %v3637 = vpop.f32.mrb[0].mxu0
  %3638 = vmatprep.mubr.f32.mxu0 0.0
  %v3639 = vand.u32 %v2085, 4294901760
  %3640 = vmatmul.mubr.f32.gmra.mrb[0].mxu0 %v3639
  %v3641 = vpop.f32.mrb[0].mxu0
  %v3642 = vadd.f32 %v3371, %v3641
  %v3643 = vpop.f32.mrb[0].mxu0
  %3644 = vmatprep.mubr.f32.mxu0 0.0
  %v3645 = vand.u32 %v2088, 4294901760
  %3646 = vmatmul.mubr.f32.gmra.mrb[0].mxu0 %v3645
  %v3647 = vpop.f32.mrb[0].mxu0
  %v3648 = vadd.f32 %v3379, %v3647
  %v3649 = vpop.f32.mrb[0].mxu0
  %3650 = vdwg.mxu0
  %3651 = vmatprep.subr.mxu0 0.0
  %v3652 = vand.u32 %v1986, 4294901760
  %3653 = vmatpush1.msra.mxu0 %v3652
  %3654 = vmatprep.subr.mxu0 0.0
  %v3655 = vand.u32 %v1987, 4294901760
  %3656 = vmatpush1.msra.mxu0 %v3655
  %3657 = vmatprep.subr.mxu0 0.0
  %v3658 = vand.u32 %v1988, 4294901760
  %3659 = vmatpush1.msra.mxu0 %v3658
  %3660 = vmatprep.subr.mxu0 0.0
  %v3661 = vand.u32 %v2092, 4294901760
  %3662 = vmatpush1.msra.mxu0 %v3661
  %3663 = vmatprep.subr.mxu0 0.0
  %3664 = vmatpush1.msra.mxu0 0.0
  %3665 = vmatprep.subr.mxu0 0.0
  %3666 = vmatpush1.msra.mxu0 0.0
  %3667 = vmatprep.subr.mxu0 0.0
  %3668 = vmatpush1.msra.mxu0 0.0
  %3669 = vmatprep.subr.mxu0 0.0
  %3670 = vmatpush1.msra.mxu0 0.0
  %3671 = vmatprep.subr.mxu0 0.0
  %3672 = vmatpush1.msra.mxu0 0.0
  %3673 = vmatprep.subr.mxu0 0.0
  %3674 = vmatpush1.msra.mxu0 0.0
  %3675 = vmatprep.subr.mxu0 0.0
  %3676 = vmatpush1.msra.mxu0 0.0
  %3677 = vmatprep.subr.mxu0 0.0
  %3678 = vmatpush1.msra.mxu0 0.0
  %3679 = vmatprep.subr.mxu0 0.0
  %3680 = vmatpush1.msra.mxu0 0.0
  %3681 = vmatprep.subr.mxu0 0.0
  %3682 = vmatpush1.msra.mxu0 0.0
  %3683 = vmatprep.subr.mxu0 0.0
  %3684 = vmatpush1.msra.mxu0 0.0
  %3685 = vmatprep.subr.mxu0 0.0
  %3686 = vmatpush1.msra.mxu0 0.0
  %3687 = vmatprep.subr.mxu0 0.0
  %3688 = vmatpush1.msra.mxu0 0.0
  %3689 = vmatprep.subr.mxu0 0.0
  %3690 = vmatpush1.msra.mxu0 0.0
  %3691 = vmatprep.subr.mxu0 0.0
  %3692 = vmatpush1.msra.mxu0 0.0
  %3693 = vmatprep.subr.mxu0 0.0
  %3694 = vmatpush1.msra.mxu0 0.0
  %3695 = vmatprep.subr.mxu0 0.0
  %3696 = vmatpush1.msra.mxu0 0.0
  %3697 = vmatprep.subr.mxu0 0.0
  %3698 = vmatpush1.msra.mxu0 0.0
  %3699 = vmatprep.subr.mxu0 0.0
  %3700 = vmatpush1.msra.mxu0 0.0
  %3701 = vmatprep.subr.mxu0 0.0
  %3702 = vmatpush1.msra.mxu0 0.0
  %3703 = vmatprep.subr.mxu0 0.0
  %3704 = vmatpush1.msra.mxu0 0.0
  %3705 = vmatprep.subr.mxu0 0.0
  %3706 = vmatpush1.msra.mxu0 0.0
  %3707 = vmatprep.subr.mxu0 0.0
  %3708 = vmatpush1.msra.mxu0 0.0
  %3709 = vmatprep.subr.mxu0 0.0
  %3710 = vmatpush1.msra.mxu0 0.0
  %3711 = vmatprep.subr.mxu0 0.0
  %3712 = vmatpush1.msra.mxu0 0.0
  %3713 = vmatprep.subr.mxu0 0.0
  %3714 = vmatpush1.msra.mxu0 0.0
  %3715 = vmatprep.subr.mxu0 0.0
  %3716 = vmatpush1.msra.mxu0 0.0
  %3717 = vmatprep.subr.mxu0 0.0
  %3718 = vmatpush1.msra.mxu0 0.0
  %3719 = vmatprep.mubr.f32.mxu0 0.0
  %v3720 = vand.u32 %v1995, 4294901760
  %3721 = vmatmul.mubr.f32.gmra.mrb[0].mxu0 %v3720
  %v3722 = vpop.f32.mrb[0].mxu0
  %v3723 = vadd.f32 %v3462, %v3722
  %v3724 = vpop.f32.mrb[0].mxu0
  %3725 = vmatprep.mubr.f32.mxu0 0.0
  %v3726 = vand.u32 %v1998, 4294901760
  %3727 = vmatmul.mubr.f32.gmra.mrb[0].mxu0 %v3726
  %v3728 = vpop.f32.mrb[0].mxu0
  %v3729 = vadd.f32 %v3468, %v3728
  %v3730 = vpop.f32.mrb[0].mxu0
  %3731 = vmatprep.mubr.f32.mxu0 0.0
  %v3732 = vand.u32 %v2001, 4294901760
  %3733 = vmatmul.mubr.f32.gmra.mrb[0].mxu0 %v3732
  %v3734 = vpop.f32.mrb[0].mxu0
  %v3735 = vadd.f32 %v3474, %v3734
  %v3736 = vpop.f32.mrb[0].mxu0
  %3737 = vmatprep.mubr.f32.mxu0 0.0
  %v3738 = vand.u32 %v2004, 4294901760
  %3739 = vmatmul.mubr.f32.gmra.mrb[0].mxu0 %v3738
  %v3740 = vpop.f32.mrb[0].mxu0
  %v3741 = vadd.f32 %v3480, %v3740
  %v3742 = vpop.f32.mrb[0].mxu0
  %3743 = vmatprep.mubr.f32.mxu0 0.0
  %v3744 = vand.u32 %v2007, 4294901760
  %3745 = vmatmul.mubr.f32.gmra.mrb[0].mxu0 %v3744
  %v3746 = vpop.f32.mrb[0].mxu0
  %v3747 = vadd.f32 %v3486, %v3746
  %v3748 = vpop.f32.mrb[0].mxu0
  %3749 = vmatprep.mubr.f32.mxu0 0.0
  %v3750 = vand.u32 %v2010, 4294901760
  %3751 = vmatmul.mubr.f32.gmra.mrb[0].mxu0 %v3750
  %v3752 = vpop.f32.mrb[0].mxu0
  %v3753 = vadd.f32 %v3492, %v3752
  %v3754 = vpop.f32.mrb[0].mxu0
  %3755 = vmatprep.mubr.f32.mxu0 0.0
  %v3756 = vand.u32 %v2013, 4294901760
  %3757 = vmatmul.mubr.f32.gmra.mrb[0].mxu0 %v3756
  %v3758 = vpop.f32.mrb[0].mxu0
  %v3759 = vadd.f32 %v3498, %v3758
  %v3760 = vpop.f32.mrb[0].mxu0
  %3761 = vmatprep.mubr.f32.mxu0 0.0
  %v3762 = vand.u32 %v2016, 4294901760
  %3763 = vmatmul.mubr.f32.gmra.mrb[0].mxu0 %v3762
  %v3764 = vpop.f32.mrb[0].mxu0
  %v3765 = vadd.f32 %v3504, %v3764
  %v3766 = vpop.f32.mrb[0].mxu0
  %3767 = vmatprep.mubr.f32.mxu0 0.0
  %v3768 = vand.u32 %v2019, 4294901760
  %3769 = vmatmul.mubr.f32.gmra.mrb[0].mxu0 %v3768
  %v3770 = vpop.f32.mrb[0].mxu0
  %v3771 = vadd.f32 %v3510, %v3770
  %v3772 = vpop.f32.mrb[0].mxu0
  %3773 = vmatprep.mubr.f32.mxu0 0.0
  %v3774 = vand.u32 %v2022, 4294901760
  %3775 = vmatmul.mubr.f32.gmra.mrb[0].mxu0 %v3774
  %v3776 = vpop.f32.mrb[0].mxu0
  %v3777 = vadd.f32 %v3516, %v3776
  %v3778 = vpop.f32.mrb[0].mxu0
  %3779 = vmatprep.mubr.f32.mxu0 0.0
  %v3780 = vand.u32 %v2025, 4294901760
  %3781 = vmatmul.mubr.f32.gmra.mrb[0].mxu0 %v3780
  %v3782 = vpop.f32.mrb[0].mxu0
  %v3783 = vadd.f32 %v3522, %v3782
  %v3784 = vpop.f32.mrb[0].mxu0
  %3785 = vmatprep.mubr.f32.mxu0 0.0
  %v3786 = vand.u32 %v2028, 4294901760
  %3787 = vmatmul.mubr.f32.gmra.mrb[0].mxu0 %v3786
  %v3788 = vpop.f32.mrb[0].mxu0
  %v3789 = vadd.f32 %v3528, %v3788
  %v3790 = vpop.f32.mrb[0].mxu0
  %3791 = vmatprep.mubr.f32.mxu0 0.0
  %v3792 = vand.u32 %v2031, 4294901760
  %3793 = vmatmul.mubr.f32.gmra.mrb[0].mxu0 %v3792
  %v3794 = vpop.f32.mrb[0].mxu0
  %v3795 = vadd.f32 %v3534, %v3794
  %v3796 = vpop.f32.mrb[0].mxu0
  %3797 = vmatprep.mubr.f32.mxu0 0.0
  %v3798 = vand.u32 %v2034, 4294901760
  %3799 = vmatmul.mubr.f32.gmra.mrb[0].mxu0 %v3798
  %v3800 = vpop.f32.mrb[0].mxu0
  %v3801 = vadd.f32 %v3540, %v3800
  %v3802 = vpop.f32.mrb[0].mxu0
  %3803 = vmatprep.mubr.f32.mxu0 0.0
  %v3804 = vand.u32 %v2037, 4294901760
  %3805 = vmatmul.mubr.f32.gmra.mrb[0].mxu0 %v3804
  %v3806 = vpop.f32.mrb[0].mxu0
  %v3807 = vadd.f32 %v3546, %v3806
  %v3808 = vpop.f32.mrb[0].mxu0
  %3809 = vmatprep.mubr.f32.mxu0 0.0
  %v3810 = vand.u32 %v2040, 4294901760
  %3811 = vmatmul.mubr.f32.gmra.mrb[0].mxu0 %v3810
  %v3812 = vpop.f32.mrb[0].mxu0
  %v3813 = vadd.f32 %v3552, %v3812
  %v3814 = vpop.f32.mrb[0].mxu0
  %3815 = vmatprep.mubr.f32.mxu0 0.0
  %v3816 = vand.u32 %v2043, 4294901760
  %3817 = vmatmul.mubr.f32.gmra.mrb[0].mxu0 %v3816
  %v3818 = vpop.f32.mrb[0].mxu0
  %v3819 = vadd.f32 %v3558, %v3818
  %v3820 = vpop.f32.mrb[0].mxu0
  %3821 = vmatprep.mubr.f32.mxu0 0.0
  %v3822 = vand.u32 %v2046, 4294901760
  %3823 = vmatmul.mubr.f32.gmra.mrb[0].mxu0 %v3822
  %v3824 = vpop.f32.mrb[0].mxu0
  %v3825 = vadd.f32 %v3564, %v3824
  %v3826 = vpop.f32.mrb[0].mxu0
  %3827 = vmatprep.mubr.f32.mxu0 0.0
  %v3828 = vand.u32 %v2049, 4294901760
  %3829 = vmatmul.mubr.f32.gmra.mrb[0].mxu0 %v3828
  %v3830 = vpop.f32.mrb[0].mxu0
  %v3831 = vadd.f32 %v3570, %v3830
  %v3832 = vpop.f32.mrb[0].mxu0
  %3833 = vmatprep.mubr.f32.mxu0 0.0
  %v3834 = vand.u32 %v2052, 4294901760
  %3835 = vmatmul.mubr.f32.gmra.mrb[0].mxu0 %v3834
  %v3836 = vpop.f32.mrb[0].mxu0
  %v3837 = vadd.f32 %v3576, %v3836
  %v3838 = vpop.f32.mrb[0].mxu0
  %3839 = vmatprep.mubr.f32.mxu0 0.0
  %v3840 = vand.u32 %v2055, 4294901760
  %3841 = vmatmul.mubr.f32.gmra.mrb[0].mxu0 %v3840
  %v3842 = vpop.f32.mrb[0].mxu0
  %v3843 = vadd.f32 %v3582, %v3842
  %v3844 = vpop.f32.mrb[0].mxu0
  %3845 = vmatprep.mubr.f32.mxu0 0.0
  %v3846 = vand.u32 %v2058, 4294901760
  %3847 = vmatmul.mubr.f32.gmra.mrb[0].mxu0 %v3846
  %v3848 = vpop.f32.mrb[0].mxu0
  %v3849 = vadd.f32 %v3588, %v3848
  %v3850 = vpop.f32.mrb[0].mxu0
  %3851 = vmatprep.mubr.f32.mxu0 0.0
  %v3852 = vand.u32 %v2061, 4294901760
  %3853 = vmatmul.mubr.f32.gmra.mrb[0].mxu0 %v3852
  %v3854 = vpop.f32.mrb[0].mxu0
  %v3855 = vadd.f32 %v3594, %v3854
  %v3856 = vpop.f32.mrb[0].mxu0
  %3857 = vmatprep.mubr.f32.mxu0 0.0
  %v3858 = vand.u32 %v2064, 4294901760
  %3859 = vmatmul.mubr.f32.gmra.mrb[0].mxu0 %v3858
  %v3860 = vpop.f32.mrb[0].mxu0
  %v3861 = vadd.f32 %v3600, %v3860
  %v3862 = vpop.f32.mrb[0].mxu0
  %3863 = vmatprep.mubr.f32.mxu0 0.0
  %v3864 = vand.u32 %v2067, 4294901760
  %3865 = vmatmul.mubr.f32.gmra.mrb[0].mxu0 %v3864
  %v3866 = vpop.f32.mrb[0].mxu0
  %v3867 = vadd.f32 %v3606, %v3866
  %v3868 = vpop.f32.mrb[0].mxu0
  %3869 = vmatprep.mubr.f32.mxu0 0.0
  %v3870 = vand.u32 %v2070, 4294901760
  %3871 = vmatmul.mubr.f32.gmra.mrb[0].mxu0 %v3870
  %v3872 = vpop.f32.mrb[0].mxu0
  %v3873 = vadd.f32 %v3612, %v3872
  %v3874 = vpop.f32.mrb[0].mxu0
  %3875 = vmatprep.mubr.f32.mxu0 0.0
  %v3876 = vand.u32 %v2073, 4294901760
  %3877 = vmatmul.mubr.f32.gmra.mrb[0].mxu0 %v3876
  %v3878 = vpop.f32.mrb[0].mxu0
  %v3879 = vadd.f32 %v3618, %v3878
  %v3880 = vpop.f32.mrb[0].mxu0
  %3881 = vmatprep.mubr.f32.mxu0 0.0
  %v3882 = vand.u32 %v2076, 4294901760
  %3883 = vmatmul.mubr.f32.gmra.mrb[0].mxu0 %v3882
  %v3884 = vpop.f32.mrb[0].mxu0
  %v3885 = vadd.f32 %v3624, %v3884
  %v3886 = vpop.f32.mrb[0].mxu0
  %3887 = vmatprep.mubr.f32.mxu0 0.0
  %v3888 = vand.u32 %v2079, 4294901760
  %3889 = vmatmul.mubr.f32.gmra.mrb[0].mxu0 %v3888
  %v3890 = vpop.f32.mrb[0].mxu0
  %v3891 = vadd.f32 %v3630, %v3890
  %v3892 = vpop.f32.mrb[0].mxu0
  %3893 = vmatprep.mubr.f32.mxu0 0.0
  %v3894 = vand.u32 %v2082, 4294901760
  %3895 = vmatmul.mubr.f32.gmra.mrb[0].mxu0 %v3894
  %v3896 = vpop.f32.mrb[0].mxu0
  %v3897 = vadd.f32 %v3636, %v3896
  %v3898 = vpop.f32.mrb[0].mxu0
  %3899 = vmatprep.mubr.f32.mxu0 0.0
  %v3900 = vand.u32 %v2085, 4294901760
  %3901 = vmatmul.mubr.f32.gmra.mrb[0].mxu0 %v3900
  %v3902 = vpop.f32.mrb[0].mxu0
  %v3903 = vadd.f32 %v3642, %v3902
  %v3904 = vpop.f32.mrb[0].mxu0
  %3905 = vmatprep.mubr.f32.mxu0 0.0
  %v3906 = vand.u32 %v2088, 4294901760
  %3907 = vmatmul.mubr.f32.gmra.mrb[0].mxu0 %v3906
  %v3908 = vpop.f32.mrb[0].mxu0
  %v3909 = vadd.f32 %v3648, %v3908
  %v3910 = vpop.f32.mrb[0].mxu0
  %3911 = vdwg.mxu0
  %vm3912 = vcmask 130048
  %3913 = vst.msk [vmem:[%s4] sm:$0xff] %vm3912, %v3723
  %3914 = vst.msk [vmem:[%s4 + $0x8] sm:$0xff] %vm3912, %v3729
  %3915 = vst.msk [vmem:[%s4 + $0x10] sm:$0xff] %vm3912, %v3735
  %3916 = vst.msk [vmem:[%s4 + $0x18] sm:$0xff] %vm3912, %v3741
  %3917 = vst.msk [vmem:[%s4 + $0x20] sm:$0xff] %vm3912, %v3747
  %3918 = vst.msk [vmem:[%s4 + $0x28] sm:$0xff] %vm3912, %v3753
  %3919 = vst.msk [vmem:[%s4 + $0x30] sm:$0xff] %vm3912, %v3759
  %3920 = vst.msk [vmem:[%s4 + $0x38] sm:$0xff] %vm3912, %v3765
  %3921 = vst.msk [vmem:[%s4 + $0x40] sm:$0xff] %vm3912, %v3771
  %3922 = vst.msk [vmem:[%s4 + $0x48] sm:$0xff] %vm3912, %v3777
  %3923 = vst.msk [vmem:[%s4 + $0x50] sm:$0xff] %vm3912, %v3783
  %3924 = vst.msk [vmem:[%s4 + $0x58] sm:$0xff] %vm3912, %v3789
  %3925 = vst.msk [vmem:[%s4 + $0x60] sm:$0xff] %vm3912, %v3795
  %3926 = vst.msk [vmem:[%s4 + $0x68] sm:$0xff] %vm3912, %v3801
  %3927 = vst.msk [vmem:[%s4 + $0x70] sm:$0xff] %vm3912, %v3807
  %3928 = vst.msk [vmem:[%s4 + $0x78] sm:$0xff] %vm3912, %v3813
  %3929 = vst.msk [vmem:[%s4 + $0x80] sm:$0xff] %vm3912, %v3819
  %3930 = vst.msk [vmem:[%s4 + $0x88] sm:$0xff] %vm3912, %v3825
  %3931 = vst.msk [vmem:[%s4 + $0x90] sm:$0xff] %vm3912, %v3831
  %3932 = vst.msk [vmem:[%s4 + $0x98] sm:$0xff] %vm3912, %v3837
  %3933 = vst.msk [vmem:[%s4 + $0xa0] sm:$0xff] %vm3912, %v3843
  %3934 = vst.msk [vmem:[%s4 + $0xa8] sm:$0xff] %vm3912, %v3849
  %3935 = vst.msk [vmem:[%s4 + $0xb0] sm:$0xff] %vm3912, %v3855
  %3936 = vst.msk [vmem:[%s4 + $0xb8] sm:$0xff] %vm3912, %v3861
  %3937 = vst.msk [vmem:[%s4 + $0xc0] sm:$0xff] %vm3912, %v3867
  %3938 = vst.msk [vmem:[%s4 + $0xc8] sm:$0xff] %vm3912, %v3873
  %3939 = vst.msk [vmem:[%s4 + $0xd0] sm:$0xff] %vm3912, %v3879
  %3940 = vst.msk [vmem:[%s4 + $0xd8] sm:$0xff] %vm3912, %v3885
  %3941 = vst.msk [vmem:[%s4 + $0xe0] sm:$0xff] %vm3912, %v3891
  %3942 = vst.msk [vmem:[%s4 + $0xe8] sm:$0xff] %vm3912, %v3897
  %3943 = vst.msk [vmem:[%s4 + $0xf0] sm:$0xff] %vm3912, %v3903
  %3944 = vst.msk [vmem:[%s4 + $0xf8] sm:$0xff] %vm3912, %v3909
  %3977 = vrot.lane.b32.xlu0 %v3723, 112
  %v3978 = vpop.permute.xlu0 %3977
  %3979 = vrot.lane.b32.xlu0 %v3729, 112
  %v3980 = vpop.permute.xlu0 %3979
  %3981 = vrot.lane.b32.xlu0 %v3735, 112
  %v3982 = vpop.permute.xlu0 %3981
  %3983 = vrot.lane.b32.xlu0 %v3741, 112
  %v3984 = vpop.permute.xlu0 %3983
  %3985 = vrot.lane.b32.xlu0 %v3747, 112
  %v3986 = vpop.permute.xlu0 %3985
  %3987 = vrot.lane.b32.xlu0 %v3753, 112
  %v3988 = vpop.permute.xlu0 %3987
  %3989 = vrot.lane.b32.xlu0 %v3759, 112
  %v3990 = vpop.permute.xlu0 %3989
  %3991 = vrot.lane.b32.xlu0 %v3765, 112
  %v3992 = vpop.permute.xlu0 %3991
  %3993 = vrot.lane.b32.xlu0 %v3771, 112
  %v3994 = vpop.permute.xlu0 %3993
  %3995 = vrot.lane.b32.xlu0 %v3777, 112
  %v3996 = vpop.permute.xlu0 %3995
  %3997 = vrot.lane.b32.xlu0 %v3783, 112
  %v3998 = vpop.permute.xlu0 %3997
  %3999 = vrot.lane.b32.xlu0 %v3789, 112
  %v4000 = vpop.permute.xlu0 %3999
  %4001 = vrot.lane.b32.xlu0 %v3795, 112
  %v4002 = vpop.permute.xlu0 %4001
  %4003 = vrot.lane.b32.xlu0 %v3801, 112
  %v4004 = vpop.permute.xlu0 %4003
  %4005 = vrot.lane.b32.xlu0 %v3807, 112
  %v4006 = vpop.permute.xlu0 %4005
  %4007 = vrot.lane.b32.xlu0 %v3813, 112
  %v4008 = vpop.permute.xlu0 %4007
  %4009 = vrot.lane.b32.xlu0 %v3819, 112
  %v4010 = vpop.permute.xlu0 %4009
  %4011 = vrot.lane.b32.xlu0 %v3825, 112
  %v4012 = vpop.permute.xlu0 %4011
  %4013 = vrot.lane.b32.xlu0 %v3831, 112
  %v4014 = vpop.permute.xlu0 %4013
  %4015 = vrot.lane.b32.xlu0 %v3837, 112
  %v4016 = vpop.permute.xlu0 %4015
  %4017 = vrot.lane.b32.xlu0 %v3843, 112
  %v4018 = vpop.permute.xlu0 %4017
  %4019 = vrot.lane.b32.xlu0 %v3849, 112
  %v4020 = vpop.permute.xlu0 %4019
  %4021 = vrot.lane.b32.xlu0 %v3855, 112
  %v4022 = vpop.permute.xlu0 %4021
  %4023 = vrot.lane.b32.xlu0 %v3861, 112
  %v4024 = vpop.permute.xlu0 %4023
  %4025 = vrot.lane.b32.xlu0 %v3867, 112
  %v4026 = vpop.permute.xlu0 %4025
  %4027 = vrot.lane.b32.xlu0 %v3873, 112
  %v4028 = vpop.permute.xlu0 %4027
  %4029 = vrot.lane.b32.xlu0 %v3879, 112
  %v4030 = vpop.permute.xlu0 %4029
  %4031 = vrot.lane.b32.xlu0 %v3885, 112
  %v4032 = vpop.permute.xlu0 %4031
  %4033 = vrot.lane.b32.xlu0 %v3891, 112
  %v4034 = vpop.permute.xlu0 %4033
  %4035 = vrot.lane.b32.xlu0 %v3897, 112
  %v4036 = vpop.permute.xlu0 %4035
  %4037 = vrot.lane.b32.xlu0 %v3903, 112
  %v4038 = vpop.permute.xlu0 %4037
  %4039 = vrot.lane.b32.xlu0 %v3909, 112
  %v4040 = vpop.permute.xlu0 %4039
  %4073 = vst.msk [vmem:[%s5] sm:$0xff] %vm3912, %v3978
  %4074 = vst.msk [vmem:[%s5 + $0x8] sm:$0xff] %vm3912, %v3980
  %4075 = vst.msk [vmem:[%s5 + $0x10] sm:$0xff] %vm3912, %v3982
  %4076 = vst.msk [vmem:[%s5 + $0x18] sm:$0xff] %vm3912, %v3984
  %4077 = vst.msk [vmem:[%s5 + $0x20] sm:$0xff] %vm3912, %v3986
  %4078 = vst.msk [vmem:[%s5 + $0x28] sm:$0xff] %vm3912, %v3988
  %4079 = vst.msk [vmem:[%s5 + $0x30] sm:$0xff] %vm3912, %v3990
  %4080 = vst.msk [vmem:[%s5 + $0x38] sm:$0xff] %vm3912, %v3992
  %4081 = vst.msk [vmem:[%s5 + $0x40] sm:$0xff] %vm3912, %v3994
  %4082 = vst.msk [vmem:[%s5 + $0x48] sm:$0xff] %vm3912, %v3996
  %4083 = vst.msk [vmem:[%s5 + $0x50] sm:$0xff] %vm3912, %v3998
  %4084 = vst.msk [vmem:[%s5 + $0x58] sm:$0xff] %vm3912, %v4000
  %4085 = vst.msk [vmem:[%s5 + $0x60] sm:$0xff] %vm3912, %v4002
  %4086 = vst.msk [vmem:[%s5 + $0x68] sm:$0xff] %vm3912, %v4004
  %4087 = vst.msk [vmem:[%s5 + $0x70] sm:$0xff] %vm3912, %v4006
  %4088 = vst.msk [vmem:[%s5 + $0x78] sm:$0xff] %vm3912, %v4008
  %4089 = vst.msk [vmem:[%s5 + $0x80] sm:$0xff] %vm3912, %v4010
  %4090 = vst.msk [vmem:[%s5 + $0x88] sm:$0xff] %vm3912, %v4012
  %4091 = vst.msk [vmem:[%s5 + $0x90] sm:$0xff] %vm3912, %v4014
  %4092 = vst.msk [vmem:[%s5 + $0x98] sm:$0xff] %vm3912, %v4016
  %4093 = vst.msk [vmem:[%s5 + $0xa0] sm:$0xff] %vm3912, %v4018
  %4094 = vst.msk [vmem:[%s5 + $0xa8] sm:$0xff] %vm3912, %v4020
  %4095 = vst.msk [vmem:[%s5 + $0xb0] sm:$0xff] %vm3912, %v4022
  %4096 = vst.msk [vmem:[%s5 + $0xb8] sm:$0xff] %vm3912, %v4024
  %4097 = vst.msk [vmem:[%s5 + $0xc0] sm:$0xff] %vm3912, %v4026
  %4098 = vst.msk [vmem:[%s5 + $0xc8] sm:$0xff] %vm3912, %v4028
  %4099 = vst.msk [vmem:[%s5 + $0xd0] sm:$0xff] %vm3912, %v4030
  %4100 = vst.msk [vmem:[%s5 + $0xd8] sm:$0xff] %vm3912, %v4032
  %4101 = vst.msk [vmem:[%s5 + $0xe0] sm:$0xff] %vm3912, %v4034
  %4102 = vst.msk [vmem:[%s5 + $0xe8] sm:$0xff] %vm3912, %v4036
  %4103 = vst.msk [vmem:[%s5 + $0xf0] sm:$0xff] %vm3912, %v4038
  %4104 = vst.msk [vmem:[%s5 + $0xf8] sm:$0xff] %vm3912, %v4040
  %vm4105 = vcmask 392448
  %v4106 = vsel %vm4105, %v3723, -inf
  %4107 = vmax.xlane.f32.xlu0 %v4106
  %v4108 = vpop.xlane.xlu0 %4107
  %v4109 = vsel %vm4105, %v3729, -inf
  %4110 = vmax.xlane.f32.xlu0 %v4109
  %v4111 = vpop.xlane.xlu0 %4110
  %v4112 = vsel %vm4105, %v3735, -inf
  %4113 = vmax.xlane.f32.xlu0 %v4112
  %v4114 = vpop.xlane.xlu0 %4113
  %v4115 = vsel %vm4105, %v3741, -inf
  %4116 = vmax.xlane.f32.xlu0 %v4115
  %v4117 = vpop.xlane.xlu0 %4116
  %v4118 = vsel %vm4105, %v3747, -inf
  %4119 = vmax.xlane.f32.xlu0 %v4118
  %v4120 = vpop.xlane.xlu0 %4119
  %v4121 = vsel %vm4105, %v3753, -inf
  %4122 = vmax.xlane.f32.xlu0 %v4121
  %v4123 = vpop.xlane.xlu0 %4122
  %v4124 = vsel %vm4105, %v3759, -inf
  %4125 = vmax.xlane.f32.xlu0 %v4124
  %v4126 = vpop.xlane.xlu0 %4125
  %v4127 = vsel %vm4105, %v3765, -inf
  %4128 = vmax.xlane.f32.xlu0 %v4127
  %v4129 = vpop.xlane.xlu0 %4128
  %v4130 = vsel %vm4105, %v3771, -inf
  %4131 = vmax.xlane.f32.xlu0 %v4130
  %v4132 = vpop.xlane.xlu0 %4131
  %v4133 = vsel %vm4105, %v3777, -inf
  %4134 = vmax.xlane.f32.xlu0 %v4133
  %v4135 = vpop.xlane.xlu0 %4134
  %v4136 = vsel %vm4105, %v3783, -inf
  %4137 = vmax.xlane.f32.xlu0 %v4136
  %v4138 = vpop.xlane.xlu0 %4137
  %v4139 = vsel %vm4105, %v3789, -inf
  %4140 = vmax.xlane.f32.xlu0 %v4139
  %v4141 = vpop.xlane.xlu0 %4140
  %v4142 = vsel %vm4105, %v3795, -inf
  %4143 = vmax.xlane.f32.xlu0 %v4142
  %v4144 = vpop.xlane.xlu0 %4143
  %v4145 = vsel %vm4105, %v3801, -inf
  %4146 = vmax.xlane.f32.xlu0 %v4145
  %v4147 = vpop.xlane.xlu0 %4146
  %v4148 = vsel %vm4105, %v3807, -inf
  %4149 = vmax.xlane.f32.xlu0 %v4148
  %v4150 = vpop.xlane.xlu0 %4149
  %v4151 = vsel %vm4105, %v3813, -inf
  %4152 = vmax.xlane.f32.xlu0 %v4151
  %v4153 = vpop.xlane.xlu0 %4152
  %v4154 = vsel %vm4105, %v3819, -inf
  %4155 = vmax.xlane.f32.xlu0 %v4154
  %v4156 = vpop.xlane.xlu0 %4155
  %v4157 = vsel %vm4105, %v3825, -inf
  %4158 = vmax.xlane.f32.xlu0 %v4157
  %v4159 = vpop.xlane.xlu0 %4158
  %v4160 = vsel %vm4105, %v3831, -inf
  %4161 = vmax.xlane.f32.xlu0 %v4160
  %v4162 = vpop.xlane.xlu0 %4161
  %v4163 = vsel %vm4105, %v3837, -inf
  %4164 = vmax.xlane.f32.xlu0 %v4163
  %v4165 = vpop.xlane.xlu0 %4164
  %v4166 = vsel %vm4105, %v3843, -inf
  %4167 = vmax.xlane.f32.xlu0 %v4166
  %v4168 = vpop.xlane.xlu0 %4167
  %v4169 = vsel %vm4105, %v3849, -inf
  %4170 = vmax.xlane.f32.xlu0 %v4169
  %v4171 = vpop.xlane.xlu0 %4170
  %v4172 = vsel %vm4105, %v3855, -inf
  %4173 = vmax.xlane.f32.xlu0 %v4172
  %v4174 = vpop.xlane.xlu0 %4173
  %v4175 = vsel %vm4105, %v3861, -inf
  %4176 = vmax.xlane.f32.xlu0 %v4175
  %v4177 = vpop.xlane.xlu0 %4176
  %v4178 = vsel %vm4105, %v3867, -inf
  %4179 = vmax.xlane.f32.xlu0 %v4178
  %v4180 = vpop.xlane.xlu0 %4179
  %v4181 = vsel %vm4105, %v3873, -inf
  %4182 = vmax.xlane.f32.xlu0 %v4181
  %v4183 = vpop.xlane.xlu0 %4182
  %v4184 = vsel %vm4105, %v3879, -inf
  %4185 = vmax.xlane.f32.xlu0 %v4184
  %v4186 = vpop.xlane.xlu0 %4185
  %v4187 = vsel %vm4105, %v3885, -inf
  %4188 = vmax.xlane.f32.xlu0 %v4187
  %v4189 = vpop.xlane.xlu0 %4188
  %v4190 = vsel %vm4105, %v3891, -inf
  %4191 = vmax.xlane.f32.xlu0 %v4190
  %v4192 = vpop.xlane.xlu0 %4191
  %v4193 = vsel %vm4105, %v3897, -inf
  %4194 = vmax.xlane.f32.xlu0 %v4193
  %v4195 = vpop.xlane.xlu0 %4194
  %v4196 = vsel %vm4105, %v3903, -inf
  %4197 = vmax.xlane.f32.xlu0 %v4196
  %v4198 = vpop.xlane.xlu0 %4197
  %v4199 = vsel %vm4105, %v3909, -inf
  %4200 = vmax.xlane.f32.xlu0 %v4199
  %v4201 = vpop.xlane.xlu0 %4200
  %v4202 = vsub.f32 %v3723, %v4108
  %v4203 = vsub.f32 %v3729, %v4111
  %v4204 = vsub.f32 %v3735, %v4114
  %v4205 = vsub.f32 %v3741, %v4117
  %v4206 = vsub.f32 %v3747, %v4120
  %v4207 = vsub.f32 %v3753, %v4123
  %v4208 = vsub.f32 %v3759, %v4126
  %v4209 = vsub.f32 %v3765, %v4129
  %v4210 = vsub.f32 %v3771, %v4132
  %v4211 = vsub.f32 %v3777, %v4135
  %v4212 = vsub.f32 %v3783, %v4138
  %v4213 = vsub.f32 %v3789, %v4141
  %v4214 = vsub.f32 %v3795, %v4144
  %v4215 = vsub.f32 %v3801, %v4147
  %v4216 = vsub.f32 %v3807, %v4150
  %v4217 = vsub.f32 %v3813, %v4153
  %v4218 = vsub.f32 %v3819, %v4156
  %v4219 = vsub.f32 %v3825, %v4159
  %v4220 = vsub.f32 %v3831, %v4162
  %v4221 = vsub.f32 %v3837, %v4165
  %v4222 = vsub.f32 %v3843, %v4168
  %v4223 = vsub.f32 %v3849, %v4171
  %v4224 = vsub.f32 %v3855, %v4174
  %v4225 = vsub.f32 %v3861, %v4177
  %v4226 = vsub.f32 %v3867, %v4180
  %v4227 = vsub.f32 %v3873, %v4183
  %v4228 = vsub.f32 %v3879, %v4186
  %v4229 = vsub.f32 %v3885, %v4189
  %v4230 = vsub.f32 %v3891, %v4192
  %v4231 = vsub.f32 %v3897, %v4195
  %v4232 = vsub.f32 %v3903, %v4198
  %v4233 = vsub.f32 %v3909, %v4201
  %v4234 = vmul.f32 %v4202, 1.442695
  %v4235 = vpow.pop %v4234
  %v4236 = vmul.f32 %v4203, 1.442695
  %v4237 = vpow.pop %v4236
  %v4238 = vmul.f32 %v4204, 1.442695
  %v4239 = vpow.pop %v4238
  %v4240 = vmul.f32 %v4205, 1.442695
  %v4241 = vpow.pop %v4240
  %v4242 = vmul.f32 %v4206, 1.442695
  %v4243 = vpow.pop %v4242
  %v4244 = vmul.f32 %v4207, 1.442695
  %v4245 = vpow.pop %v4244
  %v4246 = vmul.f32 %v4208, 1.442695
  %v4247 = vpow.pop %v4246
  %v4248 = vmul.f32 %v4209, 1.442695
  %v4249 = vpow.pop %v4248
  %v4250 = vmul.f32 %v4210, 1.442695
  %v4251 = vpow.pop %v4250
  %v4252 = vmul.f32 %v4211, 1.442695
  %v4253 = vpow.pop %v4252
  %v4254 = vmul.f32 %v4212, 1.442695
  %v4255 = vpow.pop %v4254
  %v4256 = vmul.f32 %v4213, 1.442695
  %v4257 = vpow.pop %v4256
  %v4258 = vmul.f32 %v4214, 1.442695
  %v4259 = vpow.pop %v4258
  %v4260 = vmul.f32 %v4215, 1.442695
  %v4261 = vpow.pop %v4260
  %v4262 = vmul.f32 %v4216, 1.442695
  %v4263 = vpow.pop %v4262
  %v4264 = vmul.f32 %v4217, 1.442695
  %v4265 = vpow.pop %v4264
  %v4266 = vmul.f32 %v4218, 1.442695
  %v4267 = vpow.pop %v4266
  %v4268 = vmul.f32 %v4219, 1.442695
  %v4269 = vpow.pop %v4268
  %v4270 = vmul.f32 %v4220, 1.442695
  %v4271 = vpow.pop %v4270
  %v4272 = vmul.f32 %v4221, 1.442695
  %v4273 = vpow.pop %v4272
  %v4274 = vmul.f32 %v4222, 1.442695
  %v4275 = vpow.pop %v4274
  %v4276 = vmul.f32 %v4223, 1.442695
  %v4277 = vpow.pop %v4276
  %v4278 = vmul.f32 %v4224, 1.442695
  %v4279 = vpow.pop %v4278
  %v4280 = vmul.f32 %v4225, 1.442695
  %v4281 = vpow.pop %v4280
  %v4282 = vmul.f32 %v4226, 1.442695
  %v4283 = vpow.pop %v4282
  %v4284 = vmul.f32 %v4227, 1.442695
  %v4285 = vpow.pop %v4284
  %v4286 = vmul.f32 %v4228, 1.442695
  %v4287 = vpow.pop %v4286
  %v4288 = vmul.f32 %v4229, 1.442695
  %v4289 = vpow.pop %v4288
  %v4290 = vmul.f32 %v4230, 1.442695
  %v4291 = vpow.pop %v4290
  %v4292 = vmul.f32 %v4231, 1.442695
  %v4293 = vpow.pop %v4292
  %v4294 = vmul.f32 %v4232, 1.442695
  %v4295 = vpow.pop %v4294
  %v4296 = vmul.f32 %v4233, 1.442695
  %v4297 = vpow.pop %v4296
  %4330 = vrot.lane.b32.xlu0 %v4235, 96
  %v4331 = vpop.permute.xlu0 %4330
  %4332 = vrot.lane.b32.xlu0 %v4237, 96
  %v4333 = vpop.permute.xlu0 %4332
  %4334 = vrot.lane.b32.xlu0 %v4239, 96
  %v4335 = vpop.permute.xlu0 %4334
  %4336 = vrot.lane.b32.xlu0 %v4241, 96
  %v4337 = vpop.permute.xlu0 %4336
  %4338 = vrot.lane.b32.xlu0 %v4243, 96
  %v4339 = vpop.permute.xlu0 %4338
  %4340 = vrot.lane.b32.xlu0 %v4245, 96
  %v4341 = vpop.permute.xlu0 %4340
  %4342 = vrot.lane.b32.xlu0 %v4247, 96
  %v4343 = vpop.permute.xlu0 %4342
  %4344 = vrot.lane.b32.xlu0 %v4249, 96
  %v4345 = vpop.permute.xlu0 %4344
  %4346 = vrot.lane.b32.xlu0 %v4251, 96
  %v4347 = vpop.permute.xlu0 %4346
  %4348 = vrot.lane.b32.xlu0 %v4253, 96
  %v4349 = vpop.permute.xlu0 %4348
  %4350 = vrot.lane.b32.xlu0 %v4255, 96
  %v4351 = vpop.permute.xlu0 %4350
  %4352 = vrot.lane.b32.xlu0 %v4257, 96
  %v4353 = vpop.permute.xlu0 %4352
  %4354 = vrot.lane.b32.xlu0 %v4259, 96
  %v4355 = vpop.permute.xlu0 %4354
  %4356 = vrot.lane.b32.xlu0 %v4261, 96
  %v4357 = vpop.permute.xlu0 %4356
  %4358 = vrot.lane.b32.xlu0 %v4263, 96
  %v4359 = vpop.permute.xlu0 %4358
  %4360 = vrot.lane.b32.xlu0 %v4265, 96
  %v4361 = vpop.permute.xlu0 %4360
  %4362 = vrot.lane.b32.xlu0 %v4267, 96
  %v4363 = vpop.permute.xlu0 %4362
  %4364 = vrot.lane.b32.xlu0 %v4269, 96
  %v4365 = vpop.permute.xlu0 %4364
  %4366 = vrot.lane.b32.xlu0 %v4271, 96
  %v4367 = vpop.permute.xlu0 %4366
  %4368 = vrot.lane.b32.xlu0 %v4273, 96
  %v4369 = vpop.permute.xlu0 %4368
  %4370 = vrot.lane.b32.xlu0 %v4275, 96
  %v4371 = vpop.permute.xlu0 %4370
  %4372 = vrot.lane.b32.xlu0 %v4277, 96
  %v4373 = vpop.permute.xlu0 %4372
  %4374 = vrot.lane.b32.xlu0 %v4279, 96
  %v4375 = vpop.permute.xlu0 %4374
  %4376 = vrot.lane.b32.xlu0 %v4281, 96
  %v4377 = vpop.permute.xlu0 %4376
  %4378 = vrot.lane.b32.xlu0 %v4283, 96
  %v4379 = vpop.permute.xlu0 %4378
  %4380 = vrot.lane.b32.xlu0 %v4285, 96
  %v4381 = vpop.permute.xlu0 %4380
  %4382 = vrot.lane.b32.xlu0 %v4287, 96
  %v4383 = vpop.permute.xlu0 %4382
  %4384 = vrot.lane.b32.xlu0 %v4289, 96
  %v4385 = vpop.permute.xlu0 %4384
  %4386 = vrot.lane.b32.xlu0 %v4291, 96
  %v4387 = vpop.permute.xlu0 %4386
  %4388 = vrot.lane.b32.xlu0 %v4293, 96
  %v4389 = vpop.permute.xlu0 %4388
  %4390 = vrot.lane.b32.xlu0 %v4295, 96
  %v4391 = vpop.permute.xlu0 %4390
  %4392 = vrot.lane.b32.xlu0 %v4297, 96
  %v4393 = vpop.permute.xlu0 %4392
  %v4426 = vsel %vm3912, %v4331, 0.0
  %4427 = vadd.xlane.f32.xlu0 %v4426
  %v4428 = vpop.xlane.xlu0 %4427
  %v4429 = vsel %vm3912, %v4333, 0.0
  %4430 = vadd.xlane.f32.xlu0 %v4429
  %v4431 = vpop.xlane.xlu0 %4430
  %v4432 = vsel %vm3912, %v4335, 0.0
  %4433 = vadd.xlane.f32.xlu0 %v4432
  %v4434 = vpop.xlane.xlu0 %4433
  %v4435 = vsel %vm3912, %v4337, 0.0
  %4436 = vadd.xlane.f32.xlu0 %v4435
  %v4437 = vpop.xlane.xlu0 %4436
  %v4438 = vsel %vm3912, %v4339, 0.0
  %4439 = vadd.xlane.f32.xlu0 %v4438
  %v4440 = vpop.xlane.xlu0 %4439
  %v4441 = vsel %vm3912, %v4341, 0.0
  %4442 = vadd.xlane.f32.xlu0 %v4441
  %v4443 = vpop.xlane.xlu0 %4442
  %v4444 = vsel %vm3912, %v4343, 0.0
  %4445 = vadd.xlane.f32.xlu0 %v4444
  %v4446 = vpop.xlane.xlu0 %4445
  %v4447 = vsel %vm3912, %v4345, 0.0
  %4448 = vadd.xlane.f32.xlu0 %v4447
  %v4449 = vpop.xlane.xlu0 %4448
  %v4450 = vsel %vm3912, %v4347, 0.0
  %4451 = vadd.xlane.f32.xlu0 %v4450
  %v4452 = vpop.xlane.xlu0 %4451
  %v4453 = vsel %vm3912, %v4349, 0.0
  %4454 = vadd.xlane.f32.xlu0 %v4453
  %v4455 = vpop.xlane.xlu0 %4454
  %v4456 = vsel %vm3912, %v4351, 0.0
  %4457 = vadd.xlane.f32.xlu0 %v4456
  %v4458 = vpop.xlane.xlu0 %4457
  %v4459 = vsel %vm3912, %v4353, 0.0
  %4460 = vadd.xlane.f32.xlu0 %v4459
  %v4461 = vpop.xlane.xlu0 %4460
  %v4462 = vsel %vm3912, %v4355, 0.0
  %4463 = vadd.xlane.f32.xlu0 %v4462
  %v4464 = vpop.xlane.xlu0 %4463
  %v4465 = vsel %vm3912, %v4357, 0.0
  %4466 = vadd.xlane.f32.xlu0 %v4465
  %v4467 = vpop.xlane.xlu0 %4466
  %v4468 = vsel %vm3912, %v4359, 0.0
  %4469 = vadd.xlane.f32.xlu0 %v4468
  %v4470 = vpop.xlane.xlu0 %4469
  %v4471 = vsel %vm3912, %v4361, 0.0
  %4472 = vadd.xlane.f32.xlu0 %v4471
  %v4473 = vpop.xlane.xlu0 %4472
  %v4474 = vsel %vm3912, %v4363, 0.0
  %4475 = vadd.xlane.f32.xlu0 %v4474
  %v4476 = vpop.xlane.xlu0 %4475
  %v4477 = vsel %vm3912, %v4365, 0.0
  %4478 = vadd.xlane.f32.xlu0 %v4477
  %v4479 = vpop.xlane.xlu0 %4478
  %v4480 = vsel %vm3912, %v4367, 0.0
  %4481 = vadd.xlane.f32.xlu0 %v4480
  %v4482 = vpop.xlane.xlu0 %4481
  %v4483 = vsel %vm3912, %v4369, 0.0
  %4484 = vadd.xlane.f32.xlu0 %v4483
  %v4485 = vpop.xlane.xlu0 %4484
  %v4486 = vsel %vm3912, %v4371, 0.0
  %4487 = vadd.xlane.f32.xlu0 %v4486
  %v4488 = vpop.xlane.xlu0 %4487
  %v4489 = vsel %vm3912, %v4373, 0.0
  %4490 = vadd.xlane.f32.xlu0 %v4489
  %v4491 = vpop.xlane.xlu0 %4490
  %v4492 = vsel %vm3912, %v4375, 0.0
  %4493 = vadd.xlane.f32.xlu0 %v4492
  %v4494 = vpop.xlane.xlu0 %4493
  %v4495 = vsel %vm3912, %v4377, 0.0
  %4496 = vadd.xlane.f32.xlu0 %v4495
  %v4497 = vpop.xlane.xlu0 %4496
  %v4498 = vsel %vm3912, %v4379, 0.0
  %4499 = vadd.xlane.f32.xlu0 %v4498
  %v4500 = vpop.xlane.xlu0 %4499
  %v4501 = vsel %vm3912, %v4381, 0.0
  %4502 = vadd.xlane.f32.xlu0 %v4501
  %v4503 = vpop.xlane.xlu0 %4502
  %v4504 = vsel %vm3912, %v4383, 0.0
  %4505 = vadd.xlane.f32.xlu0 %v4504
  %v4506 = vpop.xlane.xlu0 %4505
  %v4507 = vsel %vm3912, %v4385, 0.0
  %4508 = vadd.xlane.f32.xlu0 %v4507
  %v4509 = vpop.xlane.xlu0 %4508
  %v4510 = vsel %vm3912, %v4387, 0.0
  %4511 = vadd.xlane.f32.xlu0 %v4510
  %v4512 = vpop.xlane.xlu0 %4511
  %v4513 = vsel %vm3912, %v4389, 0.0
  %4514 = vadd.xlane.f32.xlu0 %v4513
  %v4515 = vpop.xlane.xlu0 %4514
  %v4516 = vsel %vm3912, %v4391, 0.0
  %4517 = vadd.xlane.f32.xlu0 %v4516
  %v4518 = vpop.xlane.xlu0 %4517
  %v4519 = vsel %vm3912, %v4393, 0.0
  %4520 = vadd.xlane.f32.xlu0 %v4519
  %v4521 = vpop.xlane.xlu0 %4520
  %v4522 = vrcp.pop %v4428
  %v4523 = vmul.f32 %v4235, %v4522
  %v4524 = vrcp.pop %v4431
  %v4525 = vmul.f32 %v4237, %v4524
  %v4526 = vrcp.pop %v4434
  %v4527 = vmul.f32 %v4239, %v4526
  %v4528 = vrcp.pop %v4437
  %v4529 = vmul.f32 %v4241, %v4528
  %v4530 = vrcp.pop %v4440
  %v4531 = vmul.f32 %v4243, %v4530
  %v4532 = vrcp.pop %v4443
  %v4533 = vmul.f32 %v4245, %v4532
  %v4534 = vrcp.pop %v4446
  %v4535 = vmul.f32 %v4247, %v4534
  %v4536 = vrcp.pop %v4449
  %v4537 = vmul.f32 %v4249, %v4536
  %v4538 = vrcp.pop %v4452
  %v4539 = vmul.f32 %v4251, %v4538
  %v4540 = vrcp.pop %v4455
  %v4541 = vmul.f32 %v4253, %v4540
  %v4542 = vrcp.pop %v4458
  %v4543 = vmul.f32 %v4255, %v4542
  %v4544 = vrcp.pop %v4461
  %v4545 = vmul.f32 %v4257, %v4544
  %v4546 = vrcp.pop %v4464
  %v4547 = vmul.f32 %v4259, %v4546
  %v4548 = vrcp.pop %v4467
  %v4549 = vmul.f32 %v4261, %v4548
  %v4550 = vrcp.pop %v4470
  %v4551 = vmul.f32 %v4263, %v4550
  %v4552 = vrcp.pop %v4473
  %v4553 = vmul.f32 %v4265, %v4552
  %v4554 = vrcp.pop %v4476
  %v4555 = vmul.f32 %v4267, %v4554
  %v4556 = vrcp.pop %v4479
  %v4557 = vmul.f32 %v4269, %v4556
  %v4558 = vrcp.pop %v4482
  %v4559 = vmul.f32 %v4271, %v4558
  %v4560 = vrcp.pop %v4485
  %v4561 = vmul.f32 %v4273, %v4560
  %v4562 = vrcp.pop %v4488
  %v4563 = vmul.f32 %v4275, %v4562
  %v4564 = vrcp.pop %v4491
  %v4565 = vmul.f32 %v4277, %v4564
  %v4566 = vrcp.pop %v4494
  %v4567 = vmul.f32 %v4279, %v4566
  %v4568 = vrcp.pop %v4497
  %v4569 = vmul.f32 %v4281, %v4568
  %v4570 = vrcp.pop %v4500
  %v4571 = vmul.f32 %v4283, %v4570
  %v4572 = vrcp.pop %v4503
  %v4573 = vmul.f32 %v4285, %v4572
  %v4574 = vrcp.pop %v4506
  %v4575 = vmul.f32 %v4287, %v4574
  %v4576 = vrcp.pop %v4509
  %v4577 = vmul.f32 %v4289, %v4576
  %v4578 = vrcp.pop %v4512
  %v4579 = vmul.f32 %v4291, %v4578
  %v4580 = vrcp.pop %v4515
  %v4581 = vmul.f32 %v4293, %v4580
  %v4582 = vrcp.pop %v4518
  %v4583 = vmul.f32 %v4295, %v4582
  %v4584 = vrcp.pop %v4521
  %v4585 = vmul.f32 %v4297, %v4584
  %4618 = vrot.lane.b32.xlu0 %v4523, 96
  %v4619 = vpop.permute.xlu0 %4618
  %4620 = vrot.lane.b32.xlu0 %v4525, 96
  %v4621 = vpop.permute.xlu0 %4620
  %4622 = vrot.lane.b32.xlu0 %v4527, 96
  %v4623 = vpop.permute.xlu0 %4622
  %4624 = vrot.lane.b32.xlu0 %v4529, 96
  %v4625 = vpop.permute.xlu0 %4624
  %4626 = vrot.lane.b32.xlu0 %v4531, 96
  %v4627 = vpop.permute.xlu0 %4626
  %4628 = vrot.lane.b32.xlu0 %v4533, 96
  %v4629 = vpop.permute.xlu0 %4628
  %4630 = vrot.lane.b32.xlu0 %v4535, 96
  %v4631 = vpop.permute.xlu0 %4630
  %4632 = vrot.lane.b32.xlu0 %v4537, 96
  %v4633 = vpop.permute.xlu0 %4632
  %4634 = vrot.lane.b32.xlu0 %v4539, 96
  %v4635 = vpop.permute.xlu0 %4634
  %4636 = vrot.lane.b32.xlu0 %v4541, 96
  %v4637 = vpop.permute.xlu0 %4636
  %4638 = vrot.lane.b32.xlu0 %v4543, 96
  %v4639 = vpop.permute.xlu0 %4638
  %4640 = vrot.lane.b32.xlu0 %v4545, 96
  %v4641 = vpop.permute.xlu0 %4640
  %4642 = vrot.lane.b32.xlu0 %v4547, 96
  %v4643 = vpop.permute.xlu0 %4642
  %4644 = vrot.lane.b32.xlu0 %v4549, 96
  %v4645 = vpop.permute.xlu0 %4644
  %4646 = vrot.lane.b32.xlu0 %v4551, 96
  %v4647 = vpop.permute.xlu0 %4646
  %4648 = vrot.lane.b32.xlu0 %v4553, 96
  %v4649 = vpop.permute.xlu0 %4648
  %4650 = vrot.lane.b32.xlu0 %v4555, 96
  %v4651 = vpop.permute.xlu0 %4650
  %4652 = vrot.lane.b32.xlu0 %v4557, 96
  %v4653 = vpop.permute.xlu0 %4652
  %4654 = vrot.lane.b32.xlu0 %v4559, 96
  %v4655 = vpop.permute.xlu0 %4654
  %4656 = vrot.lane.b32.xlu0 %v4561, 96
  %v4657 = vpop.permute.xlu0 %4656
  %4658 = vrot.lane.b32.xlu0 %v4563, 96
  %v4659 = vpop.permute.xlu0 %4658
  %4660 = vrot.lane.b32.xlu0 %v4565, 96
  %v4661 = vpop.permute.xlu0 %4660
  %4662 = vrot.lane.b32.xlu0 %v4567, 96
  %v4663 = vpop.permute.xlu0 %4662
  %4664 = vrot.lane.b32.xlu0 %v4569, 96
  %v4665 = vpop.permute.xlu0 %4664
  %4666 = vrot.lane.b32.xlu0 %v4571, 96
  %v4667 = vpop.permute.xlu0 %4666
  %4668 = vrot.lane.b32.xlu0 %v4573, 96
  %v4669 = vpop.permute.xlu0 %4668
  %4670 = vrot.lane.b32.xlu0 %v4575, 96
  %v4671 = vpop.permute.xlu0 %4670
  %4672 = vrot.lane.b32.xlu0 %v4577, 96
  %v4673 = vpop.permute.xlu0 %4672
  %4674 = vrot.lane.b32.xlu0 %v4579, 96
  %v4675 = vpop.permute.xlu0 %4674
  %4676 = vrot.lane.b32.xlu0 %v4581, 96
  %v4677 = vpop.permute.xlu0 %4676
  %4678 = vrot.lane.b32.xlu0 %v4583, 96
  %v4679 = vpop.permute.xlu0 %4678
  %4680 = vrot.lane.b32.xlu0 %v4585, 96
  %v4681 = vpop.permute.xlu0 %4680
  %4714 = vst.msk [vmem:[%s6] sm:$0xff] %vm3912, %v4619
  %4715 = vst.msk [vmem:[%s6 + $0x8] sm:$0xff] %vm3912, %v4621
  %4716 = vst.msk [vmem:[%s6 + $0x10] sm:$0xff] %vm3912, %v4623
  %4717 = vst.msk [vmem:[%s6 + $0x18] sm:$0xff] %vm3912, %v4625
  %4718 = vst.msk [vmem:[%s6 + $0x20] sm:$0xff] %vm3912, %v4627
  %4719 = vst.msk [vmem:[%s6 + $0x28] sm:$0xff] %vm3912, %v4629
  %4720 = vst.msk [vmem:[%s6 + $0x30] sm:$0xff] %vm3912, %v4631
  %4721 = vst.msk [vmem:[%s6 + $0x38] sm:$0xff] %vm3912, %v4633
  %4722 = vst.msk [vmem:[%s6 + $0x40] sm:$0xff] %vm3912, %v4635
  %4723 = vst.msk [vmem:[%s6 + $0x48] sm:$0xff] %vm3912, %v4637
  %4724 = vst.msk [vmem:[%s6 + $0x50] sm:$0xff] %vm3912, %v4639
  %4725 = vst.msk [vmem:[%s6 + $0x58] sm:$0xff] %vm3912, %v4641
  %4726 = vst.msk [vmem:[%s6 + $0x60] sm:$0xff] %vm3912, %v4643
  %4727 = vst.msk [vmem:[%s6 + $0x68] sm:$0xff] %vm3912, %v4645
  %4728 = vst.msk [vmem:[%s6 + $0x70] sm:$0xff] %vm3912, %v4647
  %4729 = vst.msk [vmem:[%s6 + $0x78] sm:$0xff] %vm3912, %v4649
  %4730 = vst.msk [vmem:[%s6 + $0x80] sm:$0xff] %vm3912, %v4651
  %4731 = vst.msk [vmem:[%s6 + $0x88] sm:$0xff] %vm3912, %v4653
  %4732 = vst.msk [vmem:[%s6 + $0x90] sm:$0xff] %vm3912, %v4655
  %4733 = vst.msk [vmem:[%s6 + $0x98] sm:$0xff] %vm3912, %v4657
  %4734 = vst.msk [vmem:[%s6 + $0xa0] sm:$0xff] %vm3912, %v4659
  %4735 = vst.msk [vmem:[%s6 + $0xa8] sm:$0xff] %vm3912, %v4661
  %4736 = vst.msk [vmem:[%s6 + $0xb0] sm:$0xff] %vm3912, %v4663
  %4737 = vst.msk [vmem:[%s6 + $0xb8] sm:$0xff] %vm3912, %v4665
  %4738 = vst.msk [vmem:[%s6 + $0xc0] sm:$0xff] %vm3912, %v4667
  %4739 = vst.msk [vmem:[%s6 + $0xc8] sm:$0xff] %vm3912, %v4669
  %4740 = vst.msk [vmem:[%s6 + $0xd0] sm:$0xff] %vm3912, %v4671
  %4741 = vst.msk [vmem:[%s6 + $0xd8] sm:$0xff] %vm3912, %v4673
  %4742 = vst.msk [vmem:[%s6 + $0xe0] sm:$0xff] %vm3912, %v4675
  %4743 = vst.msk [vmem:[%s6 + $0xe8] sm:$0xff] %vm3912, %v4677
  %4744 = vst.msk [vmem:[%s6 + $0xf0] sm:$0xff] %vm3912, %v4679
  %4745 = vst.msk [vmem:[%s6 + $0xf8] sm:$0xff] %vm3912, %v4681
  // Predicated region
  $region18: #{tpu_custom_call.1} parent=0 // pred_check
    _
  $region19: #{tpu_custom_call.1} parent=0 // pred_check_branch
    %4747 = sbr.rel (0) target = $region21
  $region20: #{tpu_custom_call.1} parent=0 // pred_region
    _
  $region21: #{tpu_custom_call.1} parent=0 // pred_fallthru
    _
  // Predicated region
  $region22: #{tpu_custom_call.1} parent=0 // pred_check
    _
  $region23: #{tpu_custom_call.1} parent=0 // pred_check_branch
    %4749 = sbr.rel (0) target = $region25
  $region24: #{tpu_custom_call.1} parent=0 // pred_region
    _
  $region25: #{tpu_custom_call.1} parent=0 // pred_fallthru
    _
  // Predicated region
  $region26: #{tpu_custom_call.1} parent=0 // pred_check
    _
  $region27: #{tpu_custom_call.1} parent=0 // pred_check_branch
    %4751 = sbr.rel (0) target = $region29
  $region28: #{tpu_custom_call.1} parent=0 // pred_region
    _
  $region29: #{tpu_custom_call.1} parent=0 // pred_fallthru
    _
  // Predicated region
  $region30: #{tpu_custom_call.1} parent=0 // pred_check
    _
  $region31: #{tpu_custom_call.1} parent=0 // pred_check_branch
    %4753 = sbr.rel (0) target = $region33
  $region32: #{tpu_custom_call.1} parent=0 // pred_region
    _
  $region33: #{tpu_custom_call.1} parent=0 // pred_fallthru
    _
  // Predicated region
  $region34: #{tpu_custom_call.1} parent=0 // pred_check
    _
  $region35: #{tpu_custom_call.1} parent=0 // pred_check_branch
    %4755 = sbr.rel (0) target = $region37
  $region36: #{tpu_custom_call.1} parent=0 // pred_region
    _
  $region37: #{tpu_custom_call.1} parent=0 // pred_fallthru
    _
  // Predicated region
  $region38: #{tpu_custom_call.1} parent=0 // pred_check
    _
  $region39: #{tpu_custom_call.1} parent=0 // pred_check_branch
    %4757 = sbr.rel (0) target = $region41
  $region40: #{tpu_custom_call.1} parent=0 // pred_region
    _
  $region41: #{tpu_custom_call.1} parent=0 // pred_fallthru
    _

</llo_original>
